<compile_context>
chip_gen: v5e
topology: v5e:2x2
jax: 0.10.0
libtpu: 0.0.40
codegen_flags: <defaults>
</compile_context>

<pallas_src>
import jax
import jax.numpy as jnp
from jax.experimental import pallas as pl
from jax.experimental.pallas import tpu as pltpu  # noqa: F401


# ----------------------------------------------------------------------------
# Fused kernel factory: LSTM stack + fc + masked softmax(dim=0) over B*T rows.
# ----------------------------------------------------------------------------
def _make_fused_kernel(n_layers, seq_len, batch_pad, hidden_dim):
    L, T, Bp, H = n_layers, seq_len, batch_pad, hidden_dim

    def kernel(*refs):
        it = iter(refs)
        gx0_ref = next(it)                            # (T, Bp, 4H)  x@Wih0 + b0
        whh_refs = [next(it) for _ in range(L)]       # (H, 4H) each
        wih_refs = [next(it) for _ in range(L - 1)]   # (H, 4H) each, layers >=1
        b_refs = [next(it) for _ in range(L - 1)]     # (1, 4H) each, layers >=1
        fcw_ref = next(it)                            # (H, O)
        fcb_ref = next(it)                            # (1, O)
        mask_ref = next(it)                           # (T*Bp, 1) 1.0 = real row
        h0_ref = next(it)                             # (L, Bp, H)
        c0_ref = next(it)                             # (L, Bp, H)
        out_ref = next(it)                            # (T*Bp, O) logits->probs
        hN_ref = next(it)                             # (L, Bp, H)
        cN_ref = next(it)                             # (L, Bp, H)

        # Hoist weight loads + bf16 casts once (reused by every timestep).
        whh = [whh_refs[l][...].astype(jnp.bfloat16) for l in range(L)]
        wih = [wih_refs[l][...].astype(jnp.bfloat16) for l in range(L - 1)]
        bias = [b_refs[l][...] for l in range(L - 1)]
        fcw = fcw_ref[...].astype(jnp.bfloat16)
        fcb = fcb_ref[...]

        # h/c working state lives directly in the final-state output refs
        # (the whole output block is VMEM-resident for this single invocation).
        hN_ref[...] = h0_ref[...]
        cN_ref[...] = c0_ref[...]

        def lstm_cell(gates, c_prev):
            # PyTorch gate order i, f, g, o; elementwise math kept in f32.
            # (At H=32 the gate slices are 32-lane sub-slices of one 128-lane
            #  vreg; at realistic H>=128 they become naturally lane-aligned.)
            i_g = jax.nn.sigmoid(gates[:, 0 * H:1 * H])
            f_g = jax.nn.sigmoid(gates[:, 1 * H:2 * H])
            g_g = jnp.tanh(gates[:, 2 * H:3 * H])
            o_g = jax.nn.sigmoid(gates[:, 3 * H:4 * H])
            c_new = f_g * c_prev + i_g * g_g
            h_new = o_g * jnp.tanh(c_new)
            return h_new, c_new

        # Time loop fully unrolled in-kernel (T static & small).  For long
        # sequences switch to lax.fori_loop(..., unroll=True) or a grid axis.
        for t in range(T):
            x_in_b16 = None
            for l in range(L):
                h_prev_b16 = hN_ref[l].astype(jnp.bfloat16)
                if l == 0:
                    # input projection already hoisted -> only h @ W_hh here
                    gates = gx0_ref[t] + jnp.dot(
                        h_prev_b16, whh[0], preferred_element_type=jnp.float32)
                else:
                    gates = (jnp.dot(x_in_b16, wih[l - 1],
                                     preferred_element_type=jnp.float32)
                             + jnp.dot(h_prev_b16, whh[l],
                                       preferred_element_type=jnp.float32)
                             + bias[l - 1])
                h_new, c_new = lstm_cell(gates, cN_ref[l])
                hN_ref[l] = h_new
                cN_ref[l] = c_new
                x_in_b16 = h_new.astype(jnp.bfloat16)

            # Fused fc head.  dropout(0.3) / inter-layer LSTM dropout(0.5) are
            # train-mode only; eval semantics (identity) implemented here.
            logit = jnp.dot(x_in_b16, fcw,
                            preferred_element_type=jnp.float32) + fcb
            out_ref[t * Bp:(t + 1) * Bp, :] = logit

        # softmax over dim=0 of the flattened (B*T, O) rows (torch semantics),
        # masking padded batch rows out of the max / sum.
        logits = out_ref[...]                      # (T*Bp, O)
        mask = mask_ref[...]                       # (T*Bp, 1)
        masked = jnp.where(mask > 0.0, logits, jnp.float32(-1e30))
        m = jnp.max(masked, axis=0, keepdims=True)
        e = jnp.exp(logits - m) * mask
        s = jnp.sum(e, axis=0, keepdims=True)
        out_ref[...] = e / s

    return kernel


def _fused_forward_call(gx0, whh_list, wih_list, b_list, fc_w, fc_b, mask,
                        h0_p, c0_p):
    T, Bp, G = gx0.shape
    H = G // 4
    L = h0_p.shape[0]
    O = fc_w.shape[1]
    kernel = _make_fused_kernel(L, T, Bp, H)

    def full(shape):
        return pl.BlockSpec(shape, lambda: (0,) * len(shape))

    in_specs = ([full((T, Bp, G))]
                + [full((H, G)) for _ in whh_list]
                + [full((H, G)) for _ in wih_list]
                + [full((1, G)) for _ in b_list]
                + [full((H, O)), full((1, O)), full((T * Bp, 1)),
                   full((L, Bp, H)), full((L, Bp, H))])
    out_specs = (full((T * Bp, O)), full((L, Bp, H)), full((L, Bp, H)))
    out_shape = (jax.ShapeDtypeStruct((T * Bp, O), jnp.float32),
                 jax.ShapeDtypeStruct((L, Bp, H), jnp.float32),
                 jax.ShapeDtypeStruct((L, Bp, H), jnp.float32))
    return pl.pallas_call(
        kernel,
        out_shape=out_shape,
        in_specs=in_specs,
        out_specs=out_specs,
    )(gx0, *whh_list, *wih_list, *b_list, fc_w, fc_b, mask, h0_p, c0_p)


# ----------------------------------------------------------------------------
# Full forward (matches sentimentLSTM.forward, eval-mode dropout == identity)
# ----------------------------------------------------------------------------
def init_params(key, vocab_size, output_size, embedding_dim, hidden_dim,
                n_layers):
    ks = jax.random.split(key, 2 + 4 * n_layers)
    params = {
        "embedding": 0.1 * jax.random.normal(
            ks[0], (vocab_size, embedding_dim), jnp.float32),
        "fc_w": 0.1 * jax.random.normal(
            ks[1], (hidden_dim, output_size), jnp.float32),
        "fc_b": jnp.zeros((1, output_size), jnp.float32),
    }
    for l in range(n_layers):
        in_dim = embedding_dim if l == 0 else hidden_dim
        base = 2 + 4 * l
        params[f"wih_{l}"] = 0.1 * jax.random.normal(
            ks[base + 0], (in_dim, 4 * hidden_dim), jnp.float32)      # W_ih^T
        params[f"whh_{l}"] = 0.1 * jax.random.normal(
            ks[base + 1], (hidden_dim, 4 * hidden_dim), jnp.float32)  # W_hh^T
        b_ih = 0.1 * jax.random.normal(
            ks[base + 2], (1, 4 * hidden_dim), jnp.float32)
        b_hh = 0.1 * jax.random.normal(
            ks[base + 3], (1, 4 * hidden_dim), jnp.float32)
        params[f"b_{l}"] = b_ih + b_hh                                # combined
    return params


@jax.jit
def sentiment_lstm_forward(x_ids, h0_all, c0_all, params):
    B, T = x_ids.shape
    L, _, H = h0_all.shape
    O = params["fc_b"].shape[-1]
    E = params["embedding"].shape[-1]
    Bp = ((B + 7) // 8) * 8                       # pad batch to f32 sublanes

    # Embedding gather directly in time-major (no (T,B,E) activation transpose)
    emb_tm = jnp.take(params["embedding"], jnp.transpose(x_ids), axis=0)
    emb_p = jnp.zeros((T, Bp, E), jnp.float32).at[:, :B, :].set(emb_tm)

    # Hoisted layer-0 input projection: one large matmul outside the recurrence
    gx0 = jnp.einsum("tbe,eg->tbg", emb_p, params["wih_0"],
                     preferred_element_type=jnp.float32) + params["b_0"]

    h0_p = jnp.zeros((L, Bp, H), jnp.float32).at[:, :B, :].set(h0_all)
    c0_p = jnp.zeros((L, Bp, H), jnp.float32).at[:, :B, :].set(c0_all)

    # Valid-row mask for the softmax over the flattened (B*T) rows
    mask = jnp.tile((jnp.arange(Bp) < B).astype(jnp.float32),
                    (T,)).reshape(T * Bp, 1)

    whh_list = [params[f"whh_{l}"] for l in range(L)]
    wih_list = [params[f"wih_{l}"] for l in range(1, L)]
    b_list = [params[f"b_{l}"] for l in range(1, L)]

    probs_flat, hN_p, cN_p = _fused_forward_call(
        gx0, whh_list, wih_list, b_list, params["fc_w"], params["fc_b"],
        mask, h0_p, c0_p)

    probs = probs_flat.reshape(T, Bp, O)[:, :B, :]               # (T, B, O)
    out = jnp.transpose(probs, (1, 0, 2)).reshape(B, T * O)      # torch .view(B,-1)
    return out, (hN_p[:, :B, :], cN_p[:, :B, :])


if __name__ == "__main__":
    vocab_size, output_size = 50, 2
    embedding_dim, hidden_dim, n_layers = 32, 32, 2
    B, T = 2, 8

    key = jax.random.PRNGKey(0)
    k_param, k_x = jax.random.split(key)
    params = init_params(k_param, vocab_size, output_size, embedding_dim,
                         hidden_dim, n_layers)
    x_ids = jax.random.randint(k_x, (B, T), 0, vocab_size, dtype=jnp.int32)

    # init_hidden(batch_size)
    h0 = jnp.zeros((n_layers, B, hidden_dim), jnp.float32)
    c0 = jnp.zeros((n_layers, B, hidden_dim), jnp.float32)

    out, (hN, cN) = sentiment_lstm_forward(x_ids, h0, c0, params)
    jax.block_until_ready((out, hN, cN))

    assert out.shape == (B, T * output_size)
    assert hN.shape == (n_layers, B, hidden_dim)
    assert cN.shape == (n_layers, B, hidden_dim)
    # softmax(dim=0) over the flattened (B*T, O) rows: each column sums to 1.
    col_sums = out.reshape(B * T, output_size).sum(axis=0)
    assert jnp.allclose(col_sums, 1.0, atol=1e-4), col_sums
    assert bool(jnp.all(jnp.isfinite(out)))
    print("KERNEL_OK")
</pallas_src>

<mosaic_0001>
module attributes {stable_mosaic.version = 11 : i64} {
  func.func @kernel(%arg0: memref<8x8x128xf32, #tpu.memory_space<vmem>>, %arg1: memref<32x128xf32, #tpu.memory_space<vmem>>, %arg2: memref<32x128xf32, #tpu.memory_space<vmem>>, %arg3: memref<32x128xf32, #tpu.memory_space<vmem>>, %arg4: memref<1x128xf32, #tpu.memory_space<vmem>>, %arg5: memref<32x2xf32, #tpu.memory_space<vmem>>, %arg6: memref<1x2xf32, #tpu.memory_space<vmem>>, %arg7: memref<64x1xf32, #tpu.memory_space<vmem>>, %arg8: memref<2x8x32xf32, #tpu.memory_space<vmem>>, %arg9: memref<2x8x32xf32, #tpu.memory_space<vmem>>, %arg10: memref<64x2xf32, #tpu.memory_space<vmem>>, %arg11: memref<2x8x32xf32, #tpu.memory_space<vmem>>, %arg12: memref<2x8x32xf32, #tpu.memory_space<vmem>>) attributes {dimension_semantics = [], scalar_prefetch = 0 : i64, scratch_operands = 0 : i64, tpu.core_type = #tpu.core_type<tc>} {
    %c0 = arith.constant 0 : index
    %c0_0 = arith.constant 0 : index
    %0 = vector.load %arg1[%c0, %c0_0] : memref<32x128xf32, #tpu.memory_space<vmem>>, vector<32x128xf32>
    %1 = arith.truncf %0 : vector<32x128xf32> to vector<32x128xbf16>
    %c0_1 = arith.constant 0 : index
    %c0_2 = arith.constant 0 : index
    %2 = vector.load %arg2[%c0_1, %c0_2] : memref<32x128xf32, #tpu.memory_space<vmem>>, vector<32x128xf32>
    %3 = arith.truncf %2 : vector<32x128xf32> to vector<32x128xbf16>
    %c0_3 = arith.constant 0 : index
    %c0_4 = arith.constant 0 : index
    %4 = vector.load %arg3[%c0_3, %c0_4] : memref<32x128xf32, #tpu.memory_space<vmem>>, vector<32x128xf32>
    %5 = arith.truncf %4 : vector<32x128xf32> to vector<32x128xbf16>
    %c0_5 = arith.constant 0 : index
    %c0_6 = arith.constant 0 : index
    %6 = vector.load %arg4[%c0_5, %c0_6] : memref<1x128xf32, #tpu.memory_space<vmem>>, vector<1x128xf32>
    %c0_7 = arith.constant 0 : index
    %c0_8 = arith.constant 0 : index
    %7 = vector.load %arg5[%c0_7, %c0_8] : memref<32x2xf32, #tpu.memory_space<vmem>>, vector<32x2xf32>
    %8 = arith.truncf %7 : vector<32x2xf32> to vector<32x2xbf16>
    %c0_9 = arith.constant 0 : index
    %c0_10 = arith.constant 0 : index
    %9 = vector.load %arg6[%c0_9, %c0_10] : memref<1x2xf32, #tpu.memory_space<vmem>>, vector<1x2xf32>
    %c0_11 = arith.constant 0 : index
    %c0_12 = arith.constant 0 : index
    %c0_13 = arith.constant 0 : index
    %10 = vector.load %arg8[%c0_11, %c0_12, %c0_13] : memref<2x8x32xf32, #tpu.memory_space<vmem>>, vector<2x8x32xf32>
    %c0_14 = arith.constant 0 : index
    %c0_15 = arith.constant 0 : index
    %c0_16 = arith.constant 0 : index
    %11 = vector.load %arg11[%c0_14, %c0_15, %c0_16] : memref<2x8x32xf32, #tpu.memory_space<vmem>>, vector<2x8x32xf32>
    tpu.vector_store %arg11[%c0_14, %c0_15, %c0_16], %10 {strides = array<i32>} : memref<2x8x32xf32, #tpu.memory_space<vmem>>, vector<2x8x32xf32>,
    %c0_17 = arith.constant 0 : index
    %c0_18 = arith.constant 0 : index
    %c0_19 = arith.constant 0 : index
    %12 = vector.load %arg9[%c0_17, %c0_18, %c0_19] : memref<2x8x32xf32, #tpu.memory_space<vmem>>, vector<2x8x32xf32>
    %c0_20 = arith.constant 0 : index
    %c0_21 = arith.constant 0 : index
    %c0_22 = arith.constant 0 : index
    %13 = vector.load %arg12[%c0_20, %c0_21, %c0_22] : memref<2x8x32xf32, #tpu.memory_space<vmem>>, vector<2x8x32xf32>
    tpu.vector_store %arg12[%c0_20, %c0_21, %c0_22], %12 {strides = array<i32>} : memref<2x8x32xf32, #tpu.memory_space<vmem>>, vector<2x8x32xf32>,
    %c0_23 = arith.constant 0 : index
    %c0_24 = arith.constant 0 : index
    %c0_25 = arith.constant 0 : index
    %14 = vector.load %arg11[%c0_23, %c0_24, %c0_25] : memref<2x8x32xf32, #tpu.memory_space<vmem>>, vector<1x8x32xf32>
    %15 = vector.shape_cast %14 : vector<1x8x32xf32> to vector<8x32xf32>
    %16 = arith.truncf %15 : vector<8x32xf32> to vector<8x32xbf16>
    %c0_26 = arith.constant 0 : index
    %c0_27 = arith.constant 0 : index
    %c0_28 = arith.constant 0 : index
    %17 = vector.load %arg0[%c0_26, %c0_27, %c0_28] : memref<8x8x128xf32, #tpu.memory_space<vmem>>, vector<1x8x128xf32>
    %18 = vector.shape_cast %17 : vector<1x8x128xf32> to vector<8x128xf32>
    %cst = arith.constant dense<0.000000e+00> : vector<8x128xf32>
    %19 = tpu.matmul %16, %1, %cst {dimension_numbers = #tpu.dot_dimension_numbers<[1], [0], [0], [1], [0, 0, 1, 1], [], []>} : vector<8x32xbf16>, vector<32x128xbf16>, vector<8x128xf32> -> vector<8x128xf32>
    %20 = arith.addf %18, %19 : vector<8x128xf32>
    %c0_29 = arith.constant 0 : index
    %c0_30 = arith.constant 0 : index
    %c0_31 = arith.constant 0 : index
    %21 = vector.load %arg12[%c0_29, %c0_30, %c0_31] : memref<2x8x32xf32, #tpu.memory_space<vmem>>, vector<1x8x32xf32>
    %22 = vector.shape_cast %21 : vector<1x8x32xf32> to vector<8x32xf32>
    %23 = vector.extract_strided_slice %20 {offsets = [0, 0], sizes = [8, 32], strides = [1, 1]} : vector<8x128xf32> to vector<8x32xf32>
    %24 = arith.negf %23 : vector<8x32xf32>
    %25 = math.exp %24 : vector<8x32xf32>
    %cst_32 = arith.constant 1.000000e+00 : f32
    %26 = vector.broadcast %cst_32 : f32 to vector<8x32xf32>
    %27 = arith.addf %26, %25 : vector<8x32xf32>
    %28 = arith.divf %26, %27 : vector<8x32xf32>
    %29 = vector.extract_strided_slice %20 {offsets = [0, 32], sizes = [8, 32], strides = [1, 1]} : vector<8x128xf32> to vector<8x32xf32>
    %30 = arith.negf %29 : vector<8x32xf32>
    %31 = math.exp %30 : vector<8x32xf32>
    %cst_33 = arith.constant 1.000000e+00 : f32
    %32 = vector.broadcast %cst_33 : f32 to vector<8x32xf32>
    %33 = arith.addf %32, %31 : vector<8x32xf32>
    %34 = arith.divf %32, %33 : vector<8x32xf32>
    %35 = vector.extract_strided_slice %20 {offsets = [0, 64], sizes = [8, 32], strides = [1, 1]} : vector<8x128xf32> to vector<8x32xf32>
    %36 = math.tanh %35 : vector<8x32xf32>
    %37 = vector.extract_strided_slice %20 {offsets = [0, 96], sizes = [8, 32], strides = [1, 1]} : vector<8x128xf32> to vector<8x32xf32>
    %38 = arith.negf %37 : vector<8x32xf32>
    %39 = math.exp %38 : vector<8x32xf32>
    %cst_34 = arith.constant 1.000000e+00 : f32
    %40 = vector.broadcast %cst_34 : f32 to vector<8x32xf32>
    %41 = arith.addf %40, %39 : vector<8x32xf32>
    %42 = arith.divf %40, %41 : vector<8x32xf32>
    %43 = arith.mulf %34, %22 : vector<8x32xf32>
    %44 = arith.mulf %28, %36 : vector<8x32xf32>
    %45 = arith.addf %43, %44 : vector<8x32xf32>
    %46 = math.tanh %45 : vector<8x32xf32>
    %47 = arith.mulf %42, %46 : vector<8x32xf32>
    %c0_35 = arith.constant 0 : index
    %c0_36 = arith.constant 0 : index
    %c0_37 = arith.constant 0 : index
    %48 = vector.load %arg11[%c0_35, %c0_36, %c0_37] : memref<2x8x32xf32, #tpu.memory_space<vmem>>, vector<1x8x32xf32>
    %49 = vector.shape_cast %48 : vector<1x8x32xf32> to vector<8x32xf32>
    %50 = vector.shape_cast %47 : vector<8x32xf32> to vector<1x8x32xf32>
    tpu.vector_store %arg11[%c0_35, %c0_36, %c0_37], %50 {strides = array<i32>} : memref<2x8x32xf32, #tpu.memory_space<vmem>>, vector<1x8x32xf32>,
    %c0_38 = arith.constant 0 : index
    %c0_39 = arith.constant 0 : index
    %c0_40 = arith.constant 0 : index
    %51 = vector.load %arg12[%c0_38, %c0_39, %c0_40] : memref<2x8x32xf32, #tpu.memory_space<vmem>>, vector<1x8x32xf32>
    %52 = vector.shape_cast %51 : vector<1x8x32xf32> to vector<8x32xf32>
    %53 = vector.shape_cast %45 : vector<8x32xf32> to vector<1x8x32xf32>
    tpu.vector_store %arg12[%c0_38, %c0_39, %c0_40], %53 {strides = array<i32>} : memref<2x8x32xf32, #tpu.memory_space<vmem>>, vector<1x8x32xf32>,
    %54 = arith.truncf %47 : vector<8x32xf32> to vector<8x32xbf16>
    %c1 = arith.constant 1 : index
    %c0_41 = arith.constant 0 : index
    %c0_42 = arith.constant 0 : index
    %55 = vector.load %arg11[%c1, %c0_41, %c0_42] : memref<2x8x32xf32, #tpu.memory_space<vmem>>, vector<1x8x32xf32>
    %56 = vector.shape_cast %55 : vector<1x8x32xf32> to vector<8x32xf32>
    %57 = arith.truncf %56 : vector<8x32xf32> to vector<8x32xbf16>
    %cst_43 = arith.constant dense<0.000000e+00> : vector<8x128xf32>
    %58 = tpu.matmul %54, %5, %cst_43 {dimension_numbers = #tpu.dot_dimension_numbers<[1], [0], [0], [1], [0, 0, 1, 1], [], []>} : vector<8x32xbf16>, vector<32x128xbf16>, vector<8x128xf32> -> vector<8x128xf32>
    %cst_44 = arith.constant dense<0.000000e+00> : vector<8x128xf32>
    %59 = tpu.matmul %57, %3, %cst_44 {dimension_numbers = #tpu.dot_dimension_numbers<[1], [0], [0], [1], [0, 0, 1, 1], [], []>} : vector<8x32xbf16>, vector<32x128xbf16>, vector<8x128xf32> -> vector<8x128xf32>
    %60 = arith.addf %58, %59 : vector<8x128xf32>
    %61 = vector.broadcast %6 : vector<1x128xf32> to vector<8x128xf32>
    %62 = arith.addf %60, %61 : vector<8x128xf32>
    %c1_45 = arith.constant 1 : index
    %c0_46 = arith.constant 0 : index
    %c0_47 = arith.constant 0 : index
    %63 = vector.load %arg12[%c1_45, %c0_46, %c0_47] : memref<2x8x32xf32, #tpu.memory_space<vmem>>, vector<1x8x32xf32>
    %64 = vector.shape_cast %63 : vector<1x8x32xf32> to vector<8x32xf32>
    %65 = vector.extract_strided_slice %62 {offsets = [0, 0], sizes = [8, 32], strides = [1, 1]} : vector<8x128xf32> to vector<8x32xf32>
    %66 = arith.negf %65 : vector<8x32xf32>
    %67 = math.exp %66 : vector<8x32xf32>
    %cst_48 = arith.constant 1.000000e+00 : f32
    %68 = vector.broadcast %cst_48 : f32 to vector<8x32xf32>
    %69 = arith.addf %68, %67 : vector<8x32xf32>
    %70 = arith.divf %68, %69 : vector<8x32xf32>
    %71 = vector.extract_strided_slice %62 {offsets = [0, 32], sizes = [8, 32], strides = [1, 1]} : vector<8x128xf32> to vector<8x32xf32>
    %72 = arith.negf %71 : vector<8x32xf32>
    %73 = math.exp %72 : vector<8x32xf32>
    %cst_49 = arith.constant 1.000000e+00 : f32
    %74 = vector.broadcast %cst_49 : f32 to vector<8x32xf32>
    %75 = arith.addf %74, %73 : vector<8x32xf32>
    %76 = arith.divf %74, %75 : vector<8x32xf32>
    %77 = vector.extract_strided_slice %62 {offsets = [0, 64], sizes = [8, 32], strides = [1, 1]} : vector<8x128xf32> to vector<8x32xf32>
    %78 = math.tanh %77 : vector<8x32xf32>
    %79 = vector.extract_strided_slice %62 {offsets = [0, 96], sizes = [8, 32], strides = [1, 1]} : vector<8x128xf32> to vector<8x32xf32>
    %80 = arith.negf %79 : vector<8x32xf32>
    %81 = math.exp %80 : vector<8x32xf32>
    %cst_50 = arith.constant 1.000000e+00 : f32
    %82 = vector.broadcast %cst_50 : f32 to vector<8x32xf32>
    %83 = arith.addf %82, %81 : vector<8x32xf32>
    %84 = arith.divf %82, %83 : vector<8x32xf32>
    %85 = arith.mulf %76, %64 : vector<8x32xf32>
    %86 = arith.mulf %70, %78 : vector<8x32xf32>
    %87 = arith.addf %85, %86 : vector<8x32xf32>
    %88 = math.tanh %87 : vector<8x32xf32>
    %89 = arith.mulf %84, %88 : vector<8x32xf32>
    %c1_51 = arith.constant 1 : index
    %c0_52 = arith.constant 0 : index
    %c0_53 = arith.constant 0 : index
    %90 = vector.load %arg11[%c1_51, %c0_52, %c0_53] : memref<2x8x32xf32, #tpu.memory_space<vmem>>, vector<1x8x32xf32>
    %91 = vector.shape_cast %90 : vector<1x8x32xf32> to vector<8x32xf32>
    %92 = vector.shape_cast %89 : vector<8x32xf32> to vector<1x8x32xf32>
    tpu.vector_store %arg11[%c1_51, %c0_52, %c0_53], %92 {strides = array<i32>} : memref<2x8x32xf32, #tpu.memory_space<vmem>>, vector<1x8x32xf32>,
    %c1_54 = arith.constant 1 : index
    %c0_55 = arith.constant 0 : index
    %c0_56 = arith.constant 0 : index
    %93 = vector.load %arg12[%c1_54, %c0_55, %c0_56] : memref<2x8x32xf32, #tpu.memory_space<vmem>>, vector<1x8x32xf32>
    %94 = vector.shape_cast %93 : vector<1x8x32xf32> to vector<8x32xf32>
    %95 = vector.shape_cast %87 : vector<8x32xf32> to vector<1x8x32xf32>
    tpu.vector_store %arg12[%c1_54, %c0_55, %c0_56], %95 {strides = array<i32>} : memref<2x8x32xf32, #tpu.memory_space<vmem>>, vector<1x8x32xf32>,
    %96 = arith.truncf %89 : vector<8x32xf32> to vector<8x32xbf16>
    %cst_57 = arith.constant dense<0.000000e+00> : vector<8x2xf32>
    %97 = tpu.matmul %96, %8, %cst_57 {dimension_numbers = #tpu.dot_dimension_numbers<[1], [0], [0], [1], [0, 0, 1, 1], [], []>} : vector<8x32xbf16>, vector<32x2xbf16>, vector<8x2xf32> -> vector<8x2xf32>
    %98 = vector.broadcast %9 : vector<1x2xf32> to vector<8x2xf32>
    %99 = arith.addf %97, %98 : vector<8x2xf32>
    %c0_58 = arith.constant 0 : index
    %c0_59 = arith.constant 0 : index
    %100 = vector.load %arg10[%c0_58, %c0_59] : memref<64x2xf32, #tpu.memory_space<vmem>>, vector<8x2xf32>
    tpu.vector_store %arg10[%c0_58, %c0_59], %99 {strides = array<i32>} : memref<64x2xf32, #tpu.memory_space<vmem>>, vector<8x2xf32>,
    %c0_60 = arith.constant 0 : index
    %c0_61 = arith.constant 0 : index
    %c0_62 = arith.constant 0 : index
    %101 = vector.load %arg11[%c0_60, %c0_61, %c0_62] : memref<2x8x32xf32, #tpu.memory_space<vmem>>, vector<1x8x32xf32>
    %102 = vector.shape_cast %101 : vector<1x8x32xf32> to vector<8x32xf32>
    %103 = arith.truncf %102 : vector<8x32xf32> to vector<8x32xbf16>
    %c1_63 = arith.constant 1 : index
    %c0_64 = arith.constant 0 : index
    %c0_65 = arith.constant 0 : index
    %104 = vector.load %arg0[%c1_63, %c0_64, %c0_65] : memref<8x8x128xf32, #tpu.memory_space<vmem>>, vector<1x8x128xf32>
    %105 = vector.shape_cast %104 : vector<1x8x128xf32> to vector<8x128xf32>
    %cst_66 = arith.constant dense<0.000000e+00> : vector<8x128xf32>
    %106 = tpu.matmul %103, %1, %cst_66 {dimension_numbers = #tpu.dot_dimension_numbers<[1], [0], [0], [1], [0, 0, 1, 1], [], []>} : vector<8x32xbf16>, vector<32x128xbf16>, vector<8x128xf32> -> vector<8x128xf32>
    %107 = arith.addf %105, %106 : vector<8x128xf32>
    %c0_67 = arith.constant 0 : index
    %c0_68 = arith.constant 0 : index
    %c0_69 = arith.constant 0 : index
    %108 = vector.load %arg12[%c0_67, %c0_68, %c0_69] : memref<2x8x32xf32, #tpu.memory_space<vmem>>, vector<1x8x32xf32>
    %109 = vector.shape_cast %108 : vector<1x8x32xf32> to vector<8x32xf32>
    %110 = vector.extract_strided_slice %107 {offsets = [0, 0], sizes = [8, 32], strides = [1, 1]} : vector<8x128xf32> to vector<8x32xf32>
    %111 = arith.negf %110 : vector<8x32xf32>
    %112 = math.exp %111 : vector<8x32xf32>
    %cst_70 = arith.constant 1.000000e+00 : f32
    %113 = vector.broadcast %cst_70 : f32 to vector<8x32xf32>
    %114 = arith.addf %113, %112 : vector<8x32xf32>
    %115 = arith.divf %113, %114 : vector<8x32xf32>
    %116 = vector.extract_strided_slice %107 {offsets = [0, 32], sizes = [8, 32], strides = [1, 1]} : vector<8x128xf32> to vector<8x32xf32>
    %117 = arith.negf %116 : vector<8x32xf32>
    %118 = math.exp %117 : vector<8x32xf32>
    %cst_71 = arith.constant 1.000000e+00 : f32
    %119 = vector.broadcast %cst_71 : f32 to vector<8x32xf32>
    %120 = arith.addf %119, %118 : vector<8x32xf32>
    %121 = arith.divf %119, %120 : vector<8x32xf32>
    %122 = vector.extract_strided_slice %107 {offsets = [0, 64], sizes = [8, 32], strides = [1, 1]} : vector<8x128xf32> to vector<8x32xf32>
    %123 = math.tanh %122 : vector<8x32xf32>
    %124 = vector.extract_strided_slice %107 {offsets = [0, 96], sizes = [8, 32], strides = [1, 1]} : vector<8x128xf32> to vector<8x32xf32>
    %125 = arith.negf %124 : vector<8x32xf32>
    %126 = math.exp %125 : vector<8x32xf32>
    %cst_72 = arith.constant 1.000000e+00 : f32
    %127 = vector.broadcast %cst_72 : f32 to vector<8x32xf32>
    %128 = arith.addf %127, %126 : vector<8x32xf32>
    %129 = arith.divf %127, %128 : vector<8x32xf32>
    %130 = arith.mulf %121, %109 : vector<8x32xf32>
    %131 = arith.mulf %115, %123 : vector<8x32xf32>
    %132 = arith.addf %130, %131 : vector<8x32xf32>
    %133 = math.tanh %132 : vector<8x32xf32>
    %134 = arith.mulf %129, %133 : vector<8x32xf32>
    %c0_73 = arith.constant 0 : index
    %c0_74 = arith.constant 0 : index
    %c0_75 = arith.constant 0 : index
    %135 = vector.load %arg11[%c0_73, %c0_74, %c0_75] : memref<2x8x32xf32, #tpu.memory_space<vmem>>, vector<1x8x32xf32>
    %136 = vector.shape_cast %135 : vector<1x8x32xf32> to vector<8x32xf32>
    %137 = vector.shape_cast %134 : vector<8x32xf32> to vector<1x8x32xf32>
    tpu.vector_store %arg11[%c0_73, %c0_74, %c0_75], %137 {strides = array<i32>} : memref<2x8x32xf32, #tpu.memory_space<vmem>>, vector<1x8x32xf32>,
    %c0_76 = arith.constant 0 : index
    %c0_77 = arith.constant 0 : index
    %c0_78 = arith.constant 0 : index
    %138 = vector.load %arg12[%c0_76, %c0_77, %c0_78] : memref<2x8x32xf32, #tpu.memory_space<vmem>>, vector<1x8x32xf32>
    %139 = vector.shape_cast %138 : vector<1x8x32xf32> to vector<8x32xf32>
    %140 = vector.shape_cast %132 : vector<8x32xf32> to vector<1x8x32xf32>
    tpu.vector_store %arg12[%c0_76, %c0_77, %c0_78], %140 {strides = array<i32>} : memref<2x8x32xf32, #tpu.memory_space<vmem>>, vector<1x8x32xf32>,
    %141 = arith.truncf %134 : vector<8x32xf32> to vector<8x32xbf16>
    %c1_79 = arith.constant 1 : index
    %c0_80 = arith.constant 0 : index
    %c0_81 = arith.constant 0 : index
    %142 = vector.load %arg11[%c1_79, %c0_80, %c0_81] : memref<2x8x32xf32, #tpu.memory_space<vmem>>, vector<1x8x32xf32>
    %143 = vector.shape_cast %142 : vector<1x8x32xf32> to vector<8x32xf32>
    %144 = arith.truncf %143 : vector<8x32xf32> to vector<8x32xbf16>
    %cst_82 = arith.constant dense<0.000000e+00> : vector<8x128xf32>
    %145 = tpu.matmul %141, %5, %cst_82 {dimension_numbers = #tpu.dot_dimension_numbers<[1], [0], [0], [1], [0, 0, 1, 1], [], []>} : vector<8x32xbf16>, vector<32x128xbf16>, vector<8x128xf32> -> vector<8x128xf32>
    %cst_83 = arith.constant dense<0.000000e+00> : vector<8x128xf32>
    %146 = tpu.matmul %144, %3, %cst_83 {dimension_numbers = #tpu.dot_dimension_numbers<[1], [0], [0], [1], [0, 0, 1, 1], [], []>} : vector<8x32xbf16>, vector<32x128xbf16>, vector<8x128xf32> -> vector<8x128xf32>
    %147 = arith.addf %145, %146 : vector<8x128xf32>
    %148 = vector.broadcast %6 : vector<1x128xf32> to vector<8x128xf32>
    %149 = arith.addf %147, %148 : vector<8x128xf32>
    %c1_84 = arith.constant 1 : index
    %c0_85 = arith.constant 0 : index
    %c0_86 = arith.constant 0 : index
    %150 = vector.load %arg12[%c1_84, %c0_85, %c0_86] : memref<2x8x32xf32, #tpu.memory_space<vmem>>, vector<1x8x32xf32>
    %151 = vector.shape_cast %150 : vector<1x8x32xf32> to vector<8x32xf32>
    %152 = vector.extract_strided_slice %149 {offsets = [0, 0], sizes = [8, 32], strides = [1, 1]} : vector<8x128xf32> to vector<8x32xf32>
    %153 = arith.negf %152 : vector<8x32xf32>
    %154 = math.exp %153 : vector<8x32xf32>
    %cst_87 = arith.constant 1.000000e+00 : f32
    %155 = vector.broadcast %cst_87 : f32 to vector<8x32xf32>
    %156 = arith.addf %155, %154 : vector<8x32xf32>
    %157 = arith.divf %155, %156 : vector<8x32xf32>
    %158 = vector.extract_strided_slice %149 {offsets = [0, 32], sizes = [8, 32], strides = [1, 1]} : vector<8x128xf32> to vector<8x32xf32>
    %159 = arith.negf %158 : vector<8x32xf32>
    %160 = math.exp %159 : vector<8x32xf32>
    %cst_88 = arith.constant 1.000000e+00 : f32
    %161 = vector.broadcast %cst_88 : f32 to vector<8x32xf32>
    %162 = arith.addf %161, %160 : vector<8x32xf32>
    %163 = arith.divf %161, %162 : vector<8x32xf32>
    %164 = vector.extract_strided_slice %149 {offsets = [0, 64], sizes = [8, 32], strides = [1, 1]} : vector<8x128xf32> to vector<8x32xf32>
    %165 = math.tanh %164 : vector<8x32xf32>
    %166 = vector.extract_strided_slice %149 {offsets = [0, 96], sizes = [8, 32], strides = [1, 1]} : vector<8x128xf32> to vector<8x32xf32>
    %167 = arith.negf %166 : vector<8x32xf32>
    %168 = math.exp %167 : vector<8x32xf32>
    %cst_89 = arith.constant 1.000000e+00 : f32
    %169 = vector.broadcast %cst_89 : f32 to vector<8x32xf32>
    %170 = arith.addf %169, %168 : vector<8x32xf32>
    %171 = arith.divf %169, %170 : vector<8x32xf32>
    %172 = arith.mulf %163, %151 : vector<8x32xf32>
    %173 = arith.mulf %157, %165 : vector<8x32xf32>
    %174 = arith.addf %172, %173 : vector<8x32xf32>
    %175 = math.tanh %174 : vector<8x32xf32>
    %176 = arith.mulf %171, %175 : vector<8x32xf32>
    %c1_90 = arith.constant 1 : index
    %c0_91 = arith.constant 0 : index
    %c0_92 = arith.constant 0 : index
    %177 = vector.load %arg11[%c1_90, %c0_91, %c0_92] : memref<2x8x32xf32, #tpu.memory_space<vmem>>, vector<1x8x32xf32>
    %178 = vector.shape_cast %177 : vector<1x8x32xf32> to vector<8x32xf32>
    %179 = vector.shape_cast %176 : vector<8x32xf32> to vector<1x8x32xf32>
    tpu.vector_store %arg11[%c1_90, %c0_91, %c0_92], %179 {strides = array<i32>} : memref<2x8x32xf32, #tpu.memory_space<vmem>>, vector<1x8x32xf32>,
    %c1_93 = arith.constant 1 : index
    %c0_94 = arith.constant 0 : index
    %c0_95 = arith.constant 0 : index
    %180 = vector.load %arg12[%c1_93, %c0_94, %c0_95] : memref<2x8x32xf32, #tpu.memory_space<vmem>>, vector<1x8x32xf32>
    %181 = vector.shape_cast %180 : vector<1x8x32xf32> to vector<8x32xf32>
    %182 = vector.shape_cast %174 : vector<8x32xf32> to vector<1x8x32xf32>
    tpu.vector_store %arg12[%c1_93, %c0_94, %c0_95], %182 {strides = array<i32>} : memref<2x8x32xf32, #tpu.memory_space<vmem>>, vector<1x8x32xf32>,
    %183 = arith.truncf %176 : vector<8x32xf32> to vector<8x32xbf16>
    %cst_96 = arith.constant dense<0.000000e+00> : vector<8x2xf32>
    %184 = tpu.matmul %183, %8, %cst_96 {dimension_numbers = #tpu.dot_dimension_numbers<[1], [0], [0], [1], [0, 0, 1, 1], [], []>} : vector<8x32xbf16>, vector<32x2xbf16>, vector<8x2xf32> -> vector<8x2xf32>
    %185 = vector.broadcast %9 : vector<1x2xf32> to vector<8x2xf32>
    %186 = arith.addf %184, %185 : vector<8x2xf32>
    %c8 = arith.constant 8 : index
    %c0_97 = arith.constant 0 : index
    %187 = vector.load %arg10[%c8, %c0_97] : memref<64x2xf32, #tpu.memory_space<vmem>>, vector<8x2xf32>
    tpu.vector_store %arg10[%c8, %c0_97], %186 {strides = array<i32>} : memref<64x2xf32, #tpu.memory_space<vmem>>, vector<8x2xf32>,
    %c0_98 = arith.constant 0 : index
    %c0_99 = arith.constant 0 : index
    %c0_100 = arith.constant 0 : index
    %188 = vector.load %arg11[%c0_98, %c0_99, %c0_100] : memref<2x8x32xf32, #tpu.memory_space<vmem>>, vector<1x8x32xf32>
    %189 = vector.shape_cast %188 : vector<1x8x32xf32> to vector<8x32xf32>
    %190 = arith.truncf %189 : vector<8x32xf32> to vector<8x32xbf16>
    %c2 = arith.constant 2 : index
    %c0_101 = arith.constant 0 : index
    %c0_102 = arith.constant 0 : index
    %191 = vector.load %arg0[%c2, %c0_101, %c0_102] : memref<8x8x128xf32, #tpu.memory_space<vmem>>, vector<1x8x128xf32>
    %192 = vector.shape_cast %191 : vector<1x8x128xf32> to vector<8x128xf32>
    %cst_103 = arith.constant dense<0.000000e+00> : vector<8x128xf32>
    %193 = tpu.matmul %190, %1, %cst_103 {dimension_numbers = #tpu.dot_dimension_numbers<[1], [0], [0], [1], [0, 0, 1, 1], [], []>} : vector<8x32xbf16>, vector<32x128xbf16>, vector<8x128xf32> -> vector<8x128xf32>
    %194 = arith.addf %192, %193 : vector<8x128xf32>
    %c0_104 = arith.constant 0 : index
    %c0_105 = arith.constant 0 : index
    %c0_106 = arith.constant 0 : index
    %195 = vector.load %arg12[%c0_104, %c0_105, %c0_106] : memref<2x8x32xf32, #tpu.memory_space<vmem>>, vector<1x8x32xf32>
    %196 = vector.shape_cast %195 : vector<1x8x32xf32> to vector<8x32xf32>
    %197 = vector.extract_strided_slice %194 {offsets = [0, 0], sizes = [8, 32], strides = [1, 1]} : vector<8x128xf32> to vector<8x32xf32>
    %198 = arith.negf %197 : vector<8x32xf32>
    %199 = math.exp %198 : vector<8x32xf32>
    %cst_107 = arith.constant 1.000000e+00 : f32
    %200 = vector.broadcast %cst_107 : f32 to vector<8x32xf32>
    %201 = arith.addf %200, %199 : vector<8x32xf32>
    %202 = arith.divf %200, %201 : vector<8x32xf32>
    %203 = vector.extract_strided_slice %194 {offsets = [0, 32], sizes = [8, 32], strides = [1, 1]} : vector<8x128xf32> to vector<8x32xf32>
    %204 = arith.negf %203 : vector<8x32xf32>
    %205 = math.exp %204 : vector<8x32xf32>
    %cst_108 = arith.constant 1.000000e+00 : f32
    %206 = vector.broadcast %cst_108 : f32 to vector<8x32xf32>
    %207 = arith.addf %206, %205 : vector<8x32xf32>
    %208 = arith.divf %206, %207 : vector<8x32xf32>
    %209 = vector.extract_strided_slice %194 {offsets = [0, 64], sizes = [8, 32], strides = [1, 1]} : vector<8x128xf32> to vector<8x32xf32>
    %210 = math.tanh %209 : vector<8x32xf32>
    %211 = vector.extract_strided_slice %194 {offsets = [0, 96], sizes = [8, 32], strides = [1, 1]} : vector<8x128xf32> to vector<8x32xf32>
    %212 = arith.negf %211 : vector<8x32xf32>
    %213 = math.exp %212 : vector<8x32xf32>
    %cst_109 = arith.constant 1.000000e+00 : f32
    %214 = vector.broadcast %cst_109 : f32 to vector<8x32xf32>
    %215 = arith.addf %214, %213 : vector<8x32xf32>
    %216 = arith.divf %214, %215 : vector<8x32xf32>
    %217 = arith.mulf %208, %196 : vector<8x32xf32>
    %218 = arith.mulf %202, %210 : vector<8x32xf32>
    %219 = arith.addf %217, %218 : vector<8x32xf32>
    %220 = math.tanh %219 : vector<8x32xf32>
    %221 = arith.mulf %216, %220 : vector<8x32xf32>
    %c0_110 = arith.constant 0 : index
    %c0_111 = arith.constant 0 : index
    %c0_112 = arith.constant 0 : index
    %222 = vector.load %arg11[%c0_110, %c0_111, %c0_112] : memref<2x8x32xf32, #tpu.memory_space<vmem>>, vector<1x8x32xf32>
    %223 = vector.shape_cast %222 : vector<1x8x32xf32> to vector<8x32xf32>
    %224 = vector.shape_cast %221 : vector<8x32xf32> to vector<1x8x32xf32>
    tpu.vector_store %arg11[%c0_110, %c0_111, %c0_112], %224 {strides = array<i32>} : memref<2x8x32xf32, #tpu.memory_space<vmem>>, vector<1x8x32xf32>,
    %c0_113 = arith.constant 0 : index
    %c0_114 = arith.constant 0 : index
    %c0_115 = arith.constant 0 : index
    %225 = vector.load %arg12[%c0_113, %c0_114, %c0_115] : memref<2x8x32xf32, #tpu.memory_space<vmem>>, vector<1x8x32xf32>
    %226 = vector.shape_cast %225 : vector<1x8x32xf32> to vector<8x32xf32>
    %227 = vector.shape_cast %219 : vector<8x32xf32> to vector<1x8x32xf32>
    tpu.vector_store %arg12[%c0_113, %c0_114, %c0_115], %227 {strides = array<i32>} : memref<2x8x32xf32, #tpu.memory_space<vmem>>, vector<1x8x32xf32>,
    %228 = arith.truncf %221 : vector<8x32xf32> to vector<8x32xbf16>
    %c1_116 = arith.constant 1 : index
    %c0_117 = arith.constant 0 : index
    %c0_118 = arith.constant 0 : index
    %229 = vector.load %arg11[%c1_116, %c0_117, %c0_118] : memref<2x8x32xf32, #tpu.memory_space<vmem>>, vector<1x8x32xf32>
    %230 = vector.shape_cast %229 : vector<1x8x32xf32> to vector<8x32xf32>
    %231 = arith.truncf %230 : vector<8x32xf32> to vector<8x32xbf16>
    %cst_119 = arith.constant dense<0.000000e+00> : vector<8x128xf32>
    %232 = tpu.matmul %228, %5, %cst_119 {dimension_numbers = #tpu.dot_dimension_numbers<[1], [0], [0], [1], [0, 0, 1, 1], [], []>} : vector<8x32xbf16>, vector<32x128xbf16>, vector<8x128xf32> -> vector<8x128xf32>
    %cst_120 = arith.constant dense<0.000000e+00> : vector<8x128xf32>
    %233 = tpu.matmul %231, %3, %cst_120 {dimension_numbers = #tpu.dot_dimension_numbers<[1], [0], [0], [1], [0, 0, 1, 1], [], []>} : vector<8x32xbf16>, vector<32x128xbf16>, vector<8x128xf32> -> vector<8x128xf32>
    %234 = arith.addf %232, %233 : vector<8x128xf32>
    %235 = vector.broadcast %6 : vector<1x128xf32> to vector<8x128xf32>
    %236 = arith.addf %234, %235 : vector<8x128xf32>
    %c1_121 = arith.constant 1 : index
    %c0_122 = arith.constant 0 : index
    %c0_123 = arith.constant 0 : index
    %237 = vector.load %arg12[%c1_121, %c0_122, %c0_123] : memref<2x8x32xf32, #tpu.memory_space<vmem>>, vector<1x8x32xf32>
    %238 = vector.shape_cast %237 : vector<1x8x32xf32> to vector<8x32xf32>
    %239 = vector.extract_strided_slice %236 {offsets = [0, 0], sizes = [8, 32], strides = [1, 1]} : vector<8x128xf32> to vector<8x32xf32>
    %240 = arith.negf %239 : vector<8x32xf32>
    %241 = math.exp %240 : vector<8x32xf32>
    %cst_124 = arith.constant 1.000000e+00 : f32
    %242 = vector.broadcast %cst_124 : f32 to vector<8x32xf32>
    %243 = arith.addf %242, %241 : vector<8x32xf32>
    %244 = arith.divf %242, %243 : vector<8x32xf32>
    %245 = vector.extract_strided_slice %236 {offsets = [0, 32], sizes = [8, 32], strides = [1, 1]} : vector<8x128xf32> to vector<8x32xf32>
    %246 = arith.negf %245 : vector<8x32xf32>
    %247 = math.exp %246 : vector<8x32xf32>
    %cst_125 = arith.constant 1.000000e+00 : f32
    %248 = vector.broadcast %cst_125 : f32 to vector<8x32xf32>
    %249 = arith.addf %248, %247 : vector<8x32xf32>
    %250 = arith.divf %248, %249 : vector<8x32xf32>
    %251 = vector.extract_strided_slice %236 {offsets = [0, 64], sizes = [8, 32], strides = [1, 1]} : vector<8x128xf32> to vector<8x32xf32>
    %252 = math.tanh %251 : vector<8x32xf32>
    %253 = vector.extract_strided_slice %236 {offsets = [0, 96], sizes = [8, 32], strides = [1, 1]} : vector<8x128xf32> to vector<8x32xf32>
    %254 = arith.negf %253 : vector<8x32xf32>
    %255 = math.exp %254 : vector<8x32xf32>
    %cst_126 = arith.constant 1.000000e+00 : f32
    %256 = vector.broadcast %cst_126 : f32 to vector<8x32xf32>
    %257 = arith.addf %256, %255 : vector<8x32xf32>
    %258 = arith.divf %256, %257 : vector<8x32xf32>
    %259 = arith.mulf %250, %238 : vector<8x32xf32>
    %260 = arith.mulf %244, %252 : vector<8x32xf32>
    %261 = arith.addf %259, %260 : vector<8x32xf32>
    %262 = math.tanh %261 : vector<8x32xf32>
    %263 = arith.mulf %258, %262 : vector<8x32xf32>
    %c1_127 = arith.constant 1 : index
    %c0_128 = arith.constant 0 : index
    %c0_129 = arith.constant 0 : index
    %264 = vector.load %arg11[%c1_127, %c0_128, %c0_129] : memref<2x8x32xf32, #tpu.memory_space<vmem>>, vector<1x8x32xf32>
    %265 = vector.shape_cast %264 : vector<1x8x32xf32> to vector<8x32xf32>
    %266 = vector.shape_cast %263 : vector<8x32xf32> to vector<1x8x32xf32>
    tpu.vector_store %arg11[%c1_127, %c0_128, %c0_129], %266 {strides = array<i32>} : memref<2x8x32xf32, #tpu.memory_space<vmem>>, vector<1x8x32xf32>,
    %c1_130 = arith.constant 1 : index
    %c0_131 = arith.constant 0 : index
    %c0_132 = arith.constant 0 : index
    %267 = vector.load %arg12[%c1_130, %c0_131, %c0_132] : memref<2x8x32xf32, #tpu.memory_space<vmem>>, vector<1x8x32xf32>
    %268 = vector.shape_cast %267 : vector<1x8x32xf32> to vector<8x32xf32>
    %269 = vector.shape_cast %261 : vector<8x32xf32> to vector<1x8x32xf32>
    tpu.vector_store %arg12[%c1_130, %c0_131, %c0_132], %269 {strides = array<i32>} : memref<2x8x32xf32, #tpu.memory_space<vmem>>, vector<1x8x32xf32>,
    %270 = arith.truncf %263 : vector<8x32xf32> to vector<8x32xbf16>
    %cst_133 = arith.constant dense<0.000000e+00> : vector<8x2xf32>
    %271 = tpu.matmul %270, %8, %cst_133 {dimension_numbers = #tpu.dot_dimension_numbers<[1], [0], [0], [1], [0, 0, 1, 1], [], []>} : vector<8x32xbf16>, vector<32x2xbf16>, vector<8x2xf32> -> vector<8x2xf32>
    %272 = vector.broadcast %9 : vector<1x2xf32> to vector<8x2xf32>
    %273 = arith.addf %271, %272 : vector<8x2xf32>
    %c16 = arith.constant 16 : index
    %c0_134 = arith.constant 0 : index
    %274 = vector.load %arg10[%c16, %c0_134] : memref<64x2xf32, #tpu.memory_space<vmem>>, vector<8x2xf32>
    tpu.vector_store %arg10[%c16, %c0_134], %273 {strides = array<i32>} : memref<64x2xf32, #tpu.memory_space<vmem>>, vector<8x2xf32>,
    %c0_135 = arith.constant 0 : index
    %c0_136 = arith.constant 0 : index
    %c0_137 = arith.constant 0 : index
    %275 = vector.load %arg11[%c0_135, %c0_136, %c0_137] : memref<2x8x32xf32, #tpu.memory_space<vmem>>, vector<1x8x32xf32>
    %276 = vector.shape_cast %275 : vector<1x8x32xf32> to vector<8x32xf32>
    %277 = arith.truncf %276 : vector<8x32xf32> to vector<8x32xbf16>
    %c3 = arith.constant 3 : index
    %c0_138 = arith.constant 0 : index
    %c0_139 = arith.constant 0 : index
    %278 = vector.load %arg0[%c3, %c0_138, %c0_139] : memref<8x8x128xf32, #tpu.memory_space<vmem>>, vector<1x8x128xf32>
    %279 = vector.shape_cast %278 : vector<1x8x128xf32> to vector<8x128xf32>
    %cst_140 = arith.constant dense<0.000000e+00> : vector<8x128xf32>
    %280 = tpu.matmul %277, %1, %cst_140 {dimension_numbers = #tpu.dot_dimension_numbers<[1], [0], [0], [1], [0, 0, 1, 1], [], []>} : vector<8x32xbf16>, vector<32x128xbf16>, vector<8x128xf32> -> vector<8x128xf32>
    %281 = arith.addf %279, %280 : vector<8x128xf32>
    %c0_141 = arith.constant 0 : index
    %c0_142 = arith.constant 0 : index
    %c0_143 = arith.constant 0 : index
    %282 = vector.load %arg12[%c0_141, %c0_142, %c0_143] : memref<2x8x32xf32, #tpu.memory_space<vmem>>, vector<1x8x32xf32>
    %283 = vector.shape_cast %282 : vector<1x8x32xf32> to vector<8x32xf32>
    %284 = vector.extract_strided_slice %281 {offsets = [0, 0], sizes = [8, 32], strides = [1, 1]} : vector<8x128xf32> to vector<8x32xf32>
    %285 = arith.negf %284 : vector<8x32xf32>
    %286 = math.exp %285 : vector<8x32xf32>
    %cst_144 = arith.constant 1.000000e+00 : f32
    %287 = vector.broadcast %cst_144 : f32 to vector<8x32xf32>
    %288 = arith.addf %287, %286 : vector<8x32xf32>
    %289 = arith.divf %287, %288 : vector<8x32xf32>
    %290 = vector.extract_strided_slice %281 {offsets = [0, 32], sizes = [8, 32], strides = [1, 1]} : vector<8x128xf32> to vector<8x32xf32>
    %291 = arith.negf %290 : vector<8x32xf32>
    %292 = math.exp %291 : vector<8x32xf32>
    %cst_145 = arith.constant 1.000000e+00 : f32
    %293 = vector.broadcast %cst_145 : f32 to vector<8x32xf32>
    %294 = arith.addf %293, %292 : vector<8x32xf32>
    %295 = arith.divf %293, %294 : vector<8x32xf32>
    %296 = vector.extract_strided_slice %281 {offsets = [0, 64], sizes = [8, 32], strides = [1, 1]} : vector<8x128xf32> to vector<8x32xf32>
    %297 = math.tanh %296 : vector<8x32xf32>
    %298 = vector.extract_strided_slice %281 {offsets = [0, 96], sizes = [8, 32], strides = [1, 1]} : vector<8x128xf32> to vector<8x32xf32>
    %299 = arith.negf %298 : vector<8x32xf32>
    %300 = math.exp %299 : vector<8x32xf32>
    %cst_146 = arith.constant 1.000000e+00 : f32
    %301 = vector.broadcast %cst_146 : f32 to vector<8x32xf32>
    %302 = arith.addf %301, %300 : vector<8x32xf32>
    %303 = arith.divf %301, %302 : vector<8x32xf32>
    %304 = arith.mulf %295, %283 : vector<8x32xf32>
    %305 = arith.mulf %289, %297 : vector<8x32xf32>
    %306 = arith.addf %304, %305 : vector<8x32xf32>
    %307 = math.tanh %306 : vector<8x32xf32>
    %308 = arith.mulf %303, %307 : vector<8x32xf32>
    %c0_147 = arith.constant 0 : index
    %c0_148 = arith.constant 0 : index
    %c0_149 = arith.constant 0 : index
    %309 = vector.load %arg11[%c0_147, %c0_148, %c0_149] : memref<2x8x32xf32, #tpu.memory_space<vmem>>, vector<1x8x32xf32>
    %310 = vector.shape_cast %309 : vector<1x8x32xf32> to vector<8x32xf32>
    %311 = vector.shape_cast %308 : vector<8x32xf32> to vector<1x8x32xf32>
    tpu.vector_store %arg11[%c0_147, %c0_148, %c0_149], %311 {strides = array<i32>} : memref<2x8x32xf32, #tpu.memory_space<vmem>>, vector<1x8x32xf32>,
    %c0_150 = arith.constant 0 : index
    %c0_151 = arith.constant 0 : index
    %c0_152 = arith.constant 0 : index
    %312 = vector.load %arg12[%c0_150, %c0_151, %c0_152] : memref<2x8x32xf32, #tpu.memory_space<vmem>>, vector<1x8x32xf32>
    %313 = vector.shape_cast %312 : vector<1x8x32xf32> to vector<8x32xf32>
    %314 = vector.shape_cast %306 : vector<8x32xf32> to vector<1x8x32xf32>
    tpu.vector_store %arg12[%c0_150, %c0_151, %c0_152], %314 {strides = array<i32>} : memref<2x8x32xf32, #tpu.memory_space<vmem>>, vector<1x8x32xf32>,
    %315 = arith.truncf %308 : vector<8x32xf32> to vector<8x32xbf16>
    %c1_153 = arith.constant 1 : index
    %c0_154 = arith.constant 0 : index
    %c0_155 = arith.constant 0 : index
    %316 = vector.load %arg11[%c1_153, %c0_154, %c0_155] : memref<2x8x32xf32, #tpu.memory_space<vmem>>, vector<1x8x32xf32>
    %317 = vector.shape_cast %316 : vector<1x8x32xf32> to vector<8x32xf32>
    %318 = arith.truncf %317 : vector<8x32xf32> to vector<8x32xbf16>
    %cst_156 = arith.constant dense<0.000000e+00> : vector<8x128xf32>
    %319 = tpu.matmul %315, %5, %cst_156 {dimension_numbers = #tpu.dot_dimension_numbers<[1], [0], [0], [1], [0, 0, 1, 1], [], []>} : vector<8x32xbf16>, vector<32x128xbf16>, vector<8x128xf32> -> vector<8x128xf32>
    %cst_157 = arith.constant dense<0.000000e+00> : vector<8x128xf32>
    %320 = tpu.matmul %318, %3, %cst_157 {dimension_numbers = #tpu.dot_dimension_numbers<[1], [0], [0], [1], [0, 0, 1, 1], [], []>} : vector<8x32xbf16>, vector<32x128xbf16>, vector<8x128xf32> -> vector<8x128xf32>
    %321 = arith.addf %319, %320 : vector<8x128xf32>
    %322 = vector.broadcast %6 : vector<1x128xf32> to vector<8x128xf32>
    %323 = arith.addf %321, %322 : vector<8x128xf32>
    %c1_158 = arith.constant 1 : index
    %c0_159 = arith.constant 0 : index
    %c0_160 = arith.constant 0 : index
    %324 = vector.load %arg12[%c1_158, %c0_159, %c0_160] : memref<2x8x32xf32, #tpu.memory_space<vmem>>, vector<1x8x32xf32>
    %325 = vector.shape_cast %324 : vector<1x8x32xf32> to vector<8x32xf32>
    %326 = vector.extract_strided_slice %323 {offsets = [0, 0], sizes = [8, 32], strides = [1, 1]} : vector<8x128xf32> to vector<8x32xf32>
    %327 = arith.negf %326 : vector<8x32xf32>
    %328 = math.exp %327 : vector<8x32xf32>
    %cst_161 = arith.constant 1.000000e+00 : f32
    %329 = vector.broadcast %cst_161 : f32 to vector<8x32xf32>
    %330 = arith.addf %329, %328 : vector<8x32xf32>
    %331 = arith.divf %329, %330 : vector<8x32xf32>
    %332 = vector.extract_strided_slice %323 {offsets = [0, 32], sizes = [8, 32], strides = [1, 1]} : vector<8x128xf32> to vector<8x32xf32>
    %333 = arith.negf %332 : vector<8x32xf32>
    %334 = math.exp %333 : vector<8x32xf32>
    %cst_162 = arith.constant 1.000000e+00 : f32
    %335 = vector.broadcast %cst_162 : f32 to vector<8x32xf32>
    %336 = arith.addf %335, %334 : vector<8x32xf32>
    %337 = arith.divf %335, %336 : vector<8x32xf32>
    %338 = vector.extract_strided_slice %323 {offsets = [0, 64], sizes = [8, 32], strides = [1, 1]} : vector<8x128xf32> to vector<8x32xf32>
    %339 = math.tanh %338 : vector<8x32xf32>
    %340 = vector.extract_strided_slice %323 {offsets = [0, 96], sizes = [8, 32], strides = [1, 1]} : vector<8x128xf32> to vector<8x32xf32>
    %341 = arith.negf %340 : vector<8x32xf32>
    %342 = math.exp %341 : vector<8x32xf32>
    %cst_163 = arith.constant 1.000000e+00 : f32
    %343 = vector.broadcast %cst_163 : f32 to vector<8x32xf32>
    %344 = arith.addf %343, %342 : vector<8x32xf32>
    %345 = arith.divf %343, %344 : vector<8x32xf32>
    %346 = arith.mulf %337, %325 : vector<8x32xf32>
    %347 = arith.mulf %331, %339 : vector<8x32xf32>
    %348 = arith.addf %346, %347 : vector<8x32xf32>
    %349 = math.tanh %348 : vector<8x32xf32>
    %350 = arith.mulf %345, %349 : vector<8x32xf32>
    %c1_164 = arith.constant 1 : index
    %c0_165 = arith.constant 0 : index
    %c0_166 = arith.constant 0 : index
    %351 = vector.load %arg11[%c1_164, %c0_165, %c0_166] : memref<2x8x32xf32, #tpu.memory_space<vmem>>, vector<1x8x32xf32>
    %352 = vector.shape_cast %351 : vector<1x8x32xf32> to vector<8x32xf32>
    %353 = vector.shape_cast %350 : vector<8x32xf32> to vector<1x8x32xf32>
    tpu.vector_store %arg11[%c1_164, %c0_165, %c0_166], %353 {strides = array<i32>} : memref<2x8x32xf32, #tpu.memory_space<vmem>>, vector<1x8x32xf32>,
    %c1_167 = arith.constant 1 : index
    %c0_168 = arith.constant 0 : index
    %c0_169 = arith.constant 0 : index
    %354 = vector.load %arg12[%c1_167, %c0_168, %c0_169] : memref<2x8x32xf32, #tpu.memory_space<vmem>>, vector<1x8x32xf32>
    %355 = vector.shape_cast %354 : vector<1x8x32xf32> to vector<8x32xf32>
    %356 = vector.shape_cast %348 : vector<8x32xf32> to vector<1x8x32xf32>
    tpu.vector_store %arg12[%c1_167, %c0_168, %c0_169], %356 {strides = array<i32>} : memref<2x8x32xf32, #tpu.memory_space<vmem>>, vector<1x8x32xf32>,
    %357 = arith.truncf %350 : vector<8x32xf32> to vector<8x32xbf16>
    %cst_170 = arith.constant dense<0.000000e+00> : vector<8x2xf32>
    %358 = tpu.matmul %357, %8, %cst_170 {dimension_numbers = #tpu.dot_dimension_numbers<[1], [0], [0], [1], [0, 0, 1, 1], [], []>} : vector<8x32xbf16>, vector<32x2xbf16>, vector<8x2xf32> -> vector<8x2xf32>
    %359 = vector.broadcast %9 : vector<1x2xf32> to vector<8x2xf32>
    %360 = arith.addf %358, %359 : vector<8x2xf32>
    %c24 = arith.constant 24 : index
    %c0_171 = arith.constant 0 : index
    %361 = vector.load %arg10[%c24, %c0_171] : memref<64x2xf32, #tpu.memory_space<vmem>>, vector<8x2xf32>
    tpu.vector_store %arg10[%c24, %c0_171], %360 {strides = array<i32>} : memref<64x2xf32, #tpu.memory_space<vmem>>, vector<8x2xf32>,
    %c0_172 = arith.constant 0 : index
    %c0_173 = arith.constant 0 : index
    %c0_174 = arith.constant 0 : index
    %362 = vector.load %arg11[%c0_172, %c0_173, %c0_174] : memref<2x8x32xf32, #tpu.memory_space<vmem>>, vector<1x8x32xf32>
    %363 = vector.shape_cast %362 : vector<1x8x32xf32> to vector<8x32xf32>
    %364 = arith.truncf %363 : vector<8x32xf32> to vector<8x32xbf16>
    %c4 = arith.constant 4 : index
    %c0_175 = arith.constant 0 : index
    %c0_176 = arith.constant 0 : index
    %365 = vector.load %arg0[%c4, %c0_175, %c0_176] : memref<8x8x128xf32, #tpu.memory_space<vmem>>, vector<1x8x128xf32>
    %366 = vector.shape_cast %365 : vector<1x8x128xf32> to vector<8x128xf32>
    %cst_177 = arith.constant dense<0.000000e+00> : vector<8x128xf32>
    %367 = tpu.matmul %364, %1, %cst_177 {dimension_numbers = #tpu.dot_dimension_numbers<[1], [0], [0], [1], [0, 0, 1, 1], [], []>} : vector<8x32xbf16>, vector<32x128xbf16>, vector<8x128xf32> -> vector<8x128xf32>
    %368 = arith.addf %366, %367 : vector<8x128xf32>
    %c0_178 = arith.constant 0 : index
    %c0_179 = arith.constant 0 : index
    %c0_180 = arith.constant 0 : index
    %369 = vector.load %arg12[%c0_178, %c0_179, %c0_180] : memref<2x8x32xf32, #tpu.memory_space<vmem>>, vector<1x8x32xf32>
    %370 = vector.shape_cast %369 : vector<1x8x32xf32> to vector<8x32xf32>
    %371 = vector.extract_strided_slice %368 {offsets = [0, 0], sizes = [8, 32], strides = [1, 1]} : vector<8x128xf32> to vector<8x32xf32>
    %372 = arith.negf %371 : vector<8x32xf32>
    %373 = math.exp %372 : vector<8x32xf32>
    %cst_181 = arith.constant 1.000000e+00 : f32
    %374 = vector.broadcast %cst_181 : f32 to vector<8x32xf32>
    %375 = arith.addf %374, %373 : vector<8x32xf32>
    %376 = arith.divf %374, %375 : vector<8x32xf32>
    %377 = vector.extract_strided_slice %368 {offsets = [0, 32], sizes = [8, 32], strides = [1, 1]} : vector<8x128xf32> to vector<8x32xf32>
    %378 = arith.negf %377 : vector<8x32xf32>
    %379 = math.exp %378 : vector<8x32xf32>
    %cst_182 = arith.constant 1.000000e+00 : f32
    %380 = vector.broadcast %cst_182 : f32 to vector<8x32xf32>
    %381 = arith.addf %380, %379 : vector<8x32xf32>
    %382 = arith.divf %380, %381 : vector<8x32xf32>
    %383 = vector.extract_strided_slice %368 {offsets = [0, 64], sizes = [8, 32], strides = [1, 1]} : vector<8x128xf32> to vector<8x32xf32>
    %384 = math.tanh %383 : vector<8x32xf32>
    %385 = vector.extract_strided_slice %368 {offsets = [0, 96], sizes = [8, 32], strides = [1, 1]} : vector<8x128xf32> to vector<8x32xf32>
    %386 = arith.negf %385 : vector<8x32xf32>
    %387 = math.exp %386 : vector<8x32xf32>
    %cst_183 = arith.constant 1.000000e+00 : f32
    %388 = vector.broadcast %cst_183 : f32 to vector<8x32xf32>
    %389 = arith.addf %388, %387 : vector<8x32xf32>
    %390 = arith.divf %388, %389 : vector<8x32xf32>
    %391 = arith.mulf %382, %370 : vector<8x32xf32>
    %392 = arith.mulf %376, %384 : vector<8x32xf32>
    %393 = arith.addf %391, %392 : vector<8x32xf32>
    %394 = math.tanh %393 : vector<8x32xf32>
    %395 = arith.mulf %390, %394 : vector<8x32xf32>
    %c0_184 = arith.constant 0 : index
    %c0_185 = arith.constant 0 : index
    %c0_186 = arith.constant 0 : index
    %396 = vector.load %arg11[%c0_184, %c0_185, %c0_186] : memref<2x8x32xf32, #tpu.memory_space<vmem>>, vector<1x8x32xf32>
    %397 = vector.shape_cast %396 : vector<1x8x32xf32> to vector<8x32xf32>
    %398 = vector.shape_cast %395 : vector<8x32xf32> to vector<1x8x32xf32>
    tpu.vector_store %arg11[%c0_184, %c0_185, %c0_186], %398 {strides = array<i32>} : memref<2x8x32xf32, #tpu.memory_space<vmem>>, vector<1x8x32xf32>,
    %c0_187 = arith.constant 0 : index
    %c0_188 = arith.constant 0 : index
    %c0_189 = arith.constant 0 : index
    %399 = vector.load %arg12[%c0_187, %c0_188, %c0_189] : memref<2x8x32xf32, #tpu.memory_space<vmem>>, vector<1x8x32xf32>
    %400 = vector.shape_cast %399 : vector<1x8x32xf32> to vector<8x32xf32>
    %401 = vector.shape_cast %393 : vector<8x32xf32> to vector<1x8x32xf32>
    tpu.vector_store %arg12[%c0_187, %c0_188, %c0_189], %401 {strides = array<i32>} : memref<2x8x32xf32, #tpu.memory_space<vmem>>, vector<1x8x32xf32>,
    %402 = arith.truncf %395 : vector<8x32xf32> to vector<8x32xbf16>
    %c1_190 = arith.constant 1 : index
    %c0_191 = arith.constant 0 : index
    %c0_192 = arith.constant 0 : index
    %403 = vector.load %arg11[%c1_190, %c0_191, %c0_192] : memref<2x8x32xf32, #tpu.memory_space<vmem>>, vector<1x8x32xf32>
    %404 = vector.shape_cast %403 : vector<1x8x32xf32> to vector<8x32xf32>
    %405 = arith.truncf %404 : vector<8x32xf32> to vector<8x32xbf16>
    %cst_193 = arith.constant dense<0.000000e+00> : vector<8x128xf32>
    %406 = tpu.matmul %402, %5, %cst_193 {dimension_numbers = #tpu.dot_dimension_numbers<[1], [0], [0], [1], [0, 0, 1, 1], [], []>} : vector<8x32xbf16>, vector<32x128xbf16>, vector<8x128xf32> -> vector<8x128xf32>
    %cst_194 = arith.constant dense<0.000000e+00> : vector<8x128xf32>
    %407 = tpu.matmul %405, %3, %cst_194 {dimension_numbers = #tpu.dot_dimension_numbers<[1], [0], [0], [1], [0, 0, 1, 1], [], []>} : vector<8x32xbf16>, vector<32x128xbf16>, vector<8x128xf32> -> vector<8x128xf32>
    %408 = arith.addf %406, %407 : vector<8x128xf32>
    %409 = vector.broadcast %6 : vector<1x128xf32> to vector<8x128xf32>
    %410 = arith.addf %408, %409 : vector<8x128xf32>
    %c1_195 = arith.constant 1 : index
    %c0_196 = arith.constant 0 : index
    %c0_197 = arith.constant 0 : index
    %411 = vector.load %arg12[%c1_195, %c0_196, %c0_197] : memref<2x8x32xf32, #tpu.memory_space<vmem>>, vector<1x8x32xf32>
    %412 = vector.shape_cast %411 : vector<1x8x32xf32> to vector<8x32xf32>
    %413 = vector.extract_strided_slice %410 {offsets = [0, 0], sizes = [8, 32], strides = [1, 1]} : vector<8x128xf32> to vector<8x32xf32>
    %414 = arith.negf %413 : vector<8x32xf32>
    %415 = math.exp %414 : vector<8x32xf32>
    %cst_198 = arith.constant 1.000000e+00 : f32
    %416 = vector.broadcast %cst_198 : f32 to vector<8x32xf32>
    %417 = arith.addf %416, %415 : vector<8x32xf32>
    %418 = arith.divf %416, %417 : vector<8x32xf32>
    %419 = vector.extract_strided_slice %410 {offsets = [0, 32], sizes = [8, 32], strides = [1, 1]} : vector<8x128xf32> to vector<8x32xf32>
    %420 = arith.negf %419 : vector<8x32xf32>
    %421 = math.exp %420 : vector<8x32xf32>
    %cst_199 = arith.constant 1.000000e+00 : f32
    %422 = vector.broadcast %cst_199 : f32 to vector<8x32xf32>
    %423 = arith.addf %422, %421 : vector<8x32xf32>
    %424 = arith.divf %422, %423 : vector<8x32xf32>
    %425 = vector.extract_strided_slice %410 {offsets = [0, 64], sizes = [8, 32], strides = [1, 1]} : vector<8x128xf32> to vector<8x32xf32>
    %426 = math.tanh %425 : vector<8x32xf32>
    %427 = vector.extract_strided_slice %410 {offsets = [0, 96], sizes = [8, 32], strides = [1, 1]} : vector<8x128xf32> to vector<8x32xf32>
    %428 = arith.negf %427 : vector<8x32xf32>
    %429 = math.exp %428 : vector<8x32xf32>
    %cst_200 = arith.constant 1.000000e+00 : f32
    %430 = vector.broadcast %cst_200 : f32 to vector<8x32xf32>
    %431 = arith.addf %430, %429 : vector<8x32xf32>
    %432 = arith.divf %430, %431 : vector<8x32xf32>
    %433 = arith.mulf %424, %412 : vector<8x32xf32>
    %434 = arith.mulf %418, %426 : vector<8x32xf32>
    %435 = arith.addf %433, %434 : vector<8x32xf32>
    %436 = math.tanh %435 : vector<8x32xf32>
    %437 = arith.mulf %432, %436 : vector<8x32xf32>
    %c1_201 = arith.constant 1 : index
    %c0_202 = arith.constant 0 : index
    %c0_203 = arith.constant 0 : index
    %438 = vector.load %arg11[%c1_201, %c0_202, %c0_203] : memref<2x8x32xf32, #tpu.memory_space<vmem>>, vector<1x8x32xf32>
    %439 = vector.shape_cast %438 : vector<1x8x32xf32> to vector<8x32xf32>
    %440 = vector.shape_cast %437 : vector<8x32xf32> to vector<1x8x32xf32>
    tpu.vector_store %arg11[%c1_201, %c0_202, %c0_203], %440 {strides = array<i32>} : memref<2x8x32xf32, #tpu.memory_space<vmem>>, vector<1x8x32xf32>,
    %c1_204 = arith.constant 1 : index
    %c0_205 = arith.constant 0 : index
    %c0_206 = arith.constant 0 : index
    %441 = vector.load %arg12[%c1_204, %c0_205, %c0_206] : memref<2x8x32xf32, #tpu.memory_space<vmem>>, vector<1x8x32xf32>
    %442 = vector.shape_cast %441 : vector<1x8x32xf32> to vector<8x32xf32>
    %443 = vector.shape_cast %435 : vector<8x32xf32> to vector<1x8x32xf32>
    tpu.vector_store %arg12[%c1_204, %c0_205, %c0_206], %443 {strides = array<i32>} : memref<2x8x32xf32, #tpu.memory_space<vmem>>, vector<1x8x32xf32>,
    %444 = arith.truncf %437 : vector<8x32xf32> to vector<8x32xbf16>
    %cst_207 = arith.constant dense<0.000000e+00> : vector<8x2xf32>
    %445 = tpu.matmul %444, %8, %cst_207 {dimension_numbers = #tpu.dot_dimension_numbers<[1], [0], [0], [1], [0, 0, 1, 1], [], []>} : vector<8x32xbf16>, vector<32x2xbf16>, vector<8x2xf32> -> vector<8x2xf32>
    %446 = vector.broadcast %9 : vector<1x2xf32> to vector<8x2xf32>
    %447 = arith.addf %445, %446 : vector<8x2xf32>
    %c32 = arith.constant 32 : index
    %c0_208 = arith.constant 0 : index
    %448 = vector.load %arg10[%c32, %c0_208] : memref<64x2xf32, #tpu.memory_space<vmem>>, vector<8x2xf32>
    tpu.vector_store %arg10[%c32, %c0_208], %447 {strides = array<i32>} : memref<64x2xf32, #tpu.memory_space<vmem>>, vector<8x2xf32>,
    %c0_209 = arith.constant 0 : index
    %c0_210 = arith.constant 0 : index
    %c0_211 = arith.constant 0 : index
    %449 = vector.load %arg11[%c0_209, %c0_210, %c0_211] : memref<2x8x32xf32, #tpu.memory_space<vmem>>, vector<1x8x32xf32>
    %450 = vector.shape_cast %449 : vector<1x8x32xf32> to vector<8x32xf32>
    %451 = arith.truncf %450 : vector<8x32xf32> to vector<8x32xbf16>
    %c5 = arith.constant 5 : index
    %c0_212 = arith.constant 0 : index
    %c0_213 = arith.constant 0 : index
    %452 = vector.load %arg0[%c5, %c0_212, %c0_213] : memref<8x8x128xf32, #tpu.memory_space<vmem>>, vector<1x8x128xf32>
    %453 = vector.shape_cast %452 : vector<1x8x128xf32> to vector<8x128xf32>
    %cst_214 = arith.constant dense<0.000000e+00> : vector<8x128xf32>
    %454 = tpu.matmul %451, %1, %cst_214 {dimension_numbers = #tpu.dot_dimension_numbers<[1], [0], [0], [1], [0, 0, 1, 1], [], []>} : vector<8x32xbf16>, vector<32x128xbf16>, vector<8x128xf32> -> vector<8x128xf32>
    %455 = arith.addf %453, %454 : vector<8x128xf32>
    %c0_215 = arith.constant 0 : index
    %c0_216 = arith.constant 0 : index
    %c0_217 = arith.constant 0 : index
    %456 = vector.load %arg12[%c0_215, %c0_216, %c0_217] : memref<2x8x32xf32, #tpu.memory_space<vmem>>, vector<1x8x32xf32>
    %457 = vector.shape_cast %456 : vector<1x8x32xf32> to vector<8x32xf32>
    %458 = vector.extract_strided_slice %455 {offsets = [0, 0], sizes = [8, 32], strides = [1, 1]} : vector<8x128xf32> to vector<8x32xf32>
    %459 = arith.negf %458 : vector<8x32xf32>
    %460 = math.exp %459 : vector<8x32xf32>
    %cst_218 = arith.constant 1.000000e+00 : f32
    %461 = vector.broadcast %cst_218 : f32 to vector<8x32xf32>
    %462 = arith.addf %461, %460 : vector<8x32xf32>
    %463 = arith.divf %461, %462 : vector<8x32xf32>
    %464 = vector.extract_strided_slice %455 {offsets = [0, 32], sizes = [8, 32], strides = [1, 1]} : vector<8x128xf32> to vector<8x32xf32>
    %465 = arith.negf %464 : vector<8x32xf32>
    %466 = math.exp %465 : vector<8x32xf32>
    %cst_219 = arith.constant 1.000000e+00 : f32
    %467 = vector.broadcast %cst_219 : f32 to vector<8x32xf32>
    %468 = arith.addf %467, %466 : vector<8x32xf32>
    %469 = arith.divf %467, %468 : vector<8x32xf32>
    %470 = vector.extract_strided_slice %455 {offsets = [0, 64], sizes = [8, 32], strides = [1, 1]} : vector<8x128xf32> to vector<8x32xf32>
    %471 = math.tanh %470 : vector<8x32xf32>
    %472 = vector.extract_strided_slice %455 {offsets = [0, 96], sizes = [8, 32], strides = [1, 1]} : vector<8x128xf32> to vector<8x32xf32>
    %473 = arith.negf %472 : vector<8x32xf32>
    %474 = math.exp %473 : vector<8x32xf32>
    %cst_220 = arith.constant 1.000000e+00 : f32
    %475 = vector.broadcast %cst_220 : f32 to vector<8x32xf32>
    %476 = arith.addf %475, %474 : vector<8x32xf32>
    %477 = arith.divf %475, %476 : vector<8x32xf32>
    %478 = arith.mulf %469, %457 : vector<8x32xf32>
    %479 = arith.mulf %463, %471 : vector<8x32xf32>
    %480 = arith.addf %478, %479 : vector<8x32xf32>
    %481 = math.tanh %480 : vector<8x32xf32>
    %482 = arith.mulf %477, %481 : vector<8x32xf32>
    %c0_221 = arith.constant 0 : index
    %c0_222 = arith.constant 0 : index
    %c0_223 = arith.constant 0 : index
    %483 = vector.load %arg11[%c0_221, %c0_222, %c0_223] : memref<2x8x32xf32, #tpu.memory_space<vmem>>, vector<1x8x32xf32>
    %484 = vector.shape_cast %483 : vector<1x8x32xf32> to vector<8x32xf32>
    %485 = vector.shape_cast %482 : vector<8x32xf32> to vector<1x8x32xf32>
    tpu.vector_store %arg11[%c0_221, %c0_222, %c0_223], %485 {strides = array<i32>} : memref<2x8x32xf32, #tpu.memory_space<vmem>>, vector<1x8x32xf32>,
    %c0_224 = arith.constant 0 : index
    %c0_225 = arith.constant 0 : index
    %c0_226 = arith.constant 0 : index
    %486 = vector.load %arg12[%c0_224, %c0_225, %c0_226] : memref<2x8x32xf32, #tpu.memory_space<vmem>>, vector<1x8x32xf32>
    %487 = vector.shape_cast %486 : vector<1x8x32xf32> to vector<8x32xf32>
    %488 = vector.shape_cast %480 : vector<8x32xf32> to vector<1x8x32xf32>
    tpu.vector_store %arg12[%c0_224, %c0_225, %c0_226], %488 {strides = array<i32>} : memref<2x8x32xf32, #tpu.memory_space<vmem>>, vector<1x8x32xf32>,
    %489 = arith.truncf %482 : vector<8x32xf32> to vector<8x32xbf16>
    %c1_227 = arith.constant 1 : index
    %c0_228 = arith.constant 0 : index
    %c0_229 = arith.constant 0 : index
    %490 = vector.load %arg11[%c1_227, %c0_228, %c0_229] : memref<2x8x32xf32, #tpu.memory_space<vmem>>, vector<1x8x32xf32>
    %491 = vector.shape_cast %490 : vector<1x8x32xf32> to vector<8x32xf32>
    %492 = arith.truncf %491 : vector<8x32xf32> to vector<8x32xbf16>
    %cst_230 = arith.constant dense<0.000000e+00> : vector<8x128xf32>
    %493 = tpu.matmul %489, %5, %cst_230 {dimension_numbers = #tpu.dot_dimension_numbers<[1], [0], [0], [1], [0, 0, 1, 1], [], []>} : vector<8x32xbf16>, vector<32x128xbf16>, vector<8x128xf32> -> vector<8x128xf32>
    %cst_231 = arith.constant dense<0.000000e+00> : vector<8x128xf32>
    %494 = tpu.matmul %492, %3, %cst_231 {dimension_numbers = #tpu.dot_dimension_numbers<[1], [0], [0], [1], [0, 0, 1, 1], [], []>} : vector<8x32xbf16>, vector<32x128xbf16>, vector<8x128xf32> -> vector<8x128xf32>
    %495 = arith.addf %493, %494 : vector<8x128xf32>
    %496 = vector.broadcast %6 : vector<1x128xf32> to vector<8x128xf32>
    %497 = arith.addf %495, %496 : vector<8x128xf32>
    %c1_232 = arith.constant 1 : index
    %c0_233 = arith.constant 0 : index
    %c0_234 = arith.constant 0 : index
    %498 = vector.load %arg12[%c1_232, %c0_233, %c0_234] : memref<2x8x32xf32, #tpu.memory_space<vmem>>, vector<1x8x32xf32>
    %499 = vector.shape_cast %498 : vector<1x8x32xf32> to vector<8x32xf32>
    %500 = vector.extract_strided_slice %497 {offsets = [0, 0], sizes = [8, 32], strides = [1, 1]} : vector<8x128xf32> to vector<8x32xf32>
    %501 = arith.negf %500 : vector<8x32xf32>
    %502 = math.exp %501 : vector<8x32xf32>
    %cst_235 = arith.constant 1.000000e+00 : f32
    %503 = vector.broadcast %cst_235 : f32 to vector<8x32xf32>
    %504 = arith.addf %503, %502 : vector<8x32xf32>
    %505 = arith.divf %503, %504 : vector<8x32xf32>
    %506 = vector.extract_strided_slice %497 {offsets = [0, 32], sizes = [8, 32], strides = [1, 1]} : vector<8x128xf32> to vector<8x32xf32>
    %507 = arith.negf %506 : vector<8x32xf32>
    %508 = math.exp %507 : vector<8x32xf32>
    %cst_236 = arith.constant 1.000000e+00 : f32
    %509 = vector.broadcast %cst_236 : f32 to vector<8x32xf32>
    %510 = arith.addf %509, %508 : vector<8x32xf32>
    %511 = arith.divf %509, %510 : vector<8x32xf32>
    %512 = vector.extract_strided_slice %497 {offsets = [0, 64], sizes = [8, 32], strides = [1, 1]} : vector<8x128xf32> to vector<8x32xf32>
    %513 = math.tanh %512 : vector<8x32xf32>
    %514 = vector.extract_strided_slice %497 {offsets = [0, 96], sizes = [8, 32], strides = [1, 1]} : vector<8x128xf32> to vector<8x32xf32>
    %515 = arith.negf %514 : vector<8x32xf32>
    %516 = math.exp %515 : vector<8x32xf32>
    %cst_237 = arith.constant 1.000000e+00 : f32
    %517 = vector.broadcast %cst_237 : f32 to vector<8x32xf32>
    %518 = arith.addf %517, %516 : vector<8x32xf32>
    %519 = arith.divf %517, %518 : vector<8x32xf32>
    %520 = arith.mulf %511, %499 : vector<8x32xf32>
    %521 = arith.mulf %505, %513 : vector<8x32xf32>
    %522 = arith.addf %520, %521 : vector<8x32xf32>
    %523 = math.tanh %522 : vector<8x32xf32>
    %524 = arith.mulf %519, %523 : vector<8x32xf32>
    %c1_238 = arith.constant 1 : index
    %c0_239 = arith.constant 0 : index
    %c0_240 = arith.constant 0 : index
    %525 = vector.load %arg11[%c1_238, %c0_239, %c0_240] : memref<2x8x32xf32, #tpu.memory_space<vmem>>, vector<1x8x32xf32>
    %526 = vector.shape_cast %525 : vector<1x8x32xf32> to vector<8x32xf32>
    %527 = vector.shape_cast %524 : vector<8x32xf32> to vector<1x8x32xf32>
    tpu.vector_store %arg11[%c1_238, %c0_239, %c0_240], %527 {strides = array<i32>} : memref<2x8x32xf32, #tpu.memory_space<vmem>>, vector<1x8x32xf32>,
    %c1_241 = arith.constant 1 : index
    %c0_242 = arith.constant 0 : index
    %c0_243 = arith.constant 0 : index
    %528 = vector.load %arg12[%c1_241, %c0_242, %c0_243] : memref<2x8x32xf32, #tpu.memory_space<vmem>>, vector<1x8x32xf32>
    %529 = vector.shape_cast %528 : vector<1x8x32xf32> to vector<8x32xf32>
    %530 = vector.shape_cast %522 : vector<8x32xf32> to vector<1x8x32xf32>
    tpu.vector_store %arg12[%c1_241, %c0_242, %c0_243], %530 {strides = array<i32>} : memref<2x8x32xf32, #tpu.memory_space<vmem>>, vector<1x8x32xf32>,
    %531 = arith.truncf %524 : vector<8x32xf32> to vector<8x32xbf16>
    %cst_244 = arith.constant dense<0.000000e+00> : vector<8x2xf32>
    %532 = tpu.matmul %531, %8, %cst_244 {dimension_numbers = #tpu.dot_dimension_numbers<[1], [0], [0], [1], [0, 0, 1, 1], [], []>} : vector<8x32xbf16>, vector<32x2xbf16>, vector<8x2xf32> -> vector<8x2xf32>
    %533 = vector.broadcast %9 : vector<1x2xf32> to vector<8x2xf32>
    %534 = arith.addf %532, %533 : vector<8x2xf32>
    %c40 = arith.constant 40 : index
    %c0_245 = arith.constant 0 : index
    %535 = vector.load %arg10[%c40, %c0_245] : memref<64x2xf32, #tpu.memory_space<vmem>>, vector<8x2xf32>
    tpu.vector_store %arg10[%c40, %c0_245], %534 {strides = array<i32>} : memref<64x2xf32, #tpu.memory_space<vmem>>, vector<8x2xf32>,
    %c0_246 = arith.constant 0 : index
    %c0_247 = arith.constant 0 : index
    %c0_248 = arith.constant 0 : index
    %536 = vector.load %arg11[%c0_246, %c0_247, %c0_248] : memref<2x8x32xf32, #tpu.memory_space<vmem>>, vector<1x8x32xf32>
    %537 = vector.shape_cast %536 : vector<1x8x32xf32> to vector<8x32xf32>
    %538 = arith.truncf %537 : vector<8x32xf32> to vector<8x32xbf16>
    %c6 = arith.constant 6 : index
    %c0_249 = arith.constant 0 : index
    %c0_250 = arith.constant 0 : index
    %539 = vector.load %arg0[%c6, %c0_249, %c0_250] : memref<8x8x128xf32, #tpu.memory_space<vmem>>, vector<1x8x128xf32>
    %540 = vector.shape_cast %539 : vector<1x8x128xf32> to vector<8x128xf32>
    %cst_251 = arith.constant dense<0.000000e+00> : vector<8x128xf32>
    %541 = tpu.matmul %538, %1, %cst_251 {dimension_numbers = #tpu.dot_dimension_numbers<[1], [0], [0], [1], [0, 0, 1, 1], [], []>} : vector<8x32xbf16>, vector<32x128xbf16>, vector<8x128xf32> -> vector<8x128xf32>
    %542 = arith.addf %540, %541 : vector<8x128xf32>
    %c0_252 = arith.constant 0 : index
    %c0_253 = arith.constant 0 : index
    %c0_254 = arith.constant 0 : index
    %543 = vector.load %arg12[%c0_252, %c0_253, %c0_254] : memref<2x8x32xf32, #tpu.memory_space<vmem>>, vector<1x8x32xf32>
    %544 = vector.shape_cast %543 : vector<1x8x32xf32> to vector<8x32xf32>
    %545 = vector.extract_strided_slice %542 {offsets = [0, 0], sizes = [8, 32], strides = [1, 1]} : vector<8x128xf32> to vector<8x32xf32>
    %546 = arith.negf %545 : vector<8x32xf32>
    %547 = math.exp %546 : vector<8x32xf32>
    %cst_255 = arith.constant 1.000000e+00 : f32
    %548 = vector.broadcast %cst_255 : f32 to vector<8x32xf32>
    %549 = arith.addf %548, %547 : vector<8x32xf32>
    %550 = arith.divf %548, %549 : vector<8x32xf32>
    %551 = vector.extract_strided_slice %542 {offsets = [0, 32], sizes = [8, 32], strides = [1, 1]} : vector<8x128xf32> to vector<8x32xf32>
    %552 = arith.negf %551 : vector<8x32xf32>
    %553 = math.exp %552 : vector<8x32xf32>
    %cst_256 = arith.constant 1.000000e+00 : f32
    %554 = vector.broadcast %cst_256 : f32 to vector<8x32xf32>
    %555 = arith.addf %554, %553 : vector<8x32xf32>
    %556 = arith.divf %554, %555 : vector<8x32xf32>
    %557 = vector.extract_strided_slice %542 {offsets = [0, 64], sizes = [8, 32], strides = [1, 1]} : vector<8x128xf32> to vector<8x32xf32>
    %558 = math.tanh %557 : vector<8x32xf32>
    %559 = vector.extract_strided_slice %542 {offsets = [0, 96], sizes = [8, 32], strides = [1, 1]} : vector<8x128xf32> to vector<8x32xf32>
    %560 = arith.negf %559 : vector<8x32xf32>
    %561 = math.exp %560 : vector<8x32xf32>
    %cst_257 = arith.constant 1.000000e+00 : f32
    %562 = vector.broadcast %cst_257 : f32 to vector<8x32xf32>
    %563 = arith.addf %562, %561 : vector<8x32xf32>
    %564 = arith.divf %562, %563 : vector<8x32xf32>
    %565 = arith.mulf %556, %544 : vector<8x32xf32>
    %566 = arith.mulf %550, %558 : vector<8x32xf32>
    %567 = arith.addf %565, %566 : vector<8x32xf32>
    %568 = math.tanh %567 : vector<8x32xf32>
    %569 = arith.mulf %564, %568 : vector<8x32xf32>
    %c0_258 = arith.constant 0 : index
    %c0_259 = arith.constant 0 : index
    %c0_260 = arith.constant 0 : index
    %570 = vector.load %arg11[%c0_258, %c0_259, %c0_260] : memref<2x8x32xf32, #tpu.memory_space<vmem>>, vector<1x8x32xf32>
    %571 = vector.shape_cast %570 : vector<1x8x32xf32> to vector<8x32xf32>
    %572 = vector.shape_cast %569 : vector<8x32xf32> to vector<1x8x32xf32>
    tpu.vector_store %arg11[%c0_258, %c0_259, %c0_260], %572 {strides = array<i32>} : memref<2x8x32xf32, #tpu.memory_space<vmem>>, vector<1x8x32xf32>,
    %c0_261 = arith.constant 0 : index
    %c0_262 = arith.constant 0 : index
    %c0_263 = arith.constant 0 : index
    %573 = vector.load %arg12[%c0_261, %c0_262, %c0_263] : memref<2x8x32xf32, #tpu.memory_space<vmem>>, vector<1x8x32xf32>
    %574 = vector.shape_cast %573 : vector<1x8x32xf32> to vector<8x32xf32>
    %575 = vector.shape_cast %567 : vector<8x32xf32> to vector<1x8x32xf32>
    tpu.vector_store %arg12[%c0_261, %c0_262, %c0_263], %575 {strides = array<i32>} : memref<2x8x32xf32, #tpu.memory_space<vmem>>, vector<1x8x32xf32>,
    %576 = arith.truncf %569 : vector<8x32xf32> to vector<8x32xbf16>
    %c1_264 = arith.constant 1 : index
    %c0_265 = arith.constant 0 : index
    %c0_266 = arith.constant 0 : index
    %577 = vector.load %arg11[%c1_264, %c0_265, %c0_266] : memref<2x8x32xf32, #tpu.memory_space<vmem>>, vector<1x8x32xf32>
    %578 = vector.shape_cast %577 : vector<1x8x32xf32> to vector<8x32xf32>
    %579 = arith.truncf %578 : vector<8x32xf32> to vector<8x32xbf16>
    %cst_267 = arith.constant dense<0.000000e+00> : vector<8x128xf32>
    %580 = tpu.matmul %576, %5, %cst_267 {dimension_numbers = #tpu.dot_dimension_numbers<[1], [0], [0], [1], [0, 0, 1, 1], [], []>} : vector<8x32xbf16>, vector<32x128xbf16>, vector<8x128xf32> -> vector<8x128xf32>
    %cst_268 = arith.constant dense<0.000000e+00> : vector<8x128xf32>
    %581 = tpu.matmul %579, %3, %cst_268 {dimension_numbers = #tpu.dot_dimension_numbers<[1], [0], [0], [1], [0, 0, 1, 1], [], []>} : vector<8x32xbf16>, vector<32x128xbf16>, vector<8x128xf32> -> vector<8x128xf32>
    %582 = arith.addf %580, %581 : vector<8x128xf32>
    %583 = vector.broadcast %6 : vector<1x128xf32> to vector<8x128xf32>
    %584 = arith.addf %582, %583 : vector<8x128xf32>
    %c1_269 = arith.constant 1 : index
    %c0_270 = arith.constant 0 : index
    %c0_271 = arith.constant 0 : index
    %585 = vector.load %arg12[%c1_269, %c0_270, %c0_271] : memref<2x8x32xf32, #tpu.memory_space<vmem>>, vector<1x8x32xf32>
    %586 = vector.shape_cast %585 : vector<1x8x32xf32> to vector<8x32xf32>
    %587 = vector.extract_strided_slice %584 {offsets = [0, 0], sizes = [8, 32], strides = [1, 1]} : vector<8x128xf32> to vector<8x32xf32>
    %588 = arith.negf %587 : vector<8x32xf32>
    %589 = math.exp %588 : vector<8x32xf32>
    %cst_272 = arith.constant 1.000000e+00 : f32
    %590 = vector.broadcast %cst_272 : f32 to vector<8x32xf32>
    %591 = arith.addf %590, %589 : vector<8x32xf32>
    %592 = arith.divf %590, %591 : vector<8x32xf32>
    %593 = vector.extract_strided_slice %584 {offsets = [0, 32], sizes = [8, 32], strides = [1, 1]} : vector<8x128xf32> to vector<8x32xf32>
    %594 = arith.negf %593 : vector<8x32xf32>
    %595 = math.exp %594 : vector<8x32xf32>
    %cst_273 = arith.constant 1.000000e+00 : f32
    %596 = vector.broadcast %cst_273 : f32 to vector<8x32xf32>
    %597 = arith.addf %596, %595 : vector<8x32xf32>
    %598 = arith.divf %596, %597 : vector<8x32xf32>
    %599 = vector.extract_strided_slice %584 {offsets = [0, 64], sizes = [8, 32], strides = [1, 1]} : vector<8x128xf32> to vector<8x32xf32>
    %600 = math.tanh %599 : vector<8x32xf32>
    %601 = vector.extract_strided_slice %584 {offsets = [0, 96], sizes = [8, 32], strides = [1, 1]} : vector<8x128xf32> to vector<8x32xf32>
    %602 = arith.negf %601 : vector<8x32xf32>
    %603 = math.exp %602 : vector<8x32xf32>
    %cst_274 = arith.constant 1.000000e+00 : f32
    %604 = vector.broadcast %cst_274 : f32 to vector<8x32xf32>
    %605 = arith.addf %604, %603 : vector<8x32xf32>
    %606 = arith.divf %604, %605 : vector<8x32xf32>
    %607 = arith.mulf %598, %586 : vector<8x32xf32>
    %608 = arith.mulf %592, %600 : vector<8x32xf32>
    %609 = arith.addf %607, %608 : vector<8x32xf32>
    %610 = math.tanh %609 : vector<8x32xf32>
    %611 = arith.mulf %606, %610 : vector<8x32xf32>
    %c1_275 = arith.constant 1 : index
    %c0_276 = arith.constant 0 : index
    %c0_277 = arith.constant 0 : index
    %612 = vector.load %arg11[%c1_275, %c0_276, %c0_277] : memref<2x8x32xf32, #tpu.memory_space<vmem>>, vector<1x8x32xf32>
    %613 = vector.shape_cast %612 : vector<1x8x32xf32> to vector<8x32xf32>
    %614 = vector.shape_cast %611 : vector<8x32xf32> to vector<1x8x32xf32>
    tpu.vector_store %arg11[%c1_275, %c0_276, %c0_277], %614 {strides = array<i32>} : memref<2x8x32xf32, #tpu.memory_space<vmem>>, vector<1x8x32xf32>,
    %c1_278 = arith.constant 1 : index
    %c0_279 = arith.constant 0 : index
    %c0_280 = arith.constant 0 : index
    %615 = vector.load %arg12[%c1_278, %c0_279, %c0_280] : memref<2x8x32xf32, #tpu.memory_space<vmem>>, vector<1x8x32xf32>
    %616 = vector.shape_cast %615 : vector<1x8x32xf32> to vector<8x32xf32>
    %617 = vector.shape_cast %609 : vector<8x32xf32> to vector<1x8x32xf32>
    tpu.vector_store %arg12[%c1_278, %c0_279, %c0_280], %617 {strides = array<i32>} : memref<2x8x32xf32, #tpu.memory_space<vmem>>, vector<1x8x32xf32>,
    %618 = arith.truncf %611 : vector<8x32xf32> to vector<8x32xbf16>
    %cst_281 = arith.constant dense<0.000000e+00> : vector<8x2xf32>
    %619 = tpu.matmul %618, %8, %cst_281 {dimension_numbers = #tpu.dot_dimension_numbers<[1], [0], [0], [1], [0, 0, 1, 1], [], []>} : vector<8x32xbf16>, vector<32x2xbf16>, vector<8x2xf32> -> vector<8x2xf32>
    %620 = vector.broadcast %9 : vector<1x2xf32> to vector<8x2xf32>
    %621 = arith.addf %619, %620 : vector<8x2xf32>
    %c48 = arith.constant 48 : index
    %c0_282 = arith.constant 0 : index
    %622 = vector.load %arg10[%c48, %c0_282] : memref<64x2xf32, #tpu.memory_space<vmem>>, vector<8x2xf32>
    tpu.vector_store %arg10[%c48, %c0_282], %621 {strides = array<i32>} : memref<64x2xf32, #tpu.memory_space<vmem>>, vector<8x2xf32>,
    %c0_283 = arith.constant 0 : index
    %c0_284 = arith.constant 0 : index
    %c0_285 = arith.constant 0 : index
    %623 = vector.load %arg11[%c0_283, %c0_284, %c0_285] : memref<2x8x32xf32, #tpu.memory_space<vmem>>, vector<1x8x32xf32>
    %624 = vector.shape_cast %623 : vector<1x8x32xf32> to vector<8x32xf32>
    %625 = arith.truncf %624 : vector<8x32xf32> to vector<8x32xbf16>
    %c7 = arith.constant 7 : index
    %c0_286 = arith.constant 0 : index
    %c0_287 = arith.constant 0 : index
    %626 = vector.load %arg0[%c7, %c0_286, %c0_287] : memref<8x8x128xf32, #tpu.memory_space<vmem>>, vector<1x8x128xf32>
    %627 = vector.shape_cast %626 : vector<1x8x128xf32> to vector<8x128xf32>
    %cst_288 = arith.constant dense<0.000000e+00> : vector<8x128xf32>
    %628 = tpu.matmul %625, %1, %cst_288 {dimension_numbers = #tpu.dot_dimension_numbers<[1], [0], [0], [1], [0, 0, 1, 1], [], []>} : vector<8x32xbf16>, vector<32x128xbf16>, vector<8x128xf32> -> vector<8x128xf32>
    %629 = arith.addf %627, %628 : vector<8x128xf32>
    %c0_289 = arith.constant 0 : index
    %c0_290 = arith.constant 0 : index
    %c0_291 = arith.constant 0 : index
    %630 = vector.load %arg12[%c0_289, %c0_290, %c0_291] : memref<2x8x32xf32, #tpu.memory_space<vmem>>, vector<1x8x32xf32>
    %631 = vector.shape_cast %630 : vector<1x8x32xf32> to vector<8x32xf32>
    %632 = vector.extract_strided_slice %629 {offsets = [0, 0], sizes = [8, 32], strides = [1, 1]} : vector<8x128xf32> to vector<8x32xf32>
    %633 = arith.negf %632 : vector<8x32xf32>
    %634 = math.exp %633 : vector<8x32xf32>
    %cst_292 = arith.constant 1.000000e+00 : f32
    %635 = vector.broadcast %cst_292 : f32 to vector<8x32xf32>
    %636 = arith.addf %635, %634 : vector<8x32xf32>
    %637 = arith.divf %635, %636 : vector<8x32xf32>
    %638 = vector.extract_strided_slice %629 {offsets = [0, 32], sizes = [8, 32], strides = [1, 1]} : vector<8x128xf32> to vector<8x32xf32>
    %639 = arith.negf %638 : vector<8x32xf32>
    %640 = math.exp %639 : vector<8x32xf32>
    %cst_293 = arith.constant 1.000000e+00 : f32
    %641 = vector.broadcast %cst_293 : f32 to vector<8x32xf32>
    %642 = arith.addf %641, %640 : vector<8x32xf32>
    %643 = arith.divf %641, %642 : vector<8x32xf32>
    %644 = vector.extract_strided_slice %629 {offsets = [0, 64], sizes = [8, 32], strides = [1, 1]} : vector<8x128xf32> to vector<8x32xf32>
    %645 = math.tanh %644 : vector<8x32xf32>
    %646 = vector.extract_strided_slice %629 {offsets = [0, 96], sizes = [8, 32], strides = [1, 1]} : vector<8x128xf32> to vector<8x32xf32>
    %647 = arith.negf %646 : vector<8x32xf32>
    %648 = math.exp %647 : vector<8x32xf32>
    %cst_294 = arith.constant 1.000000e+00 : f32
    %649 = vector.broadcast %cst_294 : f32 to vector<8x32xf32>
    %650 = arith.addf %649, %648 : vector<8x32xf32>
    %651 = arith.divf %649, %650 : vector<8x32xf32>
    %652 = arith.mulf %643, %631 : vector<8x32xf32>
    %653 = arith.mulf %637, %645 : vector<8x32xf32>
    %654 = arith.addf %652, %653 : vector<8x32xf32>
    %655 = math.tanh %654 : vector<8x32xf32>
    %656 = arith.mulf %651, %655 : vector<8x32xf32>
    %c0_295 = arith.constant 0 : index
    %c0_296 = arith.constant 0 : index
    %c0_297 = arith.constant 0 : index
    %657 = vector.load %arg11[%c0_295, %c0_296, %c0_297] : memref<2x8x32xf32, #tpu.memory_space<vmem>>, vector<1x8x32xf32>
    %658 = vector.shape_cast %657 : vector<1x8x32xf32> to vector<8x32xf32>
    %659 = vector.shape_cast %656 : vector<8x32xf32> to vector<1x8x32xf32>
    tpu.vector_store %arg11[%c0_295, %c0_296, %c0_297], %659 {strides = array<i32>} : memref<2x8x32xf32, #tpu.memory_space<vmem>>, vector<1x8x32xf32>,
    %c0_298 = arith.constant 0 : index
    %c0_299 = arith.constant 0 : index
    %c0_300 = arith.constant 0 : index
    %660 = vector.load %arg12[%c0_298, %c0_299, %c0_300] : memref<2x8x32xf32, #tpu.memory_space<vmem>>, vector<1x8x32xf32>
    %661 = vector.shape_cast %660 : vector<1x8x32xf32> to vector<8x32xf32>
    %662 = vector.shape_cast %654 : vector<8x32xf32> to vector<1x8x32xf32>
    tpu.vector_store %arg12[%c0_298, %c0_299, %c0_300], %662 {strides = array<i32>} : memref<2x8x32xf32, #tpu.memory_space<vmem>>, vector<1x8x32xf32>,
    %663 = arith.truncf %656 : vector<8x32xf32> to vector<8x32xbf16>
    %c1_301 = arith.constant 1 : index
    %c0_302 = arith.constant 0 : index
    %c0_303 = arith.constant 0 : index
    %664 = vector.load %arg11[%c1_301, %c0_302, %c0_303] : memref<2x8x32xf32, #tpu.memory_space<vmem>>, vector<1x8x32xf32>
    %665 = vector.shape_cast %664 : vector<1x8x32xf32> to vector<8x32xf32>
    %666 = arith.truncf %665 : vector<8x32xf32> to vector<8x32xbf16>
    %cst_304 = arith.constant dense<0.000000e+00> : vector<8x128xf32>
    %667 = tpu.matmul %663, %5, %cst_304 {dimension_numbers = #tpu.dot_dimension_numbers<[1], [0], [0], [1], [0, 0, 1, 1], [], []>} : vector<8x32xbf16>, vector<32x128xbf16>, vector<8x128xf32> -> vector<8x128xf32>
    %cst_305 = arith.constant dense<0.000000e+00> : vector<8x128xf32>
    %668 = tpu.matmul %666, %3, %cst_305 {dimension_numbers = #tpu.dot_dimension_numbers<[1], [0], [0], [1], [0, 0, 1, 1], [], []>} : vector<8x32xbf16>, vector<32x128xbf16>, vector<8x128xf32> -> vector<8x128xf32>
    %669 = arith.addf %667, %668 : vector<8x128xf32>
    %670 = vector.broadcast %6 : vector<1x128xf32> to vector<8x128xf32>
    %671 = arith.addf %669, %670 : vector<8x128xf32>
    %c1_306 = arith.constant 1 : index
    %c0_307 = arith.constant 0 : index
    %c0_308 = arith.constant 0 : index
    %672 = vector.load %arg12[%c1_306, %c0_307, %c0_308] : memref<2x8x32xf32, #tpu.memory_space<vmem>>, vector<1x8x32xf32>
    %673 = vector.shape_cast %672 : vector<1x8x32xf32> to vector<8x32xf32>
    %674 = vector.extract_strided_slice %671 {offsets = [0, 0], sizes = [8, 32], strides = [1, 1]} : vector<8x128xf32> to vector<8x32xf32>
    %675 = arith.negf %674 : vector<8x32xf32>
    %676 = math.exp %675 : vector<8x32xf32>
    %cst_309 = arith.constant 1.000000e+00 : f32
    %677 = vector.broadcast %cst_309 : f32 to vector<8x32xf32>
    %678 = arith.addf %677, %676 : vector<8x32xf32>
    %679 = arith.divf %677, %678 : vector<8x32xf32>
    %680 = vector.extract_strided_slice %671 {offsets = [0, 32], sizes = [8, 32], strides = [1, 1]} : vector<8x128xf32> to vector<8x32xf32>
    %681 = arith.negf %680 : vector<8x32xf32>
    %682 = math.exp %681 : vector<8x32xf32>
    %cst_310 = arith.constant 1.000000e+00 : f32
    %683 = vector.broadcast %cst_310 : f32 to vector<8x32xf32>
    %684 = arith.addf %683, %682 : vector<8x32xf32>
    %685 = arith.divf %683, %684 : vector<8x32xf32>
    %686 = vector.extract_strided_slice %671 {offsets = [0, 64], sizes = [8, 32], strides = [1, 1]} : vector<8x128xf32> to vector<8x32xf32>
    %687 = math.tanh %686 : vector<8x32xf32>
    %688 = vector.extract_strided_slice %671 {offsets = [0, 96], sizes = [8, 32], strides = [1, 1]} : vector<8x128xf32> to vector<8x32xf32>
    %689 = arith.negf %688 : vector<8x32xf32>
    %690 = math.exp %689 : vector<8x32xf32>
    %cst_311 = arith.constant 1.000000e+00 : f32
    %691 = vector.broadcast %cst_311 : f32 to vector<8x32xf32>
    %692 = arith.addf %691, %690 : vector<8x32xf32>
    %693 = arith.divf %691, %692 : vector<8x32xf32>
    %694 = arith.mulf %685, %673 : vector<8x32xf32>
    %695 = arith.mulf %679, %687 : vector<8x32xf32>
    %696 = arith.addf %694, %695 : vector<8x32xf32>
    %697 = math.tanh %696 : vector<8x32xf32>
    %698 = arith.mulf %693, %697 : vector<8x32xf32>
    %c1_312 = arith.constant 1 : index
    %c0_313 = arith.constant 0 : index
    %c0_314 = arith.constant 0 : index
    %699 = vector.load %arg11[%c1_312, %c0_313, %c0_314] : memref<2x8x32xf32, #tpu.memory_space<vmem>>, vector<1x8x32xf32>
    %700 = vector.shape_cast %699 : vector<1x8x32xf32> to vector<8x32xf32>
    %701 = vector.shape_cast %698 : vector<8x32xf32> to vector<1x8x32xf32>
    tpu.vector_store %arg11[%c1_312, %c0_313, %c0_314], %701 {strides = array<i32>} : memref<2x8x32xf32, #tpu.memory_space<vmem>>, vector<1x8x32xf32>,
    %c1_315 = arith.constant 1 : index
    %c0_316 = arith.constant 0 : index
    %c0_317 = arith.constant 0 : index
    %702 = vector.load %arg12[%c1_315, %c0_316, %c0_317] : memref<2x8x32xf32, #tpu.memory_space<vmem>>, vector<1x8x32xf32>
    %703 = vector.shape_cast %702 : vector<1x8x32xf32> to vector<8x32xf32>
    %704 = vector.shape_cast %696 : vector<8x32xf32> to vector<1x8x32xf32>
    tpu.vector_store %arg12[%c1_315, %c0_316, %c0_317], %704 {strides = array<i32>} : memref<2x8x32xf32, #tpu.memory_space<vmem>>, vector<1x8x32xf32>,
    %705 = arith.truncf %698 : vector<8x32xf32> to vector<8x32xbf16>
    %cst_318 = arith.constant dense<0.000000e+00> : vector<8x2xf32>
    %706 = tpu.matmul %705, %8, %cst_318 {dimension_numbers = #tpu.dot_dimension_numbers<[1], [0], [0], [1], [0, 0, 1, 1], [], []>} : vector<8x32xbf16>, vector<32x2xbf16>, vector<8x2xf32> -> vector<8x2xf32>
    %707 = vector.broadcast %9 : vector<1x2xf32> to vector<8x2xf32>
    %708 = arith.addf %706, %707 : vector<8x2xf32>
    %c56 = arith.constant 56 : index
    %c0_319 = arith.constant 0 : index
    %709 = vector.load %arg10[%c56, %c0_319] : memref<64x2xf32, #tpu.memory_space<vmem>>, vector<8x2xf32>
    tpu.vector_store %arg10[%c56, %c0_319], %708 {strides = array<i32>} : memref<64x2xf32, #tpu.memory_space<vmem>>, vector<8x2xf32>,
    %c0_320 = arith.constant 0 : index
    %c0_321 = arith.constant 0 : index
    %710 = vector.load %arg10[%c0_320, %c0_321] : memref<64x2xf32, #tpu.memory_space<vmem>>, vector<64x2xf32>
    %c0_322 = arith.constant 0 : index
    %c0_323 = arith.constant 0 : index
    %711 = vector.load %arg7[%c0_322, %c0_323] : memref<64x1xf32, #tpu.memory_space<vmem>>, vector<64x1xf32>
    %cst_324 = arith.constant 0.000000e+00 : f32
    %712 = vector.broadcast %cst_324 : f32 to vector<64x1xf32>
    %713 = arith.cmpf ogt, %711, %712 : vector<64x1xf32>
    %cst_325 = arith.constant -1.000000e+30 : f32
    %714 = vector.shape_cast %713 : vector<64x1xi1> to vector<64x1xi1>
    %715 = vector.broadcast %714 : vector<64x1xi1> to vector<64x2xi1>
    %716 = vector.broadcast %cst_325 : f32 to vector<64x2xf32>
    %717 = arith.select %715, %710, %716 : vector<64x2xi1>, vector<64x2xf32>
    %cst_326 = arith.constant dense<0xFF800000> : vector<2xf32>
    %718 = vector.multi_reduction <maximumf>, %717, %cst_326 [0] : vector<64x2xf32> to vector<2xf32>
    %719 = vector.shape_cast %718 : vector<2xf32> to vector<1x2xf32>
    %720 = vector.broadcast %719 : vector<1x2xf32> to vector<64x2xf32>
    %721 = arith.subf %710, %720 : vector<64x2xf32>
    %722 = math.exp %721 : vector<64x2xf32>
    %723 = vector.broadcast %711 : vector<64x1xf32> to vector<64x2xf32>
    %724 = arith.mulf %722, %723 : vector<64x2xf32>
    %cst_327 = arith.constant dense<0.000000e+00> : vector<2xf32>
    %725 = vector.multi_reduction <add>, %724, %cst_327 [0] : vector<64x2xf32> to vector<2xf32>
    %726 = vector.shape_cast %725 : vector<2xf32> to vector<1x2xf32>
    %727 = vector.broadcast %726 : vector<1x2xf32> to vector<64x2xf32>
    %728 = arith.divf %724, %727 : vector<64x2xf32>
    %c0_328 = arith.constant 0 : index
    %c0_329 = arith.constant 0 : index
    %729 = vector.load %arg10[%c0_328, %c0_329] : memref<64x2xf32, #tpu.memory_space<vmem>>, vector<64x2xf32>
    tpu.vector_store %arg10[%c0_328, %c0_329], %728 {strides = array<i32>} : memref<64x2xf32, #tpu.memory_space<vmem>>, vector<64x2xf32>,
    return
  }
}

</mosaic_0001>

<llo_original>
// kernel: tile.8
$region0: #{tile.8}
  #allocation0 [shape = 's32[1]{0}', space=sflag, size = 0x4, scoped, tag = 'scoped memory for tile.8']
  %s0 = inlined_call_operand.vmem [shape: f32[8], index: 0, kind: input, shape index: {}]
  %s1 = inlined_call_operand.vmem [shape: f32[8,8], index: 1, kind: output, shape index: {}]
  // Predicated region
  $region2: #{tile.8} parent=0 // pred_check
    _
  $region3: #{tile.8} parent=0 // pred_check_branch
    %3 = sbr.rel (0) target = $region5
  $region4: #{tile.8} parent=0 // pred_region
    _
  $region5: #{tile.8} parent=0 // pred_fallthru
    _
  %v4 = vld [vmem:[%s0] ss:$0 sm:$0xff]
  %5 = vst [vmem:[%s1] sm:$0xff] %v4

// kernel: tile.0
$region0: #{tile.0}
  %s0 = inlined_call_operand.vmem [shape: f32[8,8], index: 0, kind: input, shape index: {}]
  %s1 = inlined_call_operand.vmem [shape: f32[64,1], index: 1, kind: output, shape index: {}]
  %v2 = vld [vmem:[%s0] sm:$0xff]
  %vm3 = vcmask 7168
  %4 = vst.msk [vmem:[%s1] ss:$8 sm:$0xf] %vm3, %v2
  %5 = vst.msk [vmem:[%s1] ss:$8 sm:$0xf0] %vm3, %v2
  %v6 = vld [vmem:[%s0] sm:$0xff]
  %7 = vrot.lane.b32.xlu0 %v6, 127
  %v8 = vpop.permute.xlu0 %7
  %vm9 = vcmask 7168
  %s10 = scalar_lea.vmem %s1, 1
  %11 = vst.msk [vmem:[%s10] ss:$8 sm:$0xf] %vm9, %v8
  %s12 = scalar_lea.vmem %s1, 1
  %13 = vst.msk [vmem:[%s12] ss:$8 sm:$0xf0] %vm9, %v8
  %v14 = vld [vmem:[%s0] sm:$0xff]
  %15 = vrot.lane.b32.xlu0 %v14, 126
  %v16 = vpop.permute.xlu0 %15
  %vm17 = vcmask 7168
  %s18 = scalar_lea.vmem %s1, 2
  %19 = vst.msk [vmem:[%s18] ss:$8 sm:$0xf] %vm17, %v16
  %s20 = scalar_lea.vmem %s1, 2
  %21 = vst.msk [vmem:[%s20] ss:$8 sm:$0xf0] %vm17, %v16
  %v22 = vld [vmem:[%s0] sm:$0xff]
  %23 = vrot.lane.b32.xlu0 %v22, 125
  %v24 = vpop.permute.xlu0 %23
  %vm25 = vcmask 7168
  %s26 = scalar_lea.vmem %s1, 3
  %27 = vst.msk [vmem:[%s26] ss:$8 sm:$0xf] %vm25, %v24
  %s28 = scalar_lea.vmem %s1, 3
  %29 = vst.msk [vmem:[%s28] ss:$8 sm:$0xf0] %vm25, %v24
  %v30 = vld [vmem:[%s0] sm:$0xff]
  %31 = vrot.lane.b32.xlu0 %v30, 124
  %v32 = vpop.permute.xlu0 %31
  %vm33 = vcmask 7168
  %s34 = scalar_lea.vmem %s1, 4
  %35 = vst.msk [vmem:[%s34] ss:$8 sm:$0xf] %vm33, %v32
  %s36 = scalar_lea.vmem %s1, 4
  %37 = vst.msk [vmem:[%s36] ss:$8 sm:$0xf0] %vm33, %v32
  %v38 = vld [vmem:[%s0] sm:$0xff]
  %39 = vrot.lane.b32.xlu0 %v38, 123
  %v40 = vpop.permute.xlu0 %39
  %vm41 = vcmask 7168
  %s42 = scalar_lea.vmem %s1, 5
  %43 = vst.msk [vmem:[%s42] ss:$8 sm:$0xf] %vm41, %v40
  %s44 = scalar_lea.vmem %s1, 5
  %45 = vst.msk [vmem:[%s44] ss:$8 sm:$0xf0] %vm41, %v40
  %v46 = vld [vmem:[%s0] sm:$0xff]
  %47 = vrot.lane.b32.xlu0 %v46, 122
  %v48 = vpop.permute.xlu0 %47
  %vm49 = vcmask 7168
  %s50 = scalar_lea.vmem %s1, 6
  %51 = vst.msk [vmem:[%s50] ss:$8 sm:$0xf] %vm49, %v48
  %s52 = scalar_lea.vmem %s1, 6
  %53 = vst.msk [vmem:[%s52] ss:$8 sm:$0xf0] %vm49, %v48
  %v54 = vld [vmem:[%s0] sm:$0xff]
  %55 = vrot.lane.b32.xlu0 %v54, 121
  %v56 = vpop.permute.xlu0 %55
  %vm57 = vcmask 7168
  %s58 = scalar_lea.vmem %s1, 7
  %59 = vst.msk [vmem:[%s58] ss:$8 sm:$0xf] %vm57, %v56
  %s60 = scalar_lea.vmem %s1, 7
  %61 = vst.msk [vmem:[%s60] ss:$8 sm:$0xf0] %vm57, %v56

// kernel: sentiment_lstm_forward.1
$region0: #{sentiment_lstm_forward.1}
  #allocation0 [shape = 'u32[]', space=smem, size = 0x4, offset = 0x4, fixed_abs, tag = 'smem constant byte address 0x4 - core index']
  #allocation1 [shape = 'u32[72,128]{1,0:T(1,128)}', space=vmem, size = 0x9000, scoped, tag = 'internal scratch']
  %s0 = inlined_call_operand.vmem [shape: f32[8,8,128], index: 0, kind: input, shape index: {}]
  %s1 = inlined_call_operand.vmem [shape: f32[32,128], index: 1, kind: input, shape index: {}]
  %s2 = inlined_call_operand.vmem [shape: f32[32,128], index: 2, kind: input, shape index: {}]
  %s3 = inlined_call_operand.vmem [shape: f32[32,128], index: 3, kind: input, shape index: {}]
  %s4 = inlined_call_operand.vmem [shape: f32[1,128], index: 4, kind: input, shape index: {}]
  %s5 = inlined_call_operand.vmem [shape: f32[32,2], index: 5, kind: input, shape index: {}]
  %s6 = inlined_call_operand.vmem [shape: f32[1,2], index: 6, kind: input, shape index: {}]
  %s7 = inlined_call_operand.vmem [shape: f32[64,1], index: 7, kind: input, shape index: {}]
  %s8 = inlined_call_operand.vmem [shape: f32[2,8,32], index: 8, kind: input, shape index: {}]
  %s9 = inlined_call_operand.vmem [shape: f32[2,8,32], index: 9, kind: input, shape index: {}]
  %s10 = inlined_call_operand.vmem [shape: f32[64,2], index: 10, kind: output, shape index: {0}]
  %s11 = inlined_call_operand.vmem [shape: f32[2,8,32], index: 11, kind: output, shape index: {1}]
  %s12 = inlined_call_operand.vmem [shape: f32[2,8,32], index: 12, kind: output, shape index: {2}]
  %13 = xla_tuple %s10, %s11, %s12
  %s14 = sld [smem:[#allocation0]]
  $region66: #{sentiment_lstm_forward.1} parent=0
    _
  %s16 = ssub.s32 1, %s14
  %s17 = scalar_select 0, %s16, %s14
  // Predicated region
  $region2: #{sentiment_lstm_forward.1} parent=0 // pred_check
    _
  $region3: #{sentiment_lstm_forward.1} parent=0 // pred_check_branch
    %19 = sbr.rel (0) target = $region5
  $region4: #{sentiment_lstm_forward.1} parent=0 // pred_region
    _
  $region5: #{sentiment_lstm_forward.1} parent=0 // pred_fallthru
    _
  // Predicated region
  $region6: #{sentiment_lstm_forward.1} parent=0 // pred_check
    _
  $region7: #{sentiment_lstm_forward.1} parent=0 // pred_check_branch
    %21 = sbr.rel (0) target = $region9
  $region8: #{sentiment_lstm_forward.1} parent=0 // pred_region
    _
  $region9: #{sentiment_lstm_forward.1} parent=0 // pred_fallthru
    _
  // Predicated region
  $region10: #{sentiment_lstm_forward.1} parent=0 // pred_check
    _
  $region11: #{sentiment_lstm_forward.1} parent=0 // pred_check_branch
    %23 = sbr.rel (0) target = $region13
  $region12: #{sentiment_lstm_forward.1} parent=0 // pred_region
    _
  $region13: #{sentiment_lstm_forward.1} parent=0 // pred_fallthru
    _
  // Predicated region
  $region14: #{sentiment_lstm_forward.1} parent=0 // pred_check
    _
  $region15: #{sentiment_lstm_forward.1} parent=0 // pred_check_branch
    %25 = sbr.rel (0) target = $region17
  $region16: #{sentiment_lstm_forward.1} parent=0 // pred_region
    _
  $region17: #{sentiment_lstm_forward.1} parent=0 // pred_fallthru
    _
  // Predicated region
  $region18: #{sentiment_lstm_forward.1} parent=0 // pred_check
    _
  $region19: #{sentiment_lstm_forward.1} parent=0 // pred_check_branch
    %27 = sbr.rel (0) target = $region21
  $region20: #{sentiment_lstm_forward.1} parent=0 // pred_region
    _
  $region21: #{sentiment_lstm_forward.1} parent=0 // pred_fallthru
    _
  // Predicated region
  $region22: #{sentiment_lstm_forward.1} parent=0 // pred_check
    _
  $region23: #{sentiment_lstm_forward.1} parent=0 // pred_check_branch
    %29 = sbr.rel (0) target = $region25
  $region24: #{sentiment_lstm_forward.1} parent=0 // pred_region
    _
  $region25: #{sentiment_lstm_forward.1} parent=0 // pred_fallthru
    _
  // Predicated region
  $region26: #{sentiment_lstm_forward.1} parent=0 // pred_check
    _
  $region27: #{sentiment_lstm_forward.1} parent=0 // pred_check_branch
    %31 = sbr.rel (0) target = $region29
  $region28: #{sentiment_lstm_forward.1} parent=0 // pred_region
    _
  $region29: #{sentiment_lstm_forward.1} parent=0 // pred_fallthru
    _
  // Predicated region
  $region30: #{sentiment_lstm_forward.1} parent=0 // pred_check
    _
  $region31: #{sentiment_lstm_forward.1} parent=0 // pred_check_branch
    %33 = sbr.rel (0) target = $region33
  $region32: #{sentiment_lstm_forward.1} parent=0 // pred_region
    _
  $region33: #{sentiment_lstm_forward.1} parent=0 // pred_fallthru
    _
  // Predicated region
  $region34: #{sentiment_lstm_forward.1} parent=0 // pred_check
    _
  $region35: #{sentiment_lstm_forward.1} parent=0 // pred_check_branch
    %35 = sbr.rel (0) target = $region37
  $region36: #{sentiment_lstm_forward.1} parent=0 // pred_region
    _
  $region37: #{sentiment_lstm_forward.1} parent=0 // pred_fallthru
    _
  // Predicated region
  $region38: #{sentiment_lstm_forward.1} parent=0 // pred_check
    _
  $region39: #{sentiment_lstm_forward.1} parent=0 // pred_check_branch
    %37 = sbr.rel (0) target = $region41
  $region40: #{sentiment_lstm_forward.1} parent=0 // pred_region
    _
  $region41: #{sentiment_lstm_forward.1} parent=0 // pred_fallthru
    _
  %v39 = vld [vmem:[%s1] sm:$0xff]
  %v40 = vld [vmem:[%s1 + $0x8] sm:$0xff]
  %v41 = vld [vmem:[%s1 + $0x10] sm:$0xff]
  %v42 = vld [vmem:[%s1 + $0x18] sm:$0xff]
  %v43 = vpack.c.bf16 %v40, %v39
  %v44 = vpack.c.bf16 %v42, %v41
  %v45 = vld [vmem:[%s2] sm:$0xff]
  %v46 = vld [vmem:[%s2 + $0x8] sm:$0xff]
  %v47 = vld [vmem:[%s2 + $0x10] sm:$0xff]
  %v48 = vld [vmem:[%s2 + $0x18] sm:$0xff]
  %v49 = vpack.c.bf16 %v46, %v45
  %v50 = vpack.c.bf16 %v48, %v47
  %v51 = vld [vmem:[%s3] sm:$0xff]
  %v52 = vld [vmem:[%s3 + $0x8] sm:$0xff]
  %v53 = vld [vmem:[%s3 + $0x10] sm:$0xff]
  %v54 = vld [vmem:[%s3 + $0x18] sm:$0xff]
  %v55 = vpack.c.bf16 %v52, %v51
  %v56 = vpack.c.bf16 %v54, %v53
  %v57 = vld [vmem:[%s4] sm:$0x1]
  %v58 = vld [vmem:[%s5] sm:$0xff]
  %v59 = vld [vmem:[%s5 + $0x8] sm:$0xff]
  %v60 = vld [vmem:[%s5 + $0x10] sm:$0xff]
  %v61 = vld [vmem:[%s5 + $0x18] sm:$0xff]
  %v62 = vpack.c.bf16 %v59, %v58
  %v63 = vpack.c.bf16 %v61, %v60
  %v64 = vld [vmem:[%s6] sm:$0x1]
  %v65 = vld [vmem:[%s8] sm:$0xff]
  %v66 = vld [vmem:[%s8 + $0x8] sm:$0xff]
  %vm67 = vcmask 261120
  %68 = vst.msk [vmem:[%s11] sm:$0xff] %vm67, %v65
  %69 = vst.msk [vmem:[%s11 + $0x8] sm:$0xff] %vm67, %v66
  %v70 = vld [vmem:[%s9] sm:$0xff]
  %v71 = vld [vmem:[%s9 + $0x8] sm:$0xff]
  %72 = vst.msk [vmem:[%s12] sm:$0xff] %vm67, %v70
  %73 = vst.msk [vmem:[%s12 + $0x8] sm:$0xff] %vm67, %v71
  %v74 = vld [vmem:[%s11] sm:$0xff]
  %v75 = vpack.c.bf16 %v74, %v74
  %v76 = vld [vmem:[%s0] sm:$0xff]
  %v78 = vsel %vm67, %v75, 0
  %80 = vmatpush.bf16.msra.mxu0 0
  %81 = vmatpush.bf16.msra.mxu0 0
  %82 = vmatpush.bf16.msra.mxu0 0
  %83 = vmatpush.bf16.msra.mxu0 0
  %84 = vmatpush.bf16.msra.mxu0 0
  %85 = vmatpush.bf16.msra.mxu0 0
  %86 = vmatpush.bf16.msra.mxu0 %v44
  %87 = vmatpush.bf16.msra.mxu0 %v43
  %88 = vmatmul.bf16.gmra.mxu0 %v78
  %v89 = vpop.f32.mrf.mxu0
  %v90 = vadd.f32 0.0, %v89
  %v91 = vpop.f32.mrf.mxu0
  %92 = vdwg.mxu0
  %v93 = vadd.f32 %v76, %v90
  %v94 = vld [vmem:[%s12] sm:$0xff]
  %v95 = vxor.u32 %v93, 2147483648
  %v96 = vmul.f32 %v95, 1.442695
  %v97 = vpow.pop %v96
  %v98 = vadd.f32 %v97, 1.0
  %v99 = vrcp.pop %v98
  %v100 = vmul.f32 %v98, %v99
  %v101 = vsub.f32 1.0, %v100
  %v102 = vmul.f32 %v99, %v101
  %v103 = vadd.f32 %v99, %v102
  %vm104 = vweird.f32 %v98
  %vm105 = vweird.f32 %v99
  %vm106 = vmor %vm104, %vm105
  %v107 = vsel %vm106, %v99, %v103
  %v108 = vand.u32 2147483647, %v98
  %vm109 = vcmp.eq.f32.partialorder %v108, 8.507059e+37
  %v110 = vand.u32 %v98, 2147483648
  %v111 = vor.u32 1.1754944e-38, %v110
  %v112 = vsel %vm109, %v111, %v107
  %v113 = vmul.f32 1.0, %v112
  %v114 = vtanh.pop %v93
  %116 = vrot.lane.b32.xlu0 %v94, 32
  %v117 = vpop.permute.xlu0 %116
  %v119 = vmul.f32 %v113, %v117
  %121 = vrot.lane.b32.xlu0 %v114, 64
  %v122 = vpop.permute.xlu0 %121
  %v124 = vmul.f32 %v113, %v122
  %126 = vrot.lane.b32.xlu0 %v124, 32
  %v127 = vpop.permute.xlu0 %126
  %v129 = vadd.f32 %v119, %v127
  %v130 = vtanh.pop %v129
  %132 = vrot.lane.b32.xlu0 %v130, 64
  %v133 = vpop.permute.xlu0 %132
  %v135 = vmul.f32 %v113, %v133
  %137 = vrot.lane.b32.xlu0 %v135, 32
  %v138 = vpop.permute.xlu0 %137
  %140 = vst.msk [vmem:[%s11] sm:$0xff] %vm67, %v138
  %142 = vrot.lane.b32.xlu0 %v129, 96
  %v143 = vpop.permute.xlu0 %142
  %145 = vst.msk [vmem:[%s12] sm:$0xff] %vm67, %v143
  %v146 = vpack.c.bf16 %v135, %v135
  %s147 = scalar_lea.vmem %s11, 8
  %v148 = vld [vmem:[%s147] sm:$0xff]
  %v149 = vpack.c.bf16 %v148, %v148
  %v151 = vsel %vm67, %v149, 0
  %153 = vmatpush.bf16.msra.mxu0 0
  %154 = vmatpush.bf16.msra.mxu0 0
  %155 = vmatpush.bf16.msra.mxu0 0
  %156 = vmatpush.bf16.msra.mxu0 0
  %157 = vmatpush.bf16.msra.mxu0 0
  %158 = vmatpush.bf16.msra.mxu0 0
  %159 = vmatpush.bf16.msra.mxu0 %v50
  %160 = vmatpush.bf16.msra.mxu0 %v49
  %161 = vmatmul.bf16.gmra.mxu0 %v151
  %v162 = vpop.f32.mrf.mxu0
  %v163 = vadd.f32 0.0, %v162
  %v164 = vpop.f32.mrf.mxu0
  %165 = vdwg.mxu0
  %167 = vrot.lane.b32.xlu0 %v146, 32
  %v168 = vpop.permute.xlu0 %167
  %v170 = vsel %vm67, %v168, 0
  %172 = vmatpush.bf16.msra.mxu0 0
  %173 = vmatpush.bf16.msra.mxu0 0
  %174 = vmatpush.bf16.msra.mxu0 0
  %175 = vmatpush.bf16.msra.mxu0 0
  %176 = vmatpush.bf16.msra.mxu0 0
  %177 = vmatpush.bf16.msra.mxu0 0
  %178 = vmatpush.bf16.msra.mxu0 %v56
  %179 = vmatpush.bf16.msra.mxu0 %v55
  %180 = vmatmul.bf16.gmra.mxu0 %v170
  %v181 = vpop.f32.mrf.mxu0
  %v182 = vadd.f32 %v163, %v181
  %v183 = vpop.f32.mrf.mxu0
  %184 = vdwg.mxu0
  %v186 = vperm.slane %v57, 0
  %v188 = vadd.f32 %v182, %v186
  %s189 = scalar_lea.vmem %s12, 8
  %v190 = vld [vmem:[%s189] sm:$0xff]
  %v191 = vxor.u32 %v188, 2147483648
  %v192 = vmul.f32 %v191, 1.442695
  %v193 = vpow.pop %v192
  %v194 = vadd.f32 %v193, 1.0
  %v195 = vrcp.pop %v194
  %v196 = vmul.f32 %v194, %v195
  %v197 = vsub.f32 1.0, %v196
  %v198 = vmul.f32 %v195, %v197
  %v199 = vadd.f32 %v195, %v198
  %vm200 = vweird.f32 %v194
  %vm201 = vweird.f32 %v195
  %vm202 = vmor %vm200, %vm201
  %v203 = vsel %vm202, %v195, %v199
  %v204 = vand.u32 2147483647, %v194
  %vm205 = vcmp.eq.f32.partialorder %v204, 8.507059e+37
  %v206 = vand.u32 %v194, 2147483648
  %v207 = vor.u32 1.1754944e-38, %v206
  %v208 = vsel %vm205, %v207, %v203
  %v209 = vmul.f32 1.0, %v208
  %v210 = vtanh.pop %v188
  %212 = vrot.lane.b32.xlu0 %v190, 32
  %v213 = vpop.permute.xlu0 %212
  %v215 = vmul.f32 %v209, %v213
  %217 = vrot.lane.b32.xlu0 %v210, 64
  %v218 = vpop.permute.xlu0 %217
  %v220 = vmul.f32 %v209, %v218
  %222 = vrot.lane.b32.xlu0 %v220, 32
  %v223 = vpop.permute.xlu0 %222
  %v225 = vadd.f32 %v215, %v223
  %v226 = vtanh.pop %v225
  %228 = vrot.lane.b32.xlu0 %v226, 64
  %v229 = vpop.permute.xlu0 %228
  %v231 = vmul.f32 %v209, %v229
  %233 = vrot.lane.b32.xlu0 %v231, 32
  %v234 = vpop.permute.xlu0 %233
  %236 = vst.msk [vmem:[%s147] sm:$0xff] %vm67, %v234
  %238 = vrot.lane.b32.xlu0 %v225, 96
  %v239 = vpop.permute.xlu0 %238
  %241 = vst.msk [vmem:[%s189] sm:$0xff] %vm67, %v239
  %v242 = vpack.c.bf16 %v231, %v231
  %v244 = vperm.slane %v64, 0
  %247 = vrot.lane.b32.xlu0 %v242, 32
  %v248 = vpop.permute.xlu0 %247
  %v250 = vsel %vm67, %v248, 0
  %252 = vmatpush.bf16.msra.mxu0 0
  %253 = vmatpush.bf16.msra.mxu0 0
  %254 = vmatpush.bf16.msra.mxu0 0
  %255 = vmatpush.bf16.msra.mxu0 0
  %256 = vmatpush.bf16.msra.mxu0 0
  %257 = vmatpush.bf16.msra.mxu0 0
  %258 = vmatpush.bf16.msra.mxu0 %v63
  %259 = vmatpush.bf16.msra.mxu0 %v62
  %260 = vmatmul.bf16.gmra.mxu0 %v250
  %v261 = vpop.f32.mrf.mxu0
  %v262 = vadd.f32 %v244, %v261
  %v263 = vpop.f32.mrf.mxu0
  %264 = vdwg.mxu0
  %vm265 = vcmask 15360
  %266 = vst.msk [vmem:[%s10] sm:$0xff] %vm265, %v262
  %v267 = vld [vmem:[%s11] sm:$0xff]
  %v268 = vpack.c.bf16 %v267, %v267
  %s269 = scalar_lea.vmem %s0, 8
  %v270 = vld [vmem:[%s269] sm:$0xff]
  %v272 = vsel %vm67, %v268, 0
  %274 = vmatpush.bf16.msra.mxu0 0
  %275 = vmatpush.bf16.msra.mxu0 0
  %276 = vmatpush.bf16.msra.mxu0 0
  %277 = vmatpush.bf16.msra.mxu0 0
  %278 = vmatpush.bf16.msra.mxu0 0
  %279 = vmatpush.bf16.msra.mxu0 0
  %280 = vmatpush.bf16.msra.mxu0 %v44
  %281 = vmatpush.bf16.msra.mxu0 %v43
  %282 = vmatmul.bf16.gmra.mxu0 %v272
  %v283 = vpop.f32.mrf.mxu0
  %v284 = vadd.f32 0.0, %v283
  %v285 = vpop.f32.mrf.mxu0
  %286 = vdwg.mxu0
  %v287 = vadd.f32 %v270, %v284
  %v288 = vld [vmem:[%s12] sm:$0xff]
  %v289 = vxor.u32 %v287, 2147483648
  %v290 = vmul.f32 %v289, 1.442695
  %v291 = vpow.pop %v290
  %v292 = vadd.f32 %v291, 1.0
  %v293 = vrcp.pop %v292
  %v294 = vmul.f32 %v292, %v293
  %v295 = vsub.f32 1.0, %v294
  %v296 = vmul.f32 %v293, %v295
  %v297 = vadd.f32 %v293, %v296
  %vm298 = vweird.f32 %v292
  %vm299 = vweird.f32 %v293
  %vm300 = vmor %vm298, %vm299
  %v301 = vsel %vm300, %v293, %v297
  %v302 = vand.u32 2147483647, %v292
  %vm303 = vcmp.eq.f32.partialorder %v302, 8.507059e+37
  %v304 = vand.u32 %v292, 2147483648
  %v305 = vor.u32 1.1754944e-38, %v304
  %v306 = vsel %vm303, %v305, %v301
  %v307 = vmul.f32 1.0, %v306
  %v308 = vtanh.pop %v287
  %310 = vrot.lane.b32.xlu0 %v288, 32
  %v311 = vpop.permute.xlu0 %310
  %v313 = vmul.f32 %v307, %v311
  %315 = vrot.lane.b32.xlu0 %v308, 64
  %v316 = vpop.permute.xlu0 %315
  %v318 = vmul.f32 %v307, %v316
  %320 = vrot.lane.b32.xlu0 %v318, 32
  %v321 = vpop.permute.xlu0 %320
  %v323 = vadd.f32 %v313, %v321
  %v324 = vtanh.pop %v323
  %326 = vrot.lane.b32.xlu0 %v324, 64
  %v327 = vpop.permute.xlu0 %326
  %v329 = vmul.f32 %v307, %v327
  %331 = vrot.lane.b32.xlu0 %v329, 32
  %v332 = vpop.permute.xlu0 %331
  %334 = vst.msk [vmem:[%s11] sm:$0xff] %vm67, %v332
  %336 = vrot.lane.b32.xlu0 %v323, 96
  %v337 = vpop.permute.xlu0 %336
  %339 = vst.msk [vmem:[%s12] sm:$0xff] %vm67, %v337
  %v340 = vpack.c.bf16 %v329, %v329
  %v341 = vld [vmem:[%s147] sm:$0xff]
  %v342 = vpack.c.bf16 %v341, %v341
  %v344 = vsel %vm67, %v342, 0
  %346 = vmatpush.bf16.msra.mxu0 0
  %347 = vmatpush.bf16.msra.mxu0 0
  %348 = vmatpush.bf16.msra.mxu0 0
  %349 = vmatpush.bf16.msra.mxu0 0
  %350 = vmatpush.bf16.msra.mxu0 0
  %351 = vmatpush.bf16.msra.mxu0 0
  %352 = vmatpush.bf16.msra.mxu0 %v50
  %353 = vmatpush.bf16.msra.mxu0 %v49
  %354 = vmatmul.bf16.gmra.mxu0 %v344
  %v355 = vpop.f32.mrf.mxu0
  %v356 = vadd.f32 0.0, %v355
  %v357 = vpop.f32.mrf.mxu0
  %358 = vdwg.mxu0
  %360 = vrot.lane.b32.xlu0 %v340, 32
  %v361 = vpop.permute.xlu0 %360
  %v363 = vsel %vm67, %v361, 0
  %365 = vmatpush.bf16.msra.mxu0 0
  %366 = vmatpush.bf16.msra.mxu0 0
  %367 = vmatpush.bf16.msra.mxu0 0
  %368 = vmatpush.bf16.msra.mxu0 0
  %369 = vmatpush.bf16.msra.mxu0 0
  %370 = vmatpush.bf16.msra.mxu0 0
  %371 = vmatpush.bf16.msra.mxu0 %v56
  %372 = vmatpush.bf16.msra.mxu0 %v55
  %373 = vmatmul.bf16.gmra.mxu0 %v363
  %v374 = vpop.f32.mrf.mxu0
  %v375 = vadd.f32 %v356, %v374
  %v376 = vpop.f32.mrf.mxu0
  %377 = vdwg.mxu0
  %v378 = vadd.f32 %v375, %v186
  %v379 = vld [vmem:[%s189] sm:$0xff]
  %v380 = vxor.u32 %v378, 2147483648
  %v381 = vmul.f32 %v380, 1.442695
  %v382 = vpow.pop %v381
  %v383 = vadd.f32 %v382, 1.0
  %v384 = vrcp.pop %v383
  %v385 = vmul.f32 %v383, %v384
  %v386 = vsub.f32 1.0, %v385
  %v387 = vmul.f32 %v384, %v386
  %v388 = vadd.f32 %v384, %v387
  %vm389 = vweird.f32 %v383
  %vm390 = vweird.f32 %v384
  %vm391 = vmor %vm389, %vm390
  %v392 = vsel %vm391, %v384, %v388
  %v393 = vand.u32 2147483647, %v383
  %vm394 = vcmp.eq.f32.partialorder %v393, 8.507059e+37
  %v395 = vand.u32 %v383, 2147483648
  %v396 = vor.u32 1.1754944e-38, %v395
  %v397 = vsel %vm394, %v396, %v392
  %v398 = vmul.f32 1.0, %v397
  %v399 = vtanh.pop %v378
  %401 = vrot.lane.b32.xlu0 %v379, 32
  %v402 = vpop.permute.xlu0 %401
  %v404 = vmul.f32 %v398, %v402
  %406 = vrot.lane.b32.xlu0 %v399, 64
  %v407 = vpop.permute.xlu0 %406
  %v409 = vmul.f32 %v398, %v407
  %411 = vrot.lane.b32.xlu0 %v409, 32
  %v412 = vpop.permute.xlu0 %411
  %v414 = vadd.f32 %v404, %v412
  %v415 = vtanh.pop %v414
  %417 = vrot.lane.b32.xlu0 %v415, 64
  %v418 = vpop.permute.xlu0 %417
  %v420 = vmul.f32 %v398, %v418
  %422 = vrot.lane.b32.xlu0 %v420, 32
  %v423 = vpop.permute.xlu0 %422
  %425 = vst.msk [vmem:[%s147] sm:$0xff] %vm67, %v423
  %427 = vrot.lane.b32.xlu0 %v414, 96
  %v428 = vpop.permute.xlu0 %427
  %430 = vst.msk [vmem:[%s189] sm:$0xff] %vm67, %v428
  %v431 = vpack.c.bf16 %v420, %v420
  %433 = vrot.lane.b32.xlu0 %v431, 32
  %v434 = vpop.permute.xlu0 %433
  %v436 = vsel %vm67, %v434, 0
  %438 = vmatpush.bf16.msra.mxu0 0
  %439 = vmatpush.bf16.msra.mxu0 0
  %440 = vmatpush.bf16.msra.mxu0 0
  %441 = vmatpush.bf16.msra.mxu0 0
  %442 = vmatpush.bf16.msra.mxu0 0
  %443 = vmatpush.bf16.msra.mxu0 0
  %444 = vmatpush.bf16.msra.mxu0 %v63
  %445 = vmatpush.bf16.msra.mxu0 %v62
  %446 = vmatmul.bf16.gmra.mxu0 %v436
  %v447 = vpop.f32.mrf.mxu0
  %v448 = vadd.f32 %v244, %v447
  %v449 = vpop.f32.mrf.mxu0
  %450 = vdwg.mxu0
  %451 = vst.msk [vmem:[%s10 + $0x8] sm:$0xff] %vm265, %v448
  %v452 = vld [vmem:[%s11] sm:$0xff]
  %v453 = vpack.c.bf16 %v452, %v452
  %s454 = scalar_lea.vmem %s0, 16
  %v455 = vld [vmem:[%s454] sm:$0xff]
  %v457 = vsel %vm67, %v453, 0
  %459 = vmatpush.bf16.msra.mxu0 0
  %460 = vmatpush.bf16.msra.mxu0 0
  %461 = vmatpush.bf16.msra.mxu0 0
  %462 = vmatpush.bf16.msra.mxu0 0
  %463 = vmatpush.bf16.msra.mxu0 0
  %464 = vmatpush.bf16.msra.mxu0 0
  %465 = vmatpush.bf16.msra.mxu0 %v44
  %466 = vmatpush.bf16.msra.mxu0 %v43
  %467 = vmatmul.bf16.gmra.mxu0 %v457
  %v468 = vpop.f32.mrf.mxu0
  %v469 = vadd.f32 0.0, %v468
  %v470 = vpop.f32.mrf.mxu0
  %471 = vdwg.mxu0
  %v472 = vadd.f32 %v455, %v469
  %v473 = vld [vmem:[%s12] sm:$0xff]
  %v474 = vxor.u32 %v472, 2147483648
  %v475 = vmul.f32 %v474, 1.442695
  %v476 = vpow.pop %v475
  %v477 = vadd.f32 %v476, 1.0
  %v478 = vrcp.pop %v477
  %v479 = vmul.f32 %v477, %v478
  %v480 = vsub.f32 1.0, %v479
  %v481 = vmul.f32 %v478, %v480
  %v482 = vadd.f32 %v478, %v481
  %vm483 = vweird.f32 %v477
  %vm484 = vweird.f32 %v478
  %vm485 = vmor %vm483, %vm484
  %v486 = vsel %vm485, %v478, %v482
  %v487 = vand.u32 2147483647, %v477
  %vm488 = vcmp.eq.f32.partialorder %v487, 8.507059e+37
  %v489 = vand.u32 %v477, 2147483648
  %v490 = vor.u32 1.1754944e-38, %v489
  %v491 = vsel %vm488, %v490, %v486
  %v492 = vmul.f32 1.0, %v491
  %v493 = vtanh.pop %v472
  %495 = vrot.lane.b32.xlu0 %v473, 32
  %v496 = vpop.permute.xlu0 %495
  %v498 = vmul.f32 %v492, %v496
  %500 = vrot.lane.b32.xlu0 %v493, 64
  %v501 = vpop.permute.xlu0 %500
  %v503 = vmul.f32 %v492, %v501
  %505 = vrot.lane.b32.xlu0 %v503, 32
  %v506 = vpop.permute.xlu0 %505
  %v508 = vadd.f32 %v498, %v506
  %v509 = vtanh.pop %v508
  %511 = vrot.lane.b32.xlu0 %v509, 64
  %v512 = vpop.permute.xlu0 %511
  %v514 = vmul.f32 %v492, %v512
  %516 = vrot.lane.b32.xlu0 %v514, 32
  %v517 = vpop.permute.xlu0 %516
  %519 = vst.msk [vmem:[%s11] sm:$0xff] %vm67, %v517
  %521 = vrot.lane.b32.xlu0 %v508, 96
  %v522 = vpop.permute.xlu0 %521
  %524 = vst.msk [vmem:[%s12] sm:$0xff] %vm67, %v522
  %v525 = vpack.c.bf16 %v514, %v514
  %v526 = vld [vmem:[%s147] sm:$0xff]
  %v527 = vpack.c.bf16 %v526, %v526
  %v529 = vsel %vm67, %v527, 0
  %531 = vmatpush.bf16.msra.mxu0 0
  %532 = vmatpush.bf16.msra.mxu0 0
  %533 = vmatpush.bf16.msra.mxu0 0
  %534 = vmatpush.bf16.msra.mxu0 0
  %535 = vmatpush.bf16.msra.mxu0 0
  %536 = vmatpush.bf16.msra.mxu0 0
  %537 = vmatpush.bf16.msra.mxu0 %v50
  %538 = vmatpush.bf16.msra.mxu0 %v49
  %539 = vmatmul.bf16.gmra.mxu0 %v529
  %v540 = vpop.f32.mrf.mxu0
  %v541 = vadd.f32 0.0, %v540
  %v542 = vpop.f32.mrf.mxu0
  %543 = vdwg.mxu0
  %545 = vrot.lane.b32.xlu0 %v525, 32
  %v546 = vpop.permute.xlu0 %545
  %v548 = vsel %vm67, %v546, 0
  %550 = vmatpush.bf16.msra.mxu0 0
  %551 = vmatpush.bf16.msra.mxu0 0
  %552 = vmatpush.bf16.msra.mxu0 0
  %553 = vmatpush.bf16.msra.mxu0 0
  %554 = vmatpush.bf16.msra.mxu0 0
  %555 = vmatpush.bf16.msra.mxu0 0
  %556 = vmatpush.bf16.msra.mxu0 %v56
  %557 = vmatpush.bf16.msra.mxu0 %v55
  %558 = vmatmul.bf16.gmra.mxu0 %v548
  %v559 = vpop.f32.mrf.mxu0
  %v560 = vadd.f32 %v541, %v559
  %v561 = vpop.f32.mrf.mxu0
  %562 = vdwg.mxu0
  %v563 = vadd.f32 %v560, %v186
  %v564 = vld [vmem:[%s189] sm:$0xff]
  %v565 = vxor.u32 %v563, 2147483648
  %v566 = vmul.f32 %v565, 1.442695
  %v567 = vpow.pop %v566
  %v568 = vadd.f32 %v567, 1.0
  %v569 = vrcp.pop %v568
  %v570 = vmul.f32 %v568, %v569
  %v571 = vsub.f32 1.0, %v570
  %v572 = vmul.f32 %v569, %v571
  %v573 = vadd.f32 %v569, %v572
  %vm574 = vweird.f32 %v568
  %vm575 = vweird.f32 %v569
  %vm576 = vmor %vm574, %vm575
  %v577 = vsel %vm576, %v569, %v573
  %v578 = vand.u32 2147483647, %v568
  %vm579 = vcmp.eq.f32.partialorder %v578, 8.507059e+37
  %v580 = vand.u32 %v568, 2147483648
  %v581 = vor.u32 1.1754944e-38, %v580
  %v582 = vsel %vm579, %v581, %v577
  %v583 = vmul.f32 1.0, %v582
  %v584 = vtanh.pop %v563
  %586 = vrot.lane.b32.xlu0 %v564, 32
  %v587 = vpop.permute.xlu0 %586
  %v589 = vmul.f32 %v583, %v587
  %591 = vrot.lane.b32.xlu0 %v584, 64
  %v592 = vpop.permute.xlu0 %591
  %v594 = vmul.f32 %v583, %v592
  %596 = vrot.lane.b32.xlu0 %v594, 32
  %v597 = vpop.permute.xlu0 %596
  %v599 = vadd.f32 %v589, %v597
  %v600 = vtanh.pop %v599
  %602 = vrot.lane.b32.xlu0 %v600, 64
  %v603 = vpop.permute.xlu0 %602
  %v605 = vmul.f32 %v583, %v603
  %607 = vrot.lane.b32.xlu0 %v605, 32
  %v608 = vpop.permute.xlu0 %607
  %610 = vst.msk [vmem:[%s147] sm:$0xff] %vm67, %v608
  %612 = vrot.lane.b32.xlu0 %v599, 96
  %v613 = vpop.permute.xlu0 %612
  %615 = vst.msk [vmem:[%s189] sm:$0xff] %vm67, %v613
  %v616 = vpack.c.bf16 %v605, %v605
  %618 = vrot.lane.b32.xlu0 %v616, 32
  %v619 = vpop.permute.xlu0 %618
  %v621 = vsel %vm67, %v619, 0
  %623 = vmatpush.bf16.msra.mxu0 0
  %624 = vmatpush.bf16.msra.mxu0 0
  %625 = vmatpush.bf16.msra.mxu0 0
  %626 = vmatpush.bf16.msra.mxu0 0
  %627 = vmatpush.bf16.msra.mxu0 0
  %628 = vmatpush.bf16.msra.mxu0 0
  %629 = vmatpush.bf16.msra.mxu0 %v63
  %630 = vmatpush.bf16.msra.mxu0 %v62
  %631 = vmatmul.bf16.gmra.mxu0 %v621
  %v632 = vpop.f32.mrf.mxu0
  %v633 = vadd.f32 %v244, %v632
  %v634 = vpop.f32.mrf.mxu0
  %635 = vdwg.mxu0
  %636 = vst.msk [vmem:[%s10 + $0x10] sm:$0xff] %vm265, %v633
  %v637 = vld [vmem:[%s11] sm:$0xff]
  %v638 = vpack.c.bf16 %v637, %v637
  %s639 = scalar_lea.vmem %s0, 24
  %v640 = vld [vmem:[%s639] sm:$0xff]
  %v642 = vsel %vm67, %v638, 0
  %644 = vmatpush.bf16.msra.mxu0 0
  %645 = vmatpush.bf16.msra.mxu0 0
  %646 = vmatpush.bf16.msra.mxu0 0
  %647 = vmatpush.bf16.msra.mxu0 0
  %648 = vmatpush.bf16.msra.mxu0 0
  %649 = vmatpush.bf16.msra.mxu0 0
  %650 = vmatpush.bf16.msra.mxu0 %v44
  %651 = vmatpush.bf16.msra.mxu0 %v43
  %652 = vmatmul.bf16.gmra.mxu0 %v642
  %v653 = vpop.f32.mrf.mxu0
  %v654 = vadd.f32 0.0, %v653
  %v655 = vpop.f32.mrf.mxu0
  %656 = vdwg.mxu0
  %v657 = vadd.f32 %v640, %v654
  %v658 = vld [vmem:[%s12] sm:$0xff]
  %v659 = vxor.u32 %v657, 2147483648
  %v660 = vmul.f32 %v659, 1.442695
  %v661 = vpow.pop %v660
  %v662 = vadd.f32 %v661, 1.0
  %v663 = vrcp.pop %v662
  %v664 = vmul.f32 %v662, %v663
  %v665 = vsub.f32 1.0, %v664
  %v666 = vmul.f32 %v663, %v665
  %v667 = vadd.f32 %v663, %v666
  %vm668 = vweird.f32 %v662
  %vm669 = vweird.f32 %v663
  %vm670 = vmor %vm668, %vm669
  %v671 = vsel %vm670, %v663, %v667
  %v672 = vand.u32 2147483647, %v662
  %vm673 = vcmp.eq.f32.partialorder %v672, 8.507059e+37
  %v674 = vand.u32 %v662, 2147483648
  %v675 = vor.u32 1.1754944e-38, %v674
  %v676 = vsel %vm673, %v675, %v671
  %v677 = vmul.f32 1.0, %v676
  %v678 = vtanh.pop %v657
  %680 = vrot.lane.b32.xlu0 %v658, 32
  %v681 = vpop.permute.xlu0 %680
  %v683 = vmul.f32 %v677, %v681
  %685 = vrot.lane.b32.xlu0 %v678, 64
  %v686 = vpop.permute.xlu0 %685
  %v688 = vmul.f32 %v677, %v686
  %690 = vrot.lane.b32.xlu0 %v688, 32
  %v691 = vpop.permute.xlu0 %690
  %v693 = vadd.f32 %v683, %v691
  %v694 = vtanh.pop %v693
  %696 = vrot.lane.b32.xlu0 %v694, 64
  %v697 = vpop.permute.xlu0 %696
  %v699 = vmul.f32 %v677, %v697
  %701 = vrot.lane.b32.xlu0 %v699, 32
  %v702 = vpop.permute.xlu0 %701
  %704 = vst.msk [vmem:[%s11] sm:$0xff] %vm67, %v702
  %706 = vrot.lane.b32.xlu0 %v693, 96
  %v707 = vpop.permute.xlu0 %706
  %709 = vst.msk [vmem:[%s12] sm:$0xff] %vm67, %v707
  %v710 = vpack.c.bf16 %v699, %v699
  %v711 = vld [vmem:[%s147] sm:$0xff]
  %v712 = vpack.c.bf16 %v711, %v711
  %v714 = vsel %vm67, %v712, 0
  %716 = vmatpush.bf16.msra.mxu0 0
  %717 = vmatpush.bf16.msra.mxu0 0
  %718 = vmatpush.bf16.msra.mxu0 0
  %719 = vmatpush.bf16.msra.mxu0 0
  %720 = vmatpush.bf16.msra.mxu0 0
  %721 = vmatpush.bf16.msra.mxu0 0
  %722 = vmatpush.bf16.msra.mxu0 %v50
  %723 = vmatpush.bf16.msra.mxu0 %v49
  %724 = vmatmul.bf16.gmra.mxu0 %v714
  %v725 = vpop.f32.mrf.mxu0
  %v726 = vadd.f32 0.0, %v725
  %v727 = vpop.f32.mrf.mxu0
  %728 = vdwg.mxu0
  %730 = vrot.lane.b32.xlu0 %v710, 32
  %v731 = vpop.permute.xlu0 %730
  %v733 = vsel %vm67, %v731, 0
  %735 = vmatpush.bf16.msra.mxu0 0
  %736 = vmatpush.bf16.msra.mxu0 0
  %737 = vmatpush.bf16.msra.mxu0 0
  %738 = vmatpush.bf16.msra.mxu0 0
  %739 = vmatpush.bf16.msra.mxu0 0
  %740 = vmatpush.bf16.msra.mxu0 0
  %741 = vmatpush.bf16.msra.mxu0 %v56
  %742 = vmatpush.bf16.msra.mxu0 %v55
  %743 = vmatmul.bf16.gmra.mxu0 %v733
  %v744 = vpop.f32.mrf.mxu0
  %v745 = vadd.f32 %v726, %v744
  %v746 = vpop.f32.mrf.mxu0
  %747 = vdwg.mxu0
  %v748 = vadd.f32 %v745, %v186
  %v749 = vld [vmem:[%s189] sm:$0xff]
  %v750 = vxor.u32 %v748, 2147483648
  %v751 = vmul.f32 %v750, 1.442695
  %v752 = vpow.pop %v751
  %v753 = vadd.f32 %v752, 1.0
  %v754 = vrcp.pop %v753
  %v755 = vmul.f32 %v753, %v754
  %v756 = vsub.f32 1.0, %v755
  %v757 = vmul.f32 %v754, %v756
  %v758 = vadd.f32 %v754, %v757
  %vm759 = vweird.f32 %v753
  %vm760 = vweird.f32 %v754
  %vm761 = vmor %vm759, %vm760
  %v762 = vsel %vm761, %v754, %v758
  %v763 = vand.u32 2147483647, %v753
  %vm764 = vcmp.eq.f32.partialorder %v763, 8.507059e+37
  %v765 = vand.u32 %v753, 2147483648
  %v766 = vor.u32 1.1754944e-38, %v765
  %v767 = vsel %vm764, %v766, %v762
  %v768 = vmul.f32 1.0, %v767
  %v769 = vtanh.pop %v748
  %771 = vrot.lane.b32.xlu0 %v749, 32
  %v772 = vpop.permute.xlu0 %771
  %v774 = vmul.f32 %v768, %v772
  %776 = vrot.lane.b32.xlu0 %v769, 64
  %v777 = vpop.permute.xlu0 %776
  %v779 = vmul.f32 %v768, %v777
  %781 = vrot.lane.b32.xlu0 %v779, 32
  %v782 = vpop.permute.xlu0 %781
  %v784 = vadd.f32 %v774, %v782
  %v785 = vtanh.pop %v784
  %787 = vrot.lane.b32.xlu0 %v785, 64
  %v788 = vpop.permute.xlu0 %787
  %v790 = vmul.f32 %v768, %v788
  %792 = vrot.lane.b32.xlu0 %v790, 32
  %v793 = vpop.permute.xlu0 %792
  %795 = vst.msk [vmem:[%s147] sm:$0xff] %vm67, %v793
  %797 = vrot.lane.b32.xlu0 %v784, 96
  %v798 = vpop.permute.xlu0 %797
  %800 = vst.msk [vmem:[%s189] sm:$0xff] %vm67, %v798
  %v801 = vpack.c.bf16 %v790, %v790
  %803 = vrot.lane.b32.xlu0 %v801, 32
  %v804 = vpop.permute.xlu0 %803
  %v806 = vsel %vm67, %v804, 0
  %808 = vmatpush.bf16.msra.mxu0 0
  %809 = vmatpush.bf16.msra.mxu0 0
  %810 = vmatpush.bf16.msra.mxu0 0
  %811 = vmatpush.bf16.msra.mxu0 0
  %812 = vmatpush.bf16.msra.mxu0 0
  %813 = vmatpush.bf16.msra.mxu0 0
  %814 = vmatpush.bf16.msra.mxu0 %v63
  %815 = vmatpush.bf16.msra.mxu0 %v62
  %816 = vmatmul.bf16.gmra.mxu0 %v806
  %v817 = vpop.f32.mrf.mxu0
  %v818 = vadd.f32 %v244, %v817
  %v819 = vpop.f32.mrf.mxu0
  %820 = vdwg.mxu0
  %821 = vst.msk [vmem:[%s10 + $0x18] sm:$0xff] %vm265, %v818
  %v822 = vld [vmem:[%s11] sm:$0xff]
  %v823 = vpack.c.bf16 %v822, %v822
  %s824 = scalar_lea.vmem %s0, 32
  %v825 = vld [vmem:[%s824] sm:$0xff]
  %v827 = vsel %vm67, %v823, 0
  %829 = vmatpush.bf16.msra.mxu0 0
  %830 = vmatpush.bf16.msra.mxu0 0
  %831 = vmatpush.bf16.msra.mxu0 0
  %832 = vmatpush.bf16.msra.mxu0 0
  %833 = vmatpush.bf16.msra.mxu0 0
  %834 = vmatpush.bf16.msra.mxu0 0
  %835 = vmatpush.bf16.msra.mxu0 %v44
  %836 = vmatpush.bf16.msra.mxu0 %v43
  %837 = vmatmul.bf16.gmra.mxu0 %v827
  %v838 = vpop.f32.mrf.mxu0
  %v839 = vadd.f32 0.0, %v838
  %v840 = vpop.f32.mrf.mxu0
  %841 = vdwg.mxu0
  %v842 = vadd.f32 %v825, %v839
  %v843 = vld [vmem:[%s12] sm:$0xff]
  %v844 = vxor.u32 %v842, 2147483648
  %v845 = vmul.f32 %v844, 1.442695
  %v846 = vpow.pop %v845
  %v847 = vadd.f32 %v846, 1.0
  %v848 = vrcp.pop %v847
  %v849 = vmul.f32 %v847, %v848
  %v850 = vsub.f32 1.0, %v849
  %v851 = vmul.f32 %v848, %v850
  %v852 = vadd.f32 %v848, %v851
  %vm853 = vweird.f32 %v847
  %vm854 = vweird.f32 %v848
  %vm855 = vmor %vm853, %vm854
  %v856 = vsel %vm855, %v848, %v852
  %v857 = vand.u32 2147483647, %v847
  %vm858 = vcmp.eq.f32.partialorder %v857, 8.507059e+37
  %v859 = vand.u32 %v847, 2147483648
  %v860 = vor.u32 1.1754944e-38, %v859
  %v861 = vsel %vm858, %v860, %v856
  %v862 = vmul.f32 1.0, %v861
  %v863 = vtanh.pop %v842
  %865 = vrot.lane.b32.xlu0 %v843, 32
  %v866 = vpop.permute.xlu0 %865
  %v868 = vmul.f32 %v862, %v866
  %870 = vrot.lane.b32.xlu0 %v863, 64
  %v871 = vpop.permute.xlu0 %870
  %v873 = vmul.f32 %v862, %v871
  %875 = vrot.lane.b32.xlu0 %v873, 32
  %v876 = vpop.permute.xlu0 %875
  %v878 = vadd.f32 %v868, %v876
  %v879 = vtanh.pop %v878
  %881 = vrot.lane.b32.xlu0 %v879, 64
  %v882 = vpop.permute.xlu0 %881
  %v884 = vmul.f32 %v862, %v882
  %886 = vrot.lane.b32.xlu0 %v884, 32
  %v887 = vpop.permute.xlu0 %886
  %889 = vst.msk [vmem:[%s11] sm:$0xff] %vm67, %v887
  %891 = vrot.lane.b32.xlu0 %v878, 96
  %v892 = vpop.permute.xlu0 %891
  %894 = vst.msk [vmem:[%s12] sm:$0xff] %vm67, %v892
  %v895 = vpack.c.bf16 %v884, %v884
  %v896 = vld [vmem:[%s147] sm:$0xff]
  %v897 = vpack.c.bf16 %v896, %v896
  %v899 = vsel %vm67, %v897, 0
  %901 = vmatpush.bf16.msra.mxu0 0
  %902 = vmatpush.bf16.msra.mxu0 0
  %903 = vmatpush.bf16.msra.mxu0 0
  %904 = vmatpush.bf16.msra.mxu0 0
  %905 = vmatpush.bf16.msra.mxu0 0
  %906 = vmatpush.bf16.msra.mxu0 0
  %907 = vmatpush.bf16.msra.mxu0 %v50
  %908 = vmatpush.bf16.msra.mxu0 %v49
  %909 = vmatmul.bf16.gmra.mxu0 %v899
  %v910 = vpop.f32.mrf.mxu0
  %v911 = vadd.f32 0.0, %v910
  %v912 = vpop.f32.mrf.mxu0
  %913 = vdwg.mxu0
  %915 = vrot.lane.b32.xlu0 %v895, 32
  %v916 = vpop.permute.xlu0 %915
  %v918 = vsel %vm67, %v916, 0
  %920 = vmatpush.bf16.msra.mxu0 0
  %921 = vmatpush.bf16.msra.mxu0 0
  %922 = vmatpush.bf16.msra.mxu0 0
  %923 = vmatpush.bf16.msra.mxu0 0
  %924 = vmatpush.bf16.msra.mxu0 0
  %925 = vmatpush.bf16.msra.mxu0 0
  %926 = vmatpush.bf16.msra.mxu0 %v56
  %927 = vmatpush.bf16.msra.mxu0 %v55
  %928 = vmatmul.bf16.gmra.mxu0 %v918
  %v929 = vpop.f32.mrf.mxu0
  %v930 = vadd.f32 %v911, %v929
  %v931 = vpop.f32.mrf.mxu0
  %932 = vdwg.mxu0
  %v933 = vadd.f32 %v930, %v186
  %v934 = vld [vmem:[%s189] sm:$0xff]
  %v935 = vxor.u32 %v933, 2147483648
  %v936 = vmul.f32 %v935, 1.442695
  %v937 = vpow.pop %v936
  %v938 = vadd.f32 %v937, 1.0
  %v939 = vrcp.pop %v938
  %v940 = vmul.f32 %v938, %v939
  %v941 = vsub.f32 1.0, %v940
  %v942 = vmul.f32 %v939, %v941
  %v943 = vadd.f32 %v939, %v942
  %vm944 = vweird.f32 %v938
  %vm945 = vweird.f32 %v939
  %vm946 = vmor %vm944, %vm945
  %v947 = vsel %vm946, %v939, %v943
  %v948 = vand.u32 2147483647, %v938
  %vm949 = vcmp.eq.f32.partialorder %v948, 8.507059e+37
  %v950 = vand.u32 %v938, 2147483648
  %v951 = vor.u32 1.1754944e-38, %v950
  %v952 = vsel %vm949, %v951, %v947
  %v953 = vmul.f32 1.0, %v952
  %v954 = vtanh.pop %v933
  %956 = vrot.lane.b32.xlu0 %v934, 32
  %v957 = vpop.permute.xlu0 %956
  %v959 = vmul.f32 %v953, %v957
  %961 = vrot.lane.b32.xlu0 %v954, 64
  %v962 = vpop.permute.xlu0 %961
  %v964 = vmul.f32 %v953, %v962
  %966 = vrot.lane.b32.xlu0 %v964, 32
  %v967 = vpop.permute.xlu0 %966
  %v969 = vadd.f32 %v959, %v967
  %v970 = vtanh.pop %v969
  %972 = vrot.lane.b32.xlu0 %v970, 64
  %v973 = vpop.permute.xlu0 %972
  %v975 = vmul.f32 %v953, %v973
  %977 = vrot.lane.b32.xlu0 %v975, 32
  %v978 = vpop.permute.xlu0 %977
  %980 = vst.msk [vmem:[%s147] sm:$0xff] %vm67, %v978
  %982 = vrot.lane.b32.xlu0 %v969, 96
  %v983 = vpop.permute.xlu0 %982
  %985 = vst.msk [vmem:[%s189] sm:$0xff] %vm67, %v983
  %v986 = vpack.c.bf16 %v975, %v975
  %988 = vrot.lane.b32.xlu0 %v986, 32
  %v989 = vpop.permute.xlu0 %988
  %v991 = vsel %vm67, %v989, 0
  %993 = vmatpush.bf16.msra.mxu0 0
  %994 = vmatpush.bf16.msra.mxu0 0
  %995 = vmatpush.bf16.msra.mxu0 0
  %996 = vmatpush.bf16.msra.mxu0 0
  %997 = vmatpush.bf16.msra.mxu0 0
  %998 = vmatpush.bf16.msra.mxu0 0
  %999 = vmatpush.bf16.msra.mxu0 %v63
  %1000 = vmatpush.bf16.msra.mxu0 %v62
  %1001 = vmatmul.bf16.gmra.mxu0 %v991
  %v1002 = vpop.f32.mrf.mxu0
  %v1003 = vadd.f32 %v244, %v1002
  %v1004 = vpop.f32.mrf.mxu0
  %1005 = vdwg.mxu0
  %1006 = vst.msk [vmem:[%s10 + $0x20] sm:$0xff] %vm265, %v1003
  %v1007 = vld [vmem:[%s11] sm:$0xff]
  %v1008 = vpack.c.bf16 %v1007, %v1007
  %s1009 = scalar_lea.vmem %s0, 40
  %v1010 = vld [vmem:[%s1009] sm:$0xff]
  %v1012 = vsel %vm67, %v1008, 0
  %1014 = vmatpush.bf16.msra.mxu0 0
  %1015 = vmatpush.bf16.msra.mxu0 0
  %1016 = vmatpush.bf16.msra.mxu0 0
  %1017 = vmatpush.bf16.msra.mxu0 0
  %1018 = vmatpush.bf16.msra.mxu0 0
  %1019 = vmatpush.bf16.msra.mxu0 0
  %1020 = vmatpush.bf16.msra.mxu0 %v44
  %1021 = vmatpush.bf16.msra.mxu0 %v43
  %1022 = vmatmul.bf16.gmra.mxu0 %v1012
  %v1023 = vpop.f32.mrf.mxu0
  %v1024 = vadd.f32 0.0, %v1023
  %v1025 = vpop.f32.mrf.mxu0
  %1026 = vdwg.mxu0
  %v1027 = vadd.f32 %v1010, %v1024
  %v1028 = vld [vmem:[%s12] sm:$0xff]
  %v1029 = vxor.u32 %v1027, 2147483648
  %v1030 = vmul.f32 %v1029, 1.442695
  %v1031 = vpow.pop %v1030
  %v1032 = vadd.f32 %v1031, 1.0
  %v1033 = vrcp.pop %v1032
  %v1034 = vmul.f32 %v1032, %v1033
  %v1035 = vsub.f32 1.0, %v1034
  %v1036 = vmul.f32 %v1033, %v1035
  %v1037 = vadd.f32 %v1033, %v1036
  %vm1038 = vweird.f32 %v1032
  %vm1039 = vweird.f32 %v1033
  %vm1040 = vmor %vm1038, %vm1039
  %v1041 = vsel %vm1040, %v1033, %v1037
  %v1042 = vand.u32 2147483647, %v1032
  %vm1043 = vcmp.eq.f32.partialorder %v1042, 8.507059e+37
  %v1044 = vand.u32 %v1032, 2147483648
  %v1045 = vor.u32 1.1754944e-38, %v1044
  %v1046 = vsel %vm1043, %v1045, %v1041
  %v1047 = vmul.f32 1.0, %v1046
  %v1048 = vtanh.pop %v1027
  %1050 = vrot.lane.b32.xlu0 %v1028, 32
  %v1051 = vpop.permute.xlu0 %1050
  %v1053 = vmul.f32 %v1047, %v1051
  %1055 = vrot.lane.b32.xlu0 %v1048, 64
  %v1056 = vpop.permute.xlu0 %1055
  %v1058 = vmul.f32 %v1047, %v1056
  %1060 = vrot.lane.b32.xlu0 %v1058, 32
  %v1061 = vpop.permute.xlu0 %1060
  %v1063 = vadd.f32 %v1053, %v1061
  %v1064 = vtanh.pop %v1063
  %1066 = vrot.lane.b32.xlu0 %v1064, 64
  %v1067 = vpop.permute.xlu0 %1066
  %v1069 = vmul.f32 %v1047, %v1067
  %1071 = vrot.lane.b32.xlu0 %v1069, 32
  %v1072 = vpop.permute.xlu0 %1071
  %1074 = vst.msk [vmem:[%s11] sm:$0xff] %vm67, %v1072
  %1076 = vrot.lane.b32.xlu0 %v1063, 96
  %v1077 = vpop.permute.xlu0 %1076
  %1079 = vst.msk [vmem:[%s12] sm:$0xff] %vm67, %v1077
  %v1080 = vpack.c.bf16 %v1069, %v1069
  %v1081 = vld [vmem:[%s147] sm:$0xff]
  %v1082 = vpack.c.bf16 %v1081, %v1081
  %v1084 = vsel %vm67, %v1082, 0
  %1086 = vmatpush.bf16.msra.mxu0 0
  %1087 = vmatpush.bf16.msra.mxu0 0
  %1088 = vmatpush.bf16.msra.mxu0 0
  %1089 = vmatpush.bf16.msra.mxu0 0
  %1090 = vmatpush.bf16.msra.mxu0 0
  %1091 = vmatpush.bf16.msra.mxu0 0
  %1092 = vmatpush.bf16.msra.mxu0 %v50
  %1093 = vmatpush.bf16.msra.mxu0 %v49
  %1094 = vmatmul.bf16.gmra.mxu0 %v1084
  %v1095 = vpop.f32.mrf.mxu0
  %v1096 = vadd.f32 0.0, %v1095
  %v1097 = vpop.f32.mrf.mxu0
  %1098 = vdwg.mxu0
  %1100 = vrot.lane.b32.xlu0 %v1080, 32
  %v1101 = vpop.permute.xlu0 %1100
  %v1103 = vsel %vm67, %v1101, 0
  %1105 = vmatpush.bf16.msra.mxu0 0
  %1106 = vmatpush.bf16.msra.mxu0 0
  %1107 = vmatpush.bf16.msra.mxu0 0
  %1108 = vmatpush.bf16.msra.mxu0 0
  %1109 = vmatpush.bf16.msra.mxu0 0
  %1110 = vmatpush.bf16.msra.mxu0 0
  %1111 = vmatpush.bf16.msra.mxu0 %v56
  %1112 = vmatpush.bf16.msra.mxu0 %v55
  %1113 = vmatmul.bf16.gmra.mxu0 %v1103
  %v1114 = vpop.f32.mrf.mxu0
  %v1115 = vadd.f32 %v1096, %v1114
  %v1116 = vpop.f32.mrf.mxu0
  %1117 = vdwg.mxu0
  %v1118 = vadd.f32 %v1115, %v186
  %v1119 = vld [vmem:[%s189] sm:$0xff]
  %v1120 = vxor.u32 %v1118, 2147483648
  %v1121 = vmul.f32 %v1120, 1.442695
  %v1122 = vpow.pop %v1121
  %v1123 = vadd.f32 %v1122, 1.0
  %v1124 = vrcp.pop %v1123
  %v1125 = vmul.f32 %v1123, %v1124
  %v1126 = vsub.f32 1.0, %v1125
  %v1127 = vmul.f32 %v1124, %v1126
  %v1128 = vadd.f32 %v1124, %v1127
  %vm1129 = vweird.f32 %v1123
  %vm1130 = vweird.f32 %v1124
  %vm1131 = vmor %vm1129, %vm1130
  %v1132 = vsel %vm1131, %v1124, %v1128
  %v1133 = vand.u32 2147483647, %v1123
  %vm1134 = vcmp.eq.f32.partialorder %v1133, 8.507059e+37
  %v1135 = vand.u32 %v1123, 2147483648
  %v1136 = vor.u32 1.1754944e-38, %v1135
  %v1137 = vsel %vm1134, %v1136, %v1132
  %v1138 = vmul.f32 1.0, %v1137
  %v1139 = vtanh.pop %v1118
  %1141 = vrot.lane.b32.xlu0 %v1119, 32
  %v1142 = vpop.permute.xlu0 %1141
  %v1144 = vmul.f32 %v1138, %v1142
  %1146 = vrot.lane.b32.xlu0 %v1139, 64
  %v1147 = vpop.permute.xlu0 %1146
  %v1149 = vmul.f32 %v1138, %v1147
  %1151 = vrot.lane.b32.xlu0 %v1149, 32
  %v1152 = vpop.permute.xlu0 %1151
  %v1154 = vadd.f32 %v1144, %v1152
  %v1155 = vtanh.pop %v1154
  %1157 = vrot.lane.b32.xlu0 %v1155, 64
  %v1158 = vpop.permute.xlu0 %1157
  %v1160 = vmul.f32 %v1138, %v1158
  %1162 = vrot.lane.b32.xlu0 %v1160, 32
  %v1163 = vpop.permute.xlu0 %1162
  %1165 = vst.msk [vmem:[%s147] sm:$0xff] %vm67, %v1163
  %1167 = vrot.lane.b32.xlu0 %v1154, 96
  %v1168 = vpop.permute.xlu0 %1167
  %1170 = vst.msk [vmem:[%s189] sm:$0xff] %vm67, %v1168
  %v1171 = vpack.c.bf16 %v1160, %v1160
  %1173 = vrot.lane.b32.xlu0 %v1171, 32
  %v1174 = vpop.permute.xlu0 %1173
  %v1176 = vsel %vm67, %v1174, 0
  %1178 = vmatpush.bf16.msra.mxu0 0
  %1179 = vmatpush.bf16.msra.mxu0 0
  %1180 = vmatpush.bf16.msra.mxu0 0
  %1181 = vmatpush.bf16.msra.mxu0 0
  %1182 = vmatpush.bf16.msra.mxu0 0
  %1183 = vmatpush.bf16.msra.mxu0 0
  %1184 = vmatpush.bf16.msra.mxu0 %v63
  %1185 = vmatpush.bf16.msra.mxu0 %v62
  %1186 = vmatmul.bf16.gmra.mxu0 %v1176
  %v1187 = vpop.f32.mrf.mxu0
  %v1188 = vadd.f32 %v244, %v1187
  %v1189 = vpop.f32.mrf.mxu0
  %1190 = vdwg.mxu0
  %1191 = vst.msk [vmem:[%s10 + $0x28] sm:$0xff] %vm265, %v1188
  %v1192 = vld [vmem:[%s11] sm:$0xff]
  %v1193 = vpack.c.bf16 %v1192, %v1192
  %s1194 = scalar_lea.vmem %s0, 48
  %v1195 = vld [vmem:[%s1194] sm:$0xff]
  %v1197 = vsel %vm67, %v1193, 0
  %1199 = vmatpush.bf16.msra.mxu0 0
  %1200 = vmatpush.bf16.msra.mxu0 0
  %1201 = vmatpush.bf16.msra.mxu0 0
  %1202 = vmatpush.bf16.msra.mxu0 0
  %1203 = vmatpush.bf16.msra.mxu0 0
  %1204 = vmatpush.bf16.msra.mxu0 0
  %1205 = vmatpush.bf16.msra.mxu0 %v44
  %1206 = vmatpush.bf16.msra.mxu0 %v43
  %1207 = vmatmul.bf16.gmra.mxu0 %v1197
  %v1208 = vpop.f32.mrf.mxu0
  %v1209 = vadd.f32 0.0, %v1208
  %v1210 = vpop.f32.mrf.mxu0
  %1211 = vdwg.mxu0
  %v1212 = vadd.f32 %v1195, %v1209
  %v1213 = vld [vmem:[%s12] sm:$0xff]
  %v1214 = vxor.u32 %v1212, 2147483648
  %v1215 = vmul.f32 %v1214, 1.442695
  %v1216 = vpow.pop %v1215
  %v1217 = vadd.f32 %v1216, 1.0
  %v1218 = vrcp.pop %v1217
  %v1219 = vmul.f32 %v1217, %v1218
  %v1220 = vsub.f32 1.0, %v1219
  %v1221 = vmul.f32 %v1218, %v1220
  %v1222 = vadd.f32 %v1218, %v1221
  %vm1223 = vweird.f32 %v1217
  %vm1224 = vweird.f32 %v1218
  %vm1225 = vmor %vm1223, %vm1224
  %v1226 = vsel %vm1225, %v1218, %v1222
  %v1227 = vand.u32 2147483647, %v1217
  %vm1228 = vcmp.eq.f32.partialorder %v1227, 8.507059e+37
  %v1229 = vand.u32 %v1217, 2147483648
  %v1230 = vor.u32 1.1754944e-38, %v1229
  %v1231 = vsel %vm1228, %v1230, %v1226
  %v1232 = vmul.f32 1.0, %v1231
  %v1233 = vtanh.pop %v1212
  %1235 = vrot.lane.b32.xlu0 %v1213, 32
  %v1236 = vpop.permute.xlu0 %1235
  %v1238 = vmul.f32 %v1232, %v1236
  %1240 = vrot.lane.b32.xlu0 %v1233, 64
  %v1241 = vpop.permute.xlu0 %1240
  %v1243 = vmul.f32 %v1232, %v1241
  %1245 = vrot.lane.b32.xlu0 %v1243, 32
  %v1246 = vpop.permute.xlu0 %1245
  %v1248 = vadd.f32 %v1238, %v1246
  %v1249 = vtanh.pop %v1248
  %1251 = vrot.lane.b32.xlu0 %v1249, 64
  %v1252 = vpop.permute.xlu0 %1251
  %v1254 = vmul.f32 %v1232, %v1252
  %1256 = vrot.lane.b32.xlu0 %v1254, 32
  %v1257 = vpop.permute.xlu0 %1256
  %1259 = vst.msk [vmem:[%s11] sm:$0xff] %vm67, %v1257
  %1261 = vrot.lane.b32.xlu0 %v1248, 96
  %v1262 = vpop.permute.xlu0 %1261
  %1264 = vst.msk [vmem:[%s12] sm:$0xff] %vm67, %v1262
  %v1265 = vpack.c.bf16 %v1254, %v1254
  %v1266 = vld [vmem:[%s147] sm:$0xff]
  %v1267 = vpack.c.bf16 %v1266, %v1266
  %v1269 = vsel %vm67, %v1267, 0
  %1271 = vmatpush.bf16.msra.mxu0 0
  %1272 = vmatpush.bf16.msra.mxu0 0
  %1273 = vmatpush.bf16.msra.mxu0 0
  %1274 = vmatpush.bf16.msra.mxu0 0
  %1275 = vmatpush.bf16.msra.mxu0 0
  %1276 = vmatpush.bf16.msra.mxu0 0
  %1277 = vmatpush.bf16.msra.mxu0 %v50
  %1278 = vmatpush.bf16.msra.mxu0 %v49
  %1279 = vmatmul.bf16.gmra.mxu0 %v1269
  %v1280 = vpop.f32.mrf.mxu0
  %v1281 = vadd.f32 0.0, %v1280
  %v1282 = vpop.f32.mrf.mxu0
  %1283 = vdwg.mxu0
  %1285 = vrot.lane.b32.xlu0 %v1265, 32
  %v1286 = vpop.permute.xlu0 %1285
  %v1288 = vsel %vm67, %v1286, 0
  %1290 = vmatpush.bf16.msra.mxu0 0
  %1291 = vmatpush.bf16.msra.mxu0 0
  %1292 = vmatpush.bf16.msra.mxu0 0
  %1293 = vmatpush.bf16.msra.mxu0 0
  %1294 = vmatpush.bf16.msra.mxu0 0
  %1295 = vmatpush.bf16.msra.mxu0 0
  %1296 = vmatpush.bf16.msra.mxu0 %v56
  %1297 = vmatpush.bf16.msra.mxu0 %v55
  %1298 = vmatmul.bf16.gmra.mxu0 %v1288
  %v1299 = vpop.f32.mrf.mxu0
  %v1300 = vadd.f32 %v1281, %v1299
  %v1301 = vpop.f32.mrf.mxu0
  %1302 = vdwg.mxu0
  %v1303 = vadd.f32 %v1300, %v186
  %v1304 = vld [vmem:[%s189] sm:$0xff]
  %v1305 = vxor.u32 %v1303, 2147483648
  %v1306 = vmul.f32 %v1305, 1.442695
  %v1307 = vpow.pop %v1306
  %v1308 = vadd.f32 %v1307, 1.0
  %v1309 = vrcp.pop %v1308
  %v1310 = vmul.f32 %v1308, %v1309
  %v1311 = vsub.f32 1.0, %v1310
  %v1312 = vmul.f32 %v1309, %v1311
  %v1313 = vadd.f32 %v1309, %v1312
  %vm1314 = vweird.f32 %v1308
  %vm1315 = vweird.f32 %v1309
  %vm1316 = vmor %vm1314, %vm1315
  %v1317 = vsel %vm1316, %v1309, %v1313
  %v1318 = vand.u32 2147483647, %v1308
  %vm1319 = vcmp.eq.f32.partialorder %v1318, 8.507059e+37
  %v1320 = vand.u32 %v1308, 2147483648
  %v1321 = vor.u32 1.1754944e-38, %v1320
  %v1322 = vsel %vm1319, %v1321, %v1317
  %v1323 = vmul.f32 1.0, %v1322
  %v1324 = vtanh.pop %v1303
  %1326 = vrot.lane.b32.xlu0 %v1304, 32
  %v1327 = vpop.permute.xlu0 %1326
  %v1329 = vmul.f32 %v1323, %v1327
  %1331 = vrot.lane.b32.xlu0 %v1324, 64
  %v1332 = vpop.permute.xlu0 %1331
  %v1334 = vmul.f32 %v1323, %v1332
  %1336 = vrot.lane.b32.xlu0 %v1334, 32
  %v1337 = vpop.permute.xlu0 %1336
  %v1339 = vadd.f32 %v1329, %v1337
  %v1340 = vtanh.pop %v1339
  %1342 = vrot.lane.b32.xlu0 %v1340, 64
  %v1343 = vpop.permute.xlu0 %1342
  %v1345 = vmul.f32 %v1323, %v1343
  %1347 = vrot.lane.b32.xlu0 %v1345, 32
  %v1348 = vpop.permute.xlu0 %1347
  %1350 = vst.msk [vmem:[%s147] sm:$0xff] %vm67, %v1348
  %1352 = vrot.lane.b32.xlu0 %v1339, 96
  %v1353 = vpop.permute.xlu0 %1352
  %1355 = vst.msk [vmem:[%s189] sm:$0xff] %vm67, %v1353
  %v1356 = vpack.c.bf16 %v1345, %v1345
  %1358 = vrot.lane.b32.xlu0 %v1356, 32
  %v1359 = vpop.permute.xlu0 %1358
  %v1361 = vsel %vm67, %v1359, 0
  %1363 = vmatpush.bf16.msra.mxu0 0
  %1364 = vmatpush.bf16.msra.mxu0 0
  %1365 = vmatpush.bf16.msra.mxu0 0
  %1366 = vmatpush.bf16.msra.mxu0 0
  %1367 = vmatpush.bf16.msra.mxu0 0
  %1368 = vmatpush.bf16.msra.mxu0 0
  %1369 = vmatpush.bf16.msra.mxu0 %v63
  %1370 = vmatpush.bf16.msra.mxu0 %v62
  %1371 = vmatmul.bf16.gmra.mxu0 %v1361
  %v1372 = vpop.f32.mrf.mxu0
  %v1373 = vadd.f32 %v244, %v1372
  %v1374 = vpop.f32.mrf.mxu0
  %1375 = vdwg.mxu0
  %1376 = vst.msk [vmem:[%s10 + $0x30] sm:$0xff] %vm265, %v1373
  %v1377 = vld [vmem:[%s11] sm:$0xff]
  %v1378 = vpack.c.bf16 %v1377, %v1377
  %s1379 = scalar_lea.vmem %s0, 56
  %v1380 = vld [vmem:[%s1379] sm:$0xff]
  %v1382 = vsel %vm67, %v1378, 0
  %1384 = vmatpush.bf16.msra.mxu0 0
  %1385 = vmatpush.bf16.msra.mxu0 0
  %1386 = vmatpush.bf16.msra.mxu0 0
  %1387 = vmatpush.bf16.msra.mxu0 0
  %1388 = vmatpush.bf16.msra.mxu0 0
  %1389 = vmatpush.bf16.msra.mxu0 0
  %1390 = vmatpush.bf16.msra.mxu0 %v44
  %1391 = vmatpush.bf16.msra.mxu0 %v43
  %1392 = vmatmul.bf16.gmra.mxu0 %v1382
  %v1393 = vpop.f32.mrf.mxu0
  %v1394 = vadd.f32 0.0, %v1393
  %v1395 = vpop.f32.mrf.mxu0
  %1396 = vdwg.mxu0
  %v1397 = vadd.f32 %v1380, %v1394
  %v1398 = vld [vmem:[%s12] sm:$0xff]
  %v1399 = vxor.u32 %v1397, 2147483648
  %v1400 = vmul.f32 %v1399, 1.442695
  %v1401 = vpow.pop %v1400
  %v1402 = vadd.f32 %v1401, 1.0
  %v1403 = vrcp.pop %v1402
  %v1404 = vmul.f32 %v1402, %v1403
  %v1405 = vsub.f32 1.0, %v1404
  %v1406 = vmul.f32 %v1403, %v1405
  %v1407 = vadd.f32 %v1403, %v1406
  %vm1408 = vweird.f32 %v1402
  %vm1409 = vweird.f32 %v1403
  %vm1410 = vmor %vm1408, %vm1409
  %v1411 = vsel %vm1410, %v1403, %v1407
  %v1412 = vand.u32 2147483647, %v1402
  %vm1413 = vcmp.eq.f32.partialorder %v1412, 8.507059e+37
  %v1414 = vand.u32 %v1402, 2147483648
  %v1415 = vor.u32 1.1754944e-38, %v1414
  %v1416 = vsel %vm1413, %v1415, %v1411
  %v1417 = vmul.f32 1.0, %v1416
  %v1418 = vtanh.pop %v1397
  %1420 = vrot.lane.b32.xlu0 %v1398, 32
  %v1421 = vpop.permute.xlu0 %1420
  %v1423 = vmul.f32 %v1417, %v1421
  %1425 = vrot.lane.b32.xlu0 %v1418, 64
  %v1426 = vpop.permute.xlu0 %1425
  %v1428 = vmul.f32 %v1417, %v1426
  %1430 = vrot.lane.b32.xlu0 %v1428, 32
  %v1431 = vpop.permute.xlu0 %1430
  %v1433 = vadd.f32 %v1423, %v1431
  %v1434 = vtanh.pop %v1433
  %1436 = vrot.lane.b32.xlu0 %v1434, 64
  %v1437 = vpop.permute.xlu0 %1436
  %v1439 = vmul.f32 %v1417, %v1437
  %1441 = vrot.lane.b32.xlu0 %v1439, 32
  %v1442 = vpop.permute.xlu0 %1441
  %1444 = vst.msk [vmem:[%s11] sm:$0xff] %vm67, %v1442
  %1446 = vrot.lane.b32.xlu0 %v1433, 96
  %v1447 = vpop.permute.xlu0 %1446
  %1449 = vst.msk [vmem:[%s12] sm:$0xff] %vm67, %v1447
  %v1450 = vpack.c.bf16 %v1439, %v1439
  %v1451 = vld [vmem:[%s147] sm:$0xff]
  %v1452 = vpack.c.bf16 %v1451, %v1451
  %v1454 = vsel %vm67, %v1452, 0
  %1456 = vmatpush.bf16.msra.mxu0 0
  %1457 = vmatpush.bf16.msra.mxu0 0
  %1458 = vmatpush.bf16.msra.mxu0 0
  %1459 = vmatpush.bf16.msra.mxu0 0
  %1460 = vmatpush.bf16.msra.mxu0 0
  %1461 = vmatpush.bf16.msra.mxu0 0
  %1462 = vmatpush.bf16.msra.mxu0 %v50
  %1463 = vmatpush.bf16.msra.mxu0 %v49
  %1464 = vmatmul.bf16.gmra.mxu0 %v1454
  %v1465 = vpop.f32.mrf.mxu0
  %v1466 = vadd.f32 0.0, %v1465
  %v1467 = vpop.f32.mrf.mxu0
  %1468 = vdwg.mxu0
  %1470 = vrot.lane.b32.xlu0 %v1450, 32
  %v1471 = vpop.permute.xlu0 %1470
  %v1473 = vsel %vm67, %v1471, 0
  %1475 = vmatpush.bf16.msra.mxu0 0
  %1476 = vmatpush.bf16.msra.mxu0 0
  %1477 = vmatpush.bf16.msra.mxu0 0
  %1478 = vmatpush.bf16.msra.mxu0 0
  %1479 = vmatpush.bf16.msra.mxu0 0
  %1480 = vmatpush.bf16.msra.mxu0 0
  %1481 = vmatpush.bf16.msra.mxu0 %v56
  %1482 = vmatpush.bf16.msra.mxu0 %v55
  %1483 = vmatmul.bf16.gmra.mxu0 %v1473
  %v1484 = vpop.f32.mrf.mxu0
  %v1485 = vadd.f32 %v1466, %v1484
  %v1486 = vpop.f32.mrf.mxu0
  %1487 = vdwg.mxu0
  %v1488 = vadd.f32 %v1485, %v186
  %v1489 = vld [vmem:[%s189] sm:$0xff]
  %v1490 = vxor.u32 %v1488, 2147483648
  %v1491 = vmul.f32 %v1490, 1.442695
  %v1492 = vpow.pop %v1491
  %v1493 = vadd.f32 %v1492, 1.0
  %v1494 = vrcp.pop %v1493
  %v1495 = vmul.f32 %v1493, %v1494
  %v1496 = vsub.f32 1.0, %v1495
  %v1497 = vmul.f32 %v1494, %v1496
  %v1498 = vadd.f32 %v1494, %v1497
  %vm1499 = vweird.f32 %v1493
  %vm1500 = vweird.f32 %v1494
  %vm1501 = vmor %vm1499, %vm1500
  %v1502 = vsel %vm1501, %v1494, %v1498
  %v1503 = vand.u32 2147483647, %v1493
  %vm1504 = vcmp.eq.f32.partialorder %v1503, 8.507059e+37
  %v1505 = vand.u32 %v1493, 2147483648
  %v1506 = vor.u32 1.1754944e-38, %v1505
  %v1507 = vsel %vm1504, %v1506, %v1502
  %v1508 = vmul.f32 1.0, %v1507
  %v1509 = vtanh.pop %v1488
  %1511 = vrot.lane.b32.xlu0 %v1489, 32
  %v1512 = vpop.permute.xlu0 %1511
  %v1514 = vmul.f32 %v1508, %v1512
  %1516 = vrot.lane.b32.xlu0 %v1509, 64
  %v1517 = vpop.permute.xlu0 %1516
  %v1519 = vmul.f32 %v1508, %v1517
  %1521 = vrot.lane.b32.xlu0 %v1519, 32
  %v1522 = vpop.permute.xlu0 %1521
  %v1524 = vadd.f32 %v1514, %v1522
  %v1525 = vtanh.pop %v1524
  %1527 = vrot.lane.b32.xlu0 %v1525, 64
  %v1528 = vpop.permute.xlu0 %1527
  %v1530 = vmul.f32 %v1508, %v1528
  %1532 = vrot.lane.b32.xlu0 %v1530, 32
  %v1533 = vpop.permute.xlu0 %1532
  %1535 = vst.msk [vmem:[%s147] sm:$0xff] %vm67, %v1533
  %1537 = vrot.lane.b32.xlu0 %v1524, 96
  %v1538 = vpop.permute.xlu0 %1537
  %1540 = vst.msk [vmem:[%s189] sm:$0xff] %vm67, %v1538
  %v1541 = vpack.c.bf16 %v1530, %v1530
  %1543 = vrot.lane.b32.xlu0 %v1541, 32
  %v1544 = vpop.permute.xlu0 %1543
  %v1546 = vsel %vm67, %v1544, 0
  %1548 = vmatpush.bf16.msra.mxu0 0
  %1549 = vmatpush.bf16.msra.mxu0 0
  %1550 = vmatpush.bf16.msra.mxu0 0
  %1551 = vmatpush.bf16.msra.mxu0 0
  %1552 = vmatpush.bf16.msra.mxu0 0
  %1553 = vmatpush.bf16.msra.mxu0 0
  %1554 = vmatpush.bf16.msra.mxu0 %v63
  %1555 = vmatpush.bf16.msra.mxu0 %v62
  %1556 = vmatmul.bf16.gmra.mxu0 %v1546
  %v1557 = vpop.f32.mrf.mxu0
  %v1558 = vadd.f32 %v244, %v1557
  %v1559 = vpop.f32.mrf.mxu0
  %1560 = vdwg.mxu0
  %1561 = vst.msk [vmem:[%s10 + $0x38] sm:$0xff] %vm265, %v1558
  %v1562 = vld [vmem:[%s10] sm:$0xff]
  %v1563 = vld [vmem:[%s10 + $0x8] sm:$0xff]
  %v1564 = vld [vmem:[%s10 + $0x10] sm:$0xff]
  %v1565 = vld [vmem:[%s10 + $0x18] sm:$0xff]
  %v1566 = vld [vmem:[%s10 + $0x20] sm:$0xff]
  %v1567 = vld [vmem:[%s10 + $0x28] sm:$0xff]
  %v1568 = vld [vmem:[%s10 + $0x30] sm:$0xff]
  %v1569 = vld [vmem:[%s10 + $0x38] sm:$0xff]
  %v1570 = vld [vmem:[%s7] sm:$0xff]
  %v1571 = vld [vmem:[%s7 + $0x8] sm:$0xff]
  %v1572 = vld [vmem:[%s7 + $0x10] sm:$0xff]
  %v1573 = vld [vmem:[%s7 + $0x18] sm:$0xff]
  %v1574 = vld [vmem:[%s7 + $0x20] sm:$0xff]
  %v1575 = vld [vmem:[%s7 + $0x28] sm:$0xff]
  %v1576 = vld [vmem:[%s7 + $0x30] sm:$0xff]
  %v1577 = vld [vmem:[%s7 + $0x38] sm:$0xff]
  %vm1578 = vcmp.gt.f32.partialorder %v1570, 0.0
  %vm1579 = vcmp.gt.f32.partialorder %v1571, 0.0
  %vm1580 = vcmp.gt.f32.partialorder %v1572, 0.0
  %vm1581 = vcmp.gt.f32.partialorder %v1573, 0.0
  %vm1582 = vcmp.gt.f32.partialorder %v1574, 0.0
  %vm1583 = vcmp.gt.f32.partialorder %v1575, 0.0
  %vm1584 = vcmp.gt.f32.partialorder %v1576, 0.0
  %vm1585 = vcmp.gt.f32.partialorder %v1577, 0.0
  %v1586 = vsel %vm1578, 1, 0
  %v1587 = vsel %vm1579, 1, 0
  %v1588 = vsel %vm1580, 1, 0
  %v1589 = vsel %vm1581, 1, 0
  %v1590 = vsel %vm1582, 1, 0
  %v1591 = vsel %vm1583, 1, 0
  %v1592 = vsel %vm1584, 1, 0
  %v1593 = vsel %vm1585, 1, 0
  %1594 = vset.pattern.permute.xlu0 0
  %1595 = vperm.xlu0 %1594, %v1586
  %v1596 = vpop.permute.xlu0 %1595
  %1597 = vset.pattern.permute.xlu0 0
  %1598 = vperm.xlu0 %1597, %v1587
  %v1599 = vpop.permute.xlu0 %1598
  %1600 = vset.pattern.permute.xlu0 0
  %1601 = vperm.xlu0 %1600, %v1588
  %v1602 = vpop.permute.xlu0 %1601
  %1603 = vset.pattern.permute.xlu0 0
  %1604 = vperm.xlu0 %1603, %v1589
  %v1605 = vpop.permute.xlu0 %1604
  %1606 = vset.pattern.permute.xlu0 0
  %1607 = vperm.xlu0 %1606, %v1590
  %v1608 = vpop.permute.xlu0 %1607
  %1609 = vset.pattern.permute.xlu0 0
  %1610 = vperm.xlu0 %1609, %v1591
  %v1611 = vpop.permute.xlu0 %1610
  %1612 = vset.pattern.permute.xlu0 0
  %1613 = vperm.xlu0 %1612, %v1592
  %v1614 = vpop.permute.xlu0 %1613
  %1615 = vset.pattern.permute.xlu0 0
  %1616 = vperm.xlu0 %1615, %v1593
  %v1617 = vpop.permute.xlu0 %1616
  %vm1618 = vcmp.eq.s32.totalorder %v1596, 1
  %vm1619 = vcmp.eq.s32.totalorder %v1599, 1
  %vm1620 = vcmp.eq.s32.totalorder %v1602, 1
  %vm1621 = vcmp.eq.s32.totalorder %v1605, 1
  %vm1622 = vcmp.eq.s32.totalorder %v1608, 1
  %vm1623 = vcmp.eq.s32.totalorder %v1611, 1
  %vm1624 = vcmp.eq.s32.totalorder %v1614, 1
  %vm1625 = vcmp.eq.s32.totalorder %v1617, 1
  %v1626 = vsel %vm1618, %v1562, -1e+30
  %v1627 = vsel %vm1619, %v1563, -1e+30
  %v1628 = vsel %vm1620, %v1564, -1e+30
  %v1629 = vsel %vm1621, %v1565, -1e+30
  %v1630 = vsel %vm1622, %v1566, -1e+30
  %v1631 = vsel %vm1623, %v1567, -1e+30
  %v1632 = vsel %vm1624, %v1568, -1e+30
  %v1633 = vsel %vm1625, %v1569, -1e+30
  %v1634 = vsel %vm265, %v1626, -inf
  %v1635 = vsel %vm265, %v1627, -inf
  %v1636 = vsel %vm265, %v1628, -inf
  %v1637 = vsel %vm265, %v1629, -inf
  %v1638 = vsel %vm265, %v1630, -inf
  %v1639 = vmax.f32 %v1634, %v1638
  %v1640 = vsel %vm265, %v1631, -inf
  %v1641 = vmax.f32 %v1635, %v1640
  %v1642 = vsel %vm265, %v1632, -inf
  %v1643 = vmax.f32 %v1636, %v1642
  %v1644 = vsel %vm265, %v1633, -inf
  %v1645 = vmax.f32 %v1637, %v1644
  %v1646 = vmax.f32 %v1639, %v1641
  %v1647 = vmax.f32 %v1643, %v1645
  %v1648 = vmax.f32 %v1646, %v1647
  %v1649 = vrot.slane %v1648, 4
  %v1650 = vmax.f32 %v1648, %v1649
  %v1651 = vrot.slane %v1650, 2
  %v1652 = vmax.f32 %v1650, %v1651
  %v1653 = vrot.slane %v1652, 1
  %v1654 = vmax.f32 %v1652, %v1653
  %v1655 = vsub.f32 %v1562, %v1654
  %v1656 = vsub.f32 %v1563, %v1654
  %v1657 = vsub.f32 %v1564, %v1654
  %v1658 = vsub.f32 %v1565, %v1654
  %v1659 = vsub.f32 %v1566, %v1654
  %v1660 = vsub.f32 %v1567, %v1654
  %v1661 = vsub.f32 %v1568, %v1654
  %v1662 = vsub.f32 %v1569, %v1654
  %v1663 = vmul.f32 %v1655, 1.442695
  %v1664 = vpow.pop %v1663
  %v1665 = vmul.f32 %v1656, 1.442695
  %v1666 = vpow.pop %v1665
  %v1667 = vmul.f32 %v1657, 1.442695
  %v1668 = vpow.pop %v1667
  %v1669 = vmul.f32 %v1658, 1.442695
  %v1670 = vpow.pop %v1669
  %v1671 = vmul.f32 %v1659, 1.442695
  %v1672 = vpow.pop %v1671
  %v1673 = vmul.f32 %v1660, 1.442695
  %v1674 = vpow.pop %v1673
  %v1675 = vmul.f32 %v1661, 1.442695
  %v1676 = vpow.pop %v1675
  %v1677 = vmul.f32 %v1662, 1.442695
  %v1678 = vpow.pop %v1677
  %1680 = vset.pattern.permute.xlu0 0
  %1681 = vperm.xlu0 %1680, %v1570
  %v1682 = vpop.permute.xlu0 %1681
  %1685 = vset.pattern.permute.xlu0 0
  %1686 = vperm.xlu0 %1685, %v1571
  %v1687 = vpop.permute.xlu0 %1686
  %1690 = vset.pattern.permute.xlu0 0
  %1691 = vperm.xlu0 %1690, %v1572
  %v1692 = vpop.permute.xlu0 %1691
  %1695 = vset.pattern.permute.xlu0 0
  %1696 = vperm.xlu0 %1695, %v1573
  %v1697 = vpop.permute.xlu0 %1696
  %1700 = vset.pattern.permute.xlu0 0
  %1701 = vperm.xlu0 %1700, %v1574
  %v1702 = vpop.permute.xlu0 %1701
  %1705 = vset.pattern.permute.xlu0 0
  %1706 = vperm.xlu0 %1705, %v1575
  %v1707 = vpop.permute.xlu0 %1706
  %1710 = vset.pattern.permute.xlu0 0
  %1711 = vperm.xlu0 %1710, %v1576
  %v1712 = vpop.permute.xlu0 %1711
  %1715 = vset.pattern.permute.xlu0 0
  %1716 = vperm.xlu0 %1715, %v1577
  %v1717 = vpop.permute.xlu0 %1716
  %v1719 = vmul.f32 %v1664, %v1682
  %v1720 = vmul.f32 %v1666, %v1687
  %v1721 = vmul.f32 %v1668, %v1692
  %v1722 = vmul.f32 %v1670, %v1697
  %v1723 = vmul.f32 %v1672, %v1702
  %v1724 = vmul.f32 %v1674, %v1707
  %v1725 = vmul.f32 %v1676, %v1712
  %v1726 = vmul.f32 %v1678, %v1717
  %v1727 = vsel %vm265, %v1719, 0.0
  %v1728 = vsel %vm265, %v1720, 0.0
  %v1729 = vadd.f32 %v1727, %v1728
  %v1730 = vsel %vm265, %v1721, 0.0
  %v1731 = vadd.f32 %v1729, %v1730
  %v1732 = vsel %vm265, %v1722, 0.0
  %v1733 = vadd.f32 %v1731, %v1732
  %v1734 = vsel %vm265, %v1723, 0.0
  %v1735 = vadd.f32 %v1733, %v1734
  %v1736 = vsel %vm265, %v1724, 0.0
  %v1737 = vadd.f32 %v1735, %v1736
  %v1738 = vsel %vm265, %v1725, 0.0
  %v1739 = vadd.f32 %v1737, %v1738
  %v1740 = vsel %vm265, %v1726, 0.0
  %v1741 = vadd.f32 %v1739, %v1740
  %v1742 = vrot.slane %v1741, 4
  %v1743 = vadd.f32 %v1741, %v1742
  %v1744 = vrot.slane %v1743, 2
  %v1745 = vadd.f32 %v1743, %v1744
  %v1746 = vrot.slane %v1745, 1
  %v1747 = vadd.f32 %v1745, %v1746
  %v1748 = vrcp.pop %v1747
  %v1749 = vmul.f32 %v1747, %v1748
  %v1750 = vsub.f32 1.0, %v1749
  %v1751 = vmul.f32 %v1748, %v1750
  %v1752 = vadd.f32 %v1748, %v1751
  %vm1753 = vweird.f32 %v1747
  %vm1754 = vweird.f32 %v1748
  %vm1755 = vmor %vm1753, %vm1754
  %v1756 = vsel %vm1755, %v1748, %v1752
  %v1757 = vand.u32 2147483647, %v1747
  %vm1758 = vcmp.eq.f32.partialorder %v1757, 8.507059e+37
  %v1759 = vand.u32 %v1747, 2147483648
  %v1760 = vor.u32 1.1754944e-38, %v1759
  %v1761 = vsel %vm1758, %v1760, %v1756
  %v1762 = vmul.f32 %v1719, %v1761
  %v1763 = vmul.f32 %v1720, %v1761
  %v1764 = vmul.f32 %v1721, %v1761
  %v1765 = vmul.f32 %v1722, %v1761
  %v1766 = vmul.f32 %v1723, %v1761
  %v1767 = vmul.f32 %v1724, %v1761
  %v1768 = vmul.f32 %v1725, %v1761
  %v1769 = vmul.f32 %v1726, %v1761
  %1770 = vst.msk [vmem:[%s10] sm:$0xff] %vm265, %v1762
  %1771 = vst.msk [vmem:[%s10 + $0x8] sm:$0xff] %vm265, %v1763
  %1772 = vst.msk [vmem:[%s10 + $0x10] sm:$0xff] %vm265, %v1764
  %1773 = vst.msk [vmem:[%s10 + $0x18] sm:$0xff] %vm265, %v1765
  %1774 = vst.msk [vmem:[%s10 + $0x20] sm:$0xff] %vm265, %v1766
  %1775 = vst.msk [vmem:[%s10 + $0x28] sm:$0xff] %vm265, %v1767
  %1776 = vst.msk [vmem:[%s10 + $0x30] sm:$0xff] %vm265, %v1768
  %1777 = vst.msk [vmem:[%s10 + $0x38] sm:$0xff] %vm265, %v1769
  // Predicated region
  $region42: #{sentiment_lstm_forward.1} parent=0 // pred_check
    _
  $region43: #{sentiment_lstm_forward.1} parent=0 // pred_check_branch
    %1779 = sbr.rel (0) target = $region45
  $region44: #{sentiment_lstm_forward.1} parent=0 // pred_region
    _
  $region45: #{sentiment_lstm_forward.1} parent=0 // pred_fallthru
    _
  // Predicated region
  $region46: #{sentiment_lstm_forward.1} parent=0 // pred_check
    _
  $region47: #{sentiment_lstm_forward.1} parent=0 // pred_check_branch
    %1781 = sbr.rel (0) target = $region49
  $region48: #{sentiment_lstm_forward.1} parent=0 // pred_region
    _
  $region49: #{sentiment_lstm_forward.1} parent=0 // pred_fallthru
    _
  // Predicated region
  $region50: #{sentiment_lstm_forward.1} parent=0 // pred_check
    _
  $region51: #{sentiment_lstm_forward.1} parent=0 // pred_check_branch
    %1783 = sbr.rel (0) target = $region53
  $region52: #{sentiment_lstm_forward.1} parent=0 // pred_region
    _
  $region53: #{sentiment_lstm_forward.1} parent=0 // pred_fallthru
    _
  // Predicated region
  $region54: #{sentiment_lstm_forward.1} parent=0 // pred_check
    _
  $region55: #{sentiment_lstm_forward.1} parent=0 // pred_check_branch
    %1785 = sbr.rel (0) target = $region57
  $region56: #{sentiment_lstm_forward.1} parent=0 // pred_region
    _
  $region57: #{sentiment_lstm_forward.1} parent=0 // pred_fallthru
    _
  // Predicated region
  $region58: #{sentiment_lstm_forward.1} parent=0 // pred_check
    _
  $region59: #{sentiment_lstm_forward.1} parent=0 // pred_check_branch
    %1787 = sbr.rel (0) target = $region61
  $region60: #{sentiment_lstm_forward.1} parent=0 // pred_region
    _
  $region61: #{sentiment_lstm_forward.1} parent=0 // pred_fallthru
    _
  // Predicated region
  $region62: #{sentiment_lstm_forward.1} parent=0 // pred_check
    _
  $region63: #{sentiment_lstm_forward.1} parent=0 // pred_check_branch
    %1789 = sbr.rel (0) target = $region65
  $region64: #{sentiment_lstm_forward.1} parent=0 // pred_region
    _
  $region65: #{sentiment_lstm_forward.1} parent=0 // pred_fallthru
    _

</llo_original>
